<compile_context>
chip_gen: v5e
topology: v5e:2x2
jax: 0.10.0
libtpu: 0.0.40
codegen_flags: <defaults>
</compile_context>

<pallas_src>
import functools
import math

import jax
import jax.numpy as jnp
from jax.experimental import pallas as pl
from jax.experimental.pallas import tpu as pltpu

LN_EPS = 1e-5                 # PyTorch nn.Transformer layer_norm_eps default
MXU_DTYPE = jnp.bfloat16      # MXU operand dtype (f32 accumulation everywhere)


# ----------------------------------------------------------------------------
# helpers usable inside the kernel
# ----------------------------------------------------------------------------
def _mm(x, w):
    # activation (M, K) x pre-transposed weight (K, N) -> (M, N); f32 accumulate
    return jnp.dot(x.astype(MXU_DTYPE), w.astype(MXU_DTYPE),
                   preferred_element_type=jnp.float32)


def _mm_nt(a, b):
    # both operands are activations: a (M, K) @ b (N, K).T -> (M, N)
    return jax.lax.dot_general(
        a.astype(MXU_DTYPE), b.astype(MXU_DTYPE),
        (((1,), (1,)), ((), ())),
        preferred_element_type=jnp.float32)


def _layernorm(y, g, b):
    mu = jnp.mean(y, axis=-1, keepdims=True)
    var = jnp.mean((y - mu) ** 2, axis=-1, keepdims=True)
    return (y - mu) * jax.lax.rsqrt(var + LN_EPS) * g + b


def _softmax(s):
    s = s - jnp.max(s, axis=-1, keepdims=True)
    p = jnp.exp(s)
    return p * pl.reciprocal(jnp.sum(p, axis=-1, keepdims=True), approx=True)


# ----------------------------------------------------------------------------
# single fused kernel: whole TransformerModel forward
#
# packed operand layouts (all weights pre-transposed to (K, N)):
#   emb_w  : (pad_in, H)        bf16
#   enc_w  : (L, H, 6H)         bf16   [Wqkv | Wo | W1 | W2]
#   enc_p  : (L, 10, H)         f32    [bq bk bv bo ln1g ln1b b1 b2 ln2g ln2b]
#   dec_w  : (L, H, 8H)         bf16   [selfWqkv | selfWo | xWq | xWo | W1 | W2]
#   dec_kvw: (H, 2H*L)          bf16   cross-attn K/V weights, all layers
#   dec_p  : (L, 16, H)         f32    [bq bk bv bo1 ln1g ln1b bq2 bo2 ln2g ln2b
#                                        b1 b2 ln3g ln3b  xbk xbv]
#   fc_w   : (H, pad_out=H)     bf16
#   misc   : (6, H)             f32    [emb_b enc_ng enc_nb dec_ng dec_nb fc_b]
# ----------------------------------------------------------------------------
def fused_transformer_kernel(x_ref, emb_w, enc_w, enc_p, dec_w, dec_kvw,
                             dec_p, fc_w, misc, o_ref, *, num_layers, hidden):
    H = hidden
    L = num_layers
    scale = 1.0 / math.sqrt(H)

    def attn_core(q, k, v):
        # single-head attention (nhead=1), unmasked (module passes no masks)
        p = _softmax(_mm_nt(q, k) * scale)           # (S, S)
        return _mm(p, v)                             # (S, H)

    # ---- embedding linear ---------------------------------------------------
    x = x_ref[...]                                   # (S, PAD_IN) f32
    emb = _mm(x, emb_w[...]) + misc[0:1, :]          # (S, H)
    S = emb.shape[0]

    # ---- tgt = cat([zeros(1, H), emb[:-1]]) : sublane roll + zero row 0 -----
    rolled = pltpu.roll(emb, shift=1, axis=0)        # rolled[i] = emb[i-1]
    row = jax.lax.broadcasted_iota(jnp.int32, (S, H), 0)
    tgt = jnp.where(row == 0, 0.0, rolled)

    # ---- encoder (post-LN layers, relu FFN), then final encoder norm --------
    mem = emb
    for l in range(L):
        qkv = _mm(mem, enc_w[l, :, 0:3 * H])                         # (S, 3H)
        q = qkv[:, 0:H] + enc_p[l, 0:1, :]
        k = qkv[:, H:2 * H] + enc_p[l, 1:2, :]
        v = qkv[:, 2 * H:3 * H] + enc_p[l, 2:3, :]
        a = _mm(attn_core(q, k, v), enc_w[l, :, 3 * H:4 * H]) + enc_p[l, 3:4, :]
        mem = _layernorm(mem + a, enc_p[l, 4:5, :], enc_p[l, 5:6, :])
        h = jnp.maximum(_mm(mem, enc_w[l, :, 4 * H:5 * H]) + enc_p[l, 6:7, :],
                        0.0)
        f = _mm(h, enc_w[l, :, 5 * H:6 * H]) + enc_p[l, 7:8, :]
        mem = _layernorm(mem + f, enc_p[l, 8:9, :], enc_p[l, 9:10, :])
    mem = _layernorm(mem, misc[1:2, :], misc[2:3, :])

    # ---- cross-attention K/V for ALL decoder layers: one wide MXU push ------
    kv_all = _mm(mem, dec_kvw[...])                                   # (S, 2HL)

    # ---- decoder (self-attn, cross-attn, FFN), then final decoder norm ------
    out = tgt
    for l in range(L):
        qkv = _mm(out, dec_w[l, :, 0:3 * H])                          # (S, 3H)
        q = qkv[:, 0:H] + dec_p[l, 0:1, :]
        k = qkv[:, H:2 * H] + dec_p[l, 1:2, :]
        v = qkv[:, 2 * H:3 * H] + dec_p[l, 2:3, :]
        a = _mm(attn_core(q, k, v), dec_w[l, :, 3 * H:4 * H]) + dec_p[l, 3:4, :]
        out = _layernorm(out + a, dec_p[l, 4:5, :], dec_p[l, 5:6, :])

        q = _mm(out, dec_w[l, :, 4 * H:5 * H]) + dec_p[l, 6:7, :]
        k = kv_all[:, 2 * H * l: 2 * H * l + H] + dec_p[l, 14:15, :]
        v = kv_all[:, 2 * H * l + H: 2 * H * (l + 1)] + dec_p[l, 15:16, :]
        a = _mm(attn_core(q, k, v), dec_w[l, :, 5 * H:6 * H]) + dec_p[l, 7:8, :]
        out = _layernorm(out + a, dec_p[l, 8:9, :], dec_p[l, 9:10, :])

        h = jnp.maximum(_mm(out, dec_w[l, :, 6 * H:7 * H]) + dec_p[l, 10:11, :],
                        0.0)
        f = _mm(h, dec_w[l, :, 7 * H:8 * H]) + dec_p[l, 11:12, :]
        out = _layernorm(out + f, dec_p[l, 12:13, :], dec_p[l, 13:14, :])
    out = _layernorm(out, misc[3:4, :], misc[4:5, :])

    # ---- output linear (lane-dense, padded to H lanes) -----------------------
    o_ref[...] = _mm(out, fc_w[...]) + misc[5:6, :]


# ----------------------------------------------------------------------------
# wrapper: one pallas_call, everything in VMEM
# ----------------------------------------------------------------------------
def _cost_estimate(S, H, L, pad_in, pad_out, total_bytes):
    def mm(m, k, n):
        return 2 * m * k * n
    attn = mm(S, H, S) + mm(S, S, H) + mm(S, H, H)        # scores + ctx + proj
    enc = mm(S, H, 3 * H) + attn + 2 * mm(S, H, H)
    dec = mm(S, H, 3 * H) + attn + mm(S, H, H) + attn + 2 * mm(S, H, H)
    flops = (mm(S, pad_in, H) + L * (enc + dec) + mm(S, H, 2 * H * L)
             + mm(S, H, pad_out))
    transcendentals = 3 * L * S * S + (7 * L + 3) * S      # exps + rsqrt/rcp
    return pl.CostEstimate(flops=flops, transcendentals=transcendentals,
                           bytes_accessed=total_bytes)


def transformer_forward(x, params, *, hidden, num_layers, output_dim,
                        pad_in=128):
    # x: (S, 1, input_dim)  ->  (S, 1, output_dim)     (batch forced to 1 by
    # the module's torch.cat([zeros(1,1,H), x[:-1]]))
    S = x.shape[0]
    pad_out = hidden
    x2 = x.reshape(S, -1).astype(jnp.float32)
    in_dim = x2.shape[1]
    assert in_dim <= pad_in and output_dim <= pad_out
    x_pad = jnp.pad(x2, ((0, 0), (0, pad_in - in_dim)))    # lane-dense input

    inputs = (x_pad,) + tuple(params)
    total_bytes = sum(int(math.prod(a.shape)) * a.dtype.itemsize for a in inputs)
    total_bytes += S * pad_out * 4

    # v7x guard: the all-weights-VMEM-resident strategy only works while the
    # full parameter set fits comfortably in per-core VMEM (64 MiB on v7x).
    try:
        info = pltpu.get_tpu_info()
        vmem_cap = int(getattr(info, "vmem_capacity_bytes", 64 * 1024 * 1024))
    except Exception:
        vmem_cap = 64 * 1024 * 1024
    if total_bytes > 0.7 * vmem_cap:
        # TODO(synk): per-layer streaming path (grid over layers with per-layer
        # weight BlockSpecs + activations carried in VMEM scratch, or manual
        # double-buffered make_async_copy) for realistic transformer sizes.
        raise NotImplementedError(
            "resident weights exceed the VMEM budget; streaming path needed")

    vmem_limit = int(max(16 * 1024 * 1024, 2 * total_bytes))

    kernel = functools.partial(fused_transformer_kernel,
                               num_layers=num_layers, hidden=hidden)
    y_pad = pl.pallas_call(
        kernel,
        out_shape=jax.ShapeDtypeStruct((S, pad_out), jnp.float32),
        in_specs=[pl.BlockSpec(memory_space=pltpu.MemorySpace.VMEM)] * len(inputs),
        out_specs=pl.BlockSpec(memory_space=pltpu.MemorySpace.VMEM),
        compiler_params=pltpu.CompilerParams(vmem_limit_bytes=vmem_limit),
        cost_estimate=_cost_estimate(S, hidden, num_layers, pad_in, pad_out,
                                     total_bytes),
    )(*inputs)

    return y_pad[:, :output_dim].reshape(S, 1, output_dim)


# ----------------------------------------------------------------------------
# deterministic parameter construction directly in kernel-ready packed layout
# (weights pre-transposed to (K, N), per-layer tensors stacked/concatenated)
# ----------------------------------------------------------------------------
def init_params(key, input_dim, output_dim, hidden, num_layers, pad_in=128):
    H, L = hidden, num_layers
    pad_out = H
    kit = iter(jax.random.split(key, 32))

    def rnd(shape, scale=0.1):
        return jax.random.normal(next(kit), shape, jnp.float32) * scale

    # embedding / output projections, pre-transposed, lane-padded
    emb_w = jnp.zeros((pad_in, H), jnp.float32).at[:input_dim, :].set(
        rnd((input_dim, H))).astype(MXU_DTYPE)
    fc_w = jnp.zeros((H, pad_out), jnp.float32).at[:, :output_dim].set(
        rnd((H, output_dim))).astype(MXU_DTYPE)

    # encoder: per layer [Wqkv | Wo | W1 | W2] concatenated along N
    enc_w = rnd((L, H, 6 * H)).astype(MXU_DTYPE)
    # rows: bq bk bv bo ln1g ln1b b1 b2 ln2g ln2b
    enc_p = rnd((L, 10, H))
    enc_p = enc_p.at[:, 4].set(1.0).at[:, 5].set(0.0)
    enc_p = enc_p.at[:, 8].set(1.0).at[:, 9].set(0.0)

    # decoder: per layer [self Wqkv | self Wo | cross Wq | cross Wo | W1 | W2]
    dec_w = rnd((L, H, 8 * H)).astype(MXU_DTYPE)
    # hoisted cross-attention K/V weights for all layers: (H, 2H*L)
    dec_kvw = rnd((H, 2 * H * L)).astype(MXU_DTYPE)
    # rows: bq bk bv bo1 ln1g ln1b bq2 bo2 ln2g ln2b b1 b2 ln3g ln3b xbk xbv
    dec_p = rnd((L, 16, H))
    for g, b in ((4, 5), (8, 9), (12, 13)):
        dec_p = dec_p.at[:, g].set(1.0).at[:, b].set(0.0)

    # misc rows: emb_b, enc_norm_g, enc_norm_b, dec_norm_g, dec_norm_b, fc_b
    misc = jnp.zeros((6, H), jnp.float32)
    misc = misc.at[0].set(rnd((H,)))
    misc = misc.at[1].set(1.0).at[3].set(1.0)
    misc = misc.at[5, :output_dim].set(rnd((output_dim,)))

    return (emb_w, enc_w, enc_p, dec_w, dec_kvw, dec_p, fc_w, misc)


# ----------------------------------------------------------------------------
if __name__ == "__main__":
    # Small shapes consistent with the module: seq_len=8, batch=1 (forced by
    # the torch.cat), input_dim=1, output_dim=1, hidden_dim=128 (module
    # default, lane-dense), num_layers=2, dim_feedforward=hidden_dim.
    SEQ_LEN, INPUT_DIM, OUTPUT_DIM, HIDDEN, NUM_LAYERS = 8, 1, 1, 128, 2

    key = jax.random.PRNGKey(0)
    pkey, xkey = jax.random.split(key)
    params = init_params(pkey, INPUT_DIM, OUTPUT_DIM, HIDDEN, NUM_LAYERS)

    x = jax.random.normal(xkey, (SEQ_LEN, 1, INPUT_DIM), jnp.float32)

    fwd = jax.jit(functools.partial(
        transformer_forward, hidden=HIDDEN, num_layers=NUM_LAYERS,
        output_dim=OUTPUT_DIM))
    y = jax.block_until_ready(fwd(x, params))

    assert y.shape == (SEQ_LEN, 1, OUTPUT_DIM), y.shape
    assert bool(jnp.all(jnp.isfinite(y)))
    print("KERNEL_OK")
</pallas_src>

<mosaic_0001>
module attributes {stable_mosaic.version = 11 : i64} {
  func.func @fused_transformer_kernel(%arg0: memref<8x128xf32, #tpu.memory_space<vmem>>, %arg1: memref<128x128xbf16, #tpu.memory_space<vmem>>, %arg2: memref<2x128x768xbf16, #tpu.memory_space<vmem>>, %arg3: memref<2x10x128xf32, #tpu.memory_space<vmem>>, %arg4: memref<2x128x1024xbf16, #tpu.memory_space<vmem>>, %arg5: memref<128x512xbf16, #tpu.memory_space<vmem>>, %arg6: memref<2x16x128xf32, #tpu.memory_space<vmem>>, %arg7: memref<128x128xbf16, #tpu.memory_space<vmem>>, %arg8: memref<6x128xf32, #tpu.memory_space<vmem>>, %arg9: memref<8x128xf32, #tpu.memory_space<vmem>>) attributes {dimension_semantics = [], scalar_prefetch = 0 : i64, scratch_operands = 0 : i64, tpu.core_type = #tpu.core_type<tc>} {
    %c0 = arith.constant 0 : index
    %c0_0 = arith.constant 0 : index
    %0 = vector.load %arg0[%c0, %c0_0] : memref<8x128xf32, #tpu.memory_space<vmem>>, vector<8x128xf32>
    %c0_1 = arith.constant 0 : index
    %c0_2 = arith.constant 0 : index
    %1 = vector.load %arg1[%c0_1, %c0_2] : memref<128x128xbf16, #tpu.memory_space<vmem>>, vector<128x128xbf16>
    %2 = arith.truncf %0 : vector<8x128xf32> to vector<8x128xbf16>
    %cst = arith.constant dense<0.000000e+00> : vector<8x128xf32>
    %3 = tpu.matmul %2, %1, %cst {dimension_numbers = #tpu.dot_dimension_numbers<[1], [0], [0], [1], [0, 0, 1, 1], [], []>} : vector<8x128xbf16>, vector<128x128xbf16>, vector<8x128xf32> -> vector<8x128xf32>
    %c0_3 = arith.constant 0 : index
    %c0_4 = arith.constant 0 : index
    %4 = vector.load %arg8[%c0_3, %c0_4] : memref<6x128xf32, #tpu.memory_space<vmem>>, vector<1x128xf32>
    %5 = vector.broadcast %4 : vector<1x128xf32> to vector<8x128xf32>
    %6 = arith.addf %3, %5 : vector<8x128xf32>
    %c1_i32 = arith.constant 1 : i32
    %7 = tpu.dynamic_rotate %6 by %c1_i32 dim 0 : vector<8x128xf32>, i32 -> vector<8x128xf32>
    %8 = tpu.iota {dimensions = array<i32: 0>} : vector<8x128xi32>
    %c0_i32 = arith.constant 0 : i32
    %9 = vector.broadcast %c0_i32 : i32 to vector<8x128xi32>
    %10 = arith.cmpi eq, %8, %9 : vector<8x128xi32>
    %cst_5 = arith.constant 0.000000e+00 : f32
    %11 = vector.broadcast %cst_5 : f32 to vector<8x128xf32>
    %12 = arith.select %10, %11, %7 : vector<8x128xi1>, vector<8x128xf32>
    %c0_6 = arith.constant 0 : index
    %c0_7 = arith.constant 0 : index
    %c0_8 = arith.constant 0 : index
    %13 = vector.load %arg2[%c0_6, %c0_7, %c0_8] : memref<2x128x768xbf16, #tpu.memory_space<vmem>>, vector<1x128x384xbf16>
    %14 = vector.shape_cast %13 : vector<1x128x384xbf16> to vector<128x384xbf16>
    %15 = arith.truncf %6 : vector<8x128xf32> to vector<8x128xbf16>
    %cst_9 = arith.constant dense<0.000000e+00> : vector<8x384xf32>
    %16 = tpu.matmul %15, %14, %cst_9 {dimension_numbers = #tpu.dot_dimension_numbers<[1], [0], [0], [1], [0, 0, 1, 1], [], []>} : vector<8x128xbf16>, vector<128x384xbf16>, vector<8x384xf32> -> vector<8x384xf32>
    %17 = vector.extract_strided_slice %16 {offsets = [0, 0], sizes = [8, 128], strides = [1, 1]} : vector<8x384xf32> to vector<8x128xf32>
    %c0_10 = arith.constant 0 : index
    %c0_11 = arith.constant 0 : index
    %c0_12 = arith.constant 0 : index
    %18 = vector.load %arg3[%c0_10, %c0_11, %c0_12] : memref<2x10x128xf32, #tpu.memory_space<vmem>>, vector<1x1x128xf32>
    %19 = vector.shape_cast %18 : vector<1x1x128xf32> to vector<1x128xf32>
    %20 = vector.broadcast %19 : vector<1x128xf32> to vector<8x128xf32>
    %21 = arith.addf %17, %20 : vector<8x128xf32>
    %22 = vector.extract_strided_slice %16 {offsets = [0, 128], sizes = [8, 128], strides = [1, 1]} : vector<8x384xf32> to vector<8x128xf32>
    %c0_13 = arith.constant 0 : index
    %c1 = arith.constant 1 : index
    %c0_14 = arith.constant 0 : index
    %23 = vector.load %arg3[%c0_13, %c1, %c0_14] : memref<2x10x128xf32, #tpu.memory_space<vmem>>, vector<1x1x128xf32>
    %24 = vector.shape_cast %23 : vector<1x1x128xf32> to vector<1x128xf32>
    %25 = vector.broadcast %24 : vector<1x128xf32> to vector<8x128xf32>
    %26 = arith.addf %22, %25 : vector<8x128xf32>
    %27 = vector.extract_strided_slice %16 {offsets = [0, 256], sizes = [8, 128], strides = [1, 1]} : vector<8x384xf32> to vector<8x128xf32>
    %c0_15 = arith.constant 0 : index
    %c2 = arith.constant 2 : index
    %c0_16 = arith.constant 0 : index
    %28 = vector.load %arg3[%c0_15, %c2, %c0_16] : memref<2x10x128xf32, #tpu.memory_space<vmem>>, vector<1x1x128xf32>
    %29 = vector.shape_cast %28 : vector<1x1x128xf32> to vector<1x128xf32>
    %30 = vector.broadcast %29 : vector<1x128xf32> to vector<8x128xf32>
    %31 = arith.addf %27, %30 : vector<8x128xf32>
    %32 = arith.truncf %21 : vector<8x128xf32> to vector<8x128xbf16>
    %33 = arith.truncf %26 : vector<8x128xf32> to vector<8x128xbf16>
    %cst_17 = arith.constant dense<0.000000e+00> : vector<8x8xf32>
    %34 = tpu.matmul %32, %33, %cst_17 {dimension_numbers = #tpu.dot_dimension_numbers<[1], [1], [0], [0], [0, 0, 1, 0], [], []>} : vector<8x128xbf16>, vector<8x128xbf16>, vector<8x8xf32> -> vector<8x8xf32>
    %cst_18 = arith.constant 0.0883883461 : f32
    %35 = vector.broadcast %cst_18 : f32 to vector<8x8xf32>
    %36 = arith.mulf %34, %35 : vector<8x8xf32>
    %cst_19 = arith.constant dense<0xFF800000> : vector<8xf32>
    %37 = vector.multi_reduction <maximumf>, %36, %cst_19 [1] : vector<8x8xf32> to vector<8xf32>
    %38 = vector.shape_cast %37 : vector<8xf32> to vector<8x1xf32>
    %39 = vector.broadcast %38 : vector<8x1xf32> to vector<8x8xf32>
    %40 = arith.subf %36, %39 : vector<8x8xf32>
    %41 = math.exp %40 : vector<8x8xf32>
    %cst_20 = arith.constant dense<0.000000e+00> : vector<8xf32>
    %42 = vector.multi_reduction <add>, %41, %cst_20 [1] : vector<8x8xf32> to vector<8xf32>
    %43 = vector.shape_cast %42 : vector<8xf32> to vector<8x1xf32>
    %44 = tpu.reciprocal %43 {approx = true} : vector<8x1xf32> -> vector<8x1xf32>
    %45 = vector.broadcast %44 : vector<8x1xf32> to vector<8x8xf32>
    %46 = arith.mulf %41, %45 : vector<8x8xf32>
    %47 = arith.truncf %46 : vector<8x8xf32> to vector<8x8xbf16>
    %48 = arith.truncf %31 : vector<8x128xf32> to vector<8x128xbf16>
    %cst_21 = arith.constant dense<0.000000e+00> : vector<8x128xf32>
    %49 = tpu.matmul %47, %48, %cst_21 {dimension_numbers = #tpu.dot_dimension_numbers<[1], [0], [0], [1], [0, 0, 1, 1], [], []>} : vector<8x8xbf16>, vector<8x128xbf16>, vector<8x128xf32> -> vector<8x128xf32>
    %c0_22 = arith.constant 0 : index
    %c0_23 = arith.constant 0 : index
    %c384 = arith.constant 384 : index
    %50 = vector.load %arg2[%c0_22, %c0_23, %c384] : memref<2x128x768xbf16, #tpu.memory_space<vmem>>, vector<1x128x128xbf16>
    %51 = vector.shape_cast %50 : vector<1x128x128xbf16> to vector<128x128xbf16>
    %52 = arith.truncf %49 : vector<8x128xf32> to vector<8x128xbf16>
    %cst_24 = arith.constant dense<0.000000e+00> : vector<8x128xf32>
    %53 = tpu.matmul %52, %51, %cst_24 {dimension_numbers = #tpu.dot_dimension_numbers<[1], [0], [0], [1], [0, 0, 1, 1], [], []>} : vector<8x128xbf16>, vector<128x128xbf16>, vector<8x128xf32> -> vector<8x128xf32>
    %c0_25 = arith.constant 0 : index
    %c3 = arith.constant 3 : index
    %c0_26 = arith.constant 0 : index
    %54 = vector.load %arg3[%c0_25, %c3, %c0_26] : memref<2x10x128xf32, #tpu.memory_space<vmem>>, vector<1x1x128xf32>
    %55 = vector.shape_cast %54 : vector<1x1x128xf32> to vector<1x128xf32>
    %56 = vector.broadcast %55 : vector<1x128xf32> to vector<8x128xf32>
    %57 = arith.addf %53, %56 : vector<8x128xf32>
    %58 = arith.addf %6, %57 : vector<8x128xf32>
    %c0_27 = arith.constant 0 : index
    %c4 = arith.constant 4 : index
    %c0_28 = arith.constant 0 : index
    %59 = vector.load %arg3[%c0_27, %c4, %c0_28] : memref<2x10x128xf32, #tpu.memory_space<vmem>>, vector<1x1x128xf32>
    %60 = vector.shape_cast %59 : vector<1x1x128xf32> to vector<1x128xf32>
    %c0_29 = arith.constant 0 : index
    %c5 = arith.constant 5 : index
    %c0_30 = arith.constant 0 : index
    %61 = vector.load %arg3[%c0_29, %c5, %c0_30] : memref<2x10x128xf32, #tpu.memory_space<vmem>>, vector<1x1x128xf32>
    %62 = vector.shape_cast %61 : vector<1x1x128xf32> to vector<1x128xf32>
    %cst_31 = arith.constant dense<0.000000e+00> : vector<8xf32>
    %63 = vector.multi_reduction <add>, %58, %cst_31 [1] : vector<8x128xf32> to vector<8xf32>
    %64 = vector.shape_cast %63 : vector<8xf32> to vector<8x1xf32>
    %cst_32 = arith.constant 1.280000e+02 : f32
    %65 = vector.broadcast %cst_32 : f32 to vector<8x1xf32>
    %66 = arith.divf %64, %65 : vector<8x1xf32>
    %67 = vector.broadcast %66 : vector<8x1xf32> to vector<8x128xf32>
    %68 = arith.subf %58, %67 : vector<8x128xf32>
    %69 = arith.mulf %68, %68 : vector<8x128xf32>
    %cst_33 = arith.constant dense<0.000000e+00> : vector<8xf32>
    %70 = vector.multi_reduction <add>, %69, %cst_33 [1] : vector<8x128xf32> to vector<8xf32>
    %71 = vector.shape_cast %70 : vector<8xf32> to vector<8x1xf32>
    %cst_34 = arith.constant 1.280000e+02 : f32
    %72 = vector.broadcast %cst_34 : f32 to vector<8x1xf32>
    %73 = arith.divf %71, %72 : vector<8x1xf32>
    %74 = vector.broadcast %66 : vector<8x1xf32> to vector<8x128xf32>
    %75 = arith.subf %58, %74 : vector<8x128xf32>
    %cst_35 = arith.constant 9.99999974E-6 : f32
    %76 = vector.broadcast %cst_35 : f32 to vector<8x1xf32>
    %77 = arith.addf %73, %76 : vector<8x1xf32>
    %78 = math.rsqrt %77 : vector<8x1xf32>
    %79 = vector.broadcast %78 : vector<8x1xf32> to vector<8x128xf32>
    %80 = arith.mulf %75, %79 : vector<8x128xf32>
    %81 = vector.broadcast %60 : vector<1x128xf32> to vector<8x128xf32>
    %82 = arith.mulf %80, %81 : vector<8x128xf32>
    %83 = vector.broadcast %62 : vector<1x128xf32> to vector<8x128xf32>
    %84 = arith.addf %82, %83 : vector<8x128xf32>
    %c0_36 = arith.constant 0 : index
    %c0_37 = arith.constant 0 : index
    %c512 = arith.constant 512 : index
    %85 = vector.load %arg2[%c0_36, %c0_37, %c512] : memref<2x128x768xbf16, #tpu.memory_space<vmem>>, vector<1x128x128xbf16>
    %86 = vector.shape_cast %85 : vector<1x128x128xbf16> to vector<128x128xbf16>
    %87 = arith.truncf %84 : vector<8x128xf32> to vector<8x128xbf16>
    %cst_38 = arith.constant dense<0.000000e+00> : vector<8x128xf32>
    %88 = tpu.matmul %87, %86, %cst_38 {dimension_numbers = #tpu.dot_dimension_numbers<[1], [0], [0], [1], [0, 0, 1, 1], [], []>} : vector<8x128xbf16>, vector<128x128xbf16>, vector<8x128xf32> -> vector<8x128xf32>
    %c0_39 = arith.constant 0 : index
    %c6 = arith.constant 6 : index
    %c0_40 = arith.constant 0 : index
    %89 = vector.load %arg3[%c0_39, %c6, %c0_40] : memref<2x10x128xf32, #tpu.memory_space<vmem>>, vector<1x1x128xf32>
    %90 = vector.shape_cast %89 : vector<1x1x128xf32> to vector<1x128xf32>
    %91 = vector.broadcast %90 : vector<1x128xf32> to vector<8x128xf32>
    %92 = arith.addf %88, %91 : vector<8x128xf32>
    %cst_41 = arith.constant 0.000000e+00 : f32
    %93 = vector.broadcast %cst_41 : f32 to vector<8x128xf32>
    %94 = arith.maximumf %92, %93 : vector<8x128xf32>
    %c0_42 = arith.constant 0 : index
    %c0_43 = arith.constant 0 : index
    %c640 = arith.constant 640 : index
    %95 = vector.load %arg2[%c0_42, %c0_43, %c640] : memref<2x128x768xbf16, #tpu.memory_space<vmem>>, vector<1x128x128xbf16>
    %96 = vector.shape_cast %95 : vector<1x128x128xbf16> to vector<128x128xbf16>
    %97 = arith.truncf %94 : vector<8x128xf32> to vector<8x128xbf16>
    %cst_44 = arith.constant dense<0.000000e+00> : vector<8x128xf32>
    %98 = tpu.matmul %97, %96, %cst_44 {dimension_numbers = #tpu.dot_dimension_numbers<[1], [0], [0], [1], [0, 0, 1, 1], [], []>} : vector<8x128xbf16>, vector<128x128xbf16>, vector<8x128xf32> -> vector<8x128xf32>
    %c0_45 = arith.constant 0 : index
    %c7 = arith.constant 7 : index
    %c0_46 = arith.constant 0 : index
    %99 = vector.load %arg3[%c0_45, %c7, %c0_46] : memref<2x10x128xf32, #tpu.memory_space<vmem>>, vector<1x1x128xf32>
    %100 = vector.shape_cast %99 : vector<1x1x128xf32> to vector<1x128xf32>
    %101 = vector.broadcast %100 : vector<1x128xf32> to vector<8x128xf32>
    %102 = arith.addf %98, %101 : vector<8x128xf32>
    %103 = arith.addf %84, %102 : vector<8x128xf32>
    %c0_47 = arith.constant 0 : index
    %c8 = arith.constant 8 : index
    %c0_48 = arith.constant 0 : index
    %104 = vector.load %arg3[%c0_47, %c8, %c0_48] : memref<2x10x128xf32, #tpu.memory_space<vmem>>, vector<1x1x128xf32>
    %105 = vector.shape_cast %104 : vector<1x1x128xf32> to vector<1x128xf32>
    %c0_49 = arith.constant 0 : index
    %c9 = arith.constant 9 : index
    %c0_50 = arith.constant 0 : index
    %106 = vector.load %arg3[%c0_49, %c9, %c0_50] : memref<2x10x128xf32, #tpu.memory_space<vmem>>, vector<1x1x128xf32>
    %107 = vector.shape_cast %106 : vector<1x1x128xf32> to vector<1x128xf32>
    %cst_51 = arith.constant dense<0.000000e+00> : vector<8xf32>
    %108 = vector.multi_reduction <add>, %103, %cst_51 [1] : vector<8x128xf32> to vector<8xf32>
    %109 = vector.shape_cast %108 : vector<8xf32> to vector<8x1xf32>
    %cst_52 = arith.constant 1.280000e+02 : f32
    %110 = vector.broadcast %cst_52 : f32 to vector<8x1xf32>
    %111 = arith.divf %109, %110 : vector<8x1xf32>
    %112 = vector.broadcast %111 : vector<8x1xf32> to vector<8x128xf32>
    %113 = arith.subf %103, %112 : vector<8x128xf32>
    %114 = arith.mulf %113, %113 : vector<8x128xf32>
    %cst_53 = arith.constant dense<0.000000e+00> : vector<8xf32>
    %115 = vector.multi_reduction <add>, %114, %cst_53 [1] : vector<8x128xf32> to vector<8xf32>
    %116 = vector.shape_cast %115 : vector<8xf32> to vector<8x1xf32>
    %cst_54 = arith.constant 1.280000e+02 : f32
    %117 = vector.broadcast %cst_54 : f32 to vector<8x1xf32>
    %118 = arith.divf %116, %117 : vector<8x1xf32>
    %119 = vector.broadcast %111 : vector<8x1xf32> to vector<8x128xf32>
    %120 = arith.subf %103, %119 : vector<8x128xf32>
    %cst_55 = arith.constant 9.99999974E-6 : f32
    %121 = vector.broadcast %cst_55 : f32 to vector<8x1xf32>
    %122 = arith.addf %118, %121 : vector<8x1xf32>
    %123 = math.rsqrt %122 : vector<8x1xf32>
    %124 = vector.broadcast %123 : vector<8x1xf32> to vector<8x128xf32>
    %125 = arith.mulf %120, %124 : vector<8x128xf32>
    %126 = vector.broadcast %105 : vector<1x128xf32> to vector<8x128xf32>
    %127 = arith.mulf %125, %126 : vector<8x128xf32>
    %128 = vector.broadcast %107 : vector<1x128xf32> to vector<8x128xf32>
    %129 = arith.addf %127, %128 : vector<8x128xf32>
    %c1_56 = arith.constant 1 : index
    %c0_57 = arith.constant 0 : index
    %c0_58 = arith.constant 0 : index
    %130 = vector.load %arg2[%c1_56, %c0_57, %c0_58] : memref<2x128x768xbf16, #tpu.memory_space<vmem>>, vector<1x128x384xbf16>
    %131 = vector.shape_cast %130 : vector<1x128x384xbf16> to vector<128x384xbf16>
    %132 = arith.truncf %129 : vector<8x128xf32> to vector<8x128xbf16>
    %cst_59 = arith.constant dense<0.000000e+00> : vector<8x384xf32>
    %133 = tpu.matmul %132, %131, %cst_59 {dimension_numbers = #tpu.dot_dimension_numbers<[1], [0], [0], [1], [0, 0, 1, 1], [], []>} : vector<8x128xbf16>, vector<128x384xbf16>, vector<8x384xf32> -> vector<8x384xf32>
    %134 = vector.extract_strided_slice %133 {offsets = [0, 0], sizes = [8, 128], strides = [1, 1]} : vector<8x384xf32> to vector<8x128xf32>
    %c1_60 = arith.constant 1 : index
    %c0_61 = arith.constant 0 : index
    %c0_62 = arith.constant 0 : index
    %135 = vector.load %arg3[%c1_60, %c0_61, %c0_62] : memref<2x10x128xf32, #tpu.memory_space<vmem>>, vector<1x1x128xf32>
    %136 = vector.shape_cast %135 : vector<1x1x128xf32> to vector<1x128xf32>
    %137 = vector.broadcast %136 : vector<1x128xf32> to vector<8x128xf32>
    %138 = arith.addf %134, %137 : vector<8x128xf32>
    %139 = vector.extract_strided_slice %133 {offsets = [0, 128], sizes = [8, 128], strides = [1, 1]} : vector<8x384xf32> to vector<8x128xf32>
    %c1_63 = arith.constant 1 : index
    %c1_64 = arith.constant 1 : index
    %c0_65 = arith.constant 0 : index
    %140 = vector.load %arg3[%c1_63, %c1_64, %c0_65] : memref<2x10x128xf32, #tpu.memory_space<vmem>>, vector<1x1x128xf32>
    %141 = vector.shape_cast %140 : vector<1x1x128xf32> to vector<1x128xf32>
    %142 = vector.broadcast %141 : vector<1x128xf32> to vector<8x128xf32>
    %143 = arith.addf %139, %142 : vector<8x128xf32>
    %144 = vector.extract_strided_slice %133 {offsets = [0, 256], sizes = [8, 128], strides = [1, 1]} : vector<8x384xf32> to vector<8x128xf32>
    %c1_66 = arith.constant 1 : index
    %c2_67 = arith.constant 2 : index
    %c0_68 = arith.constant 0 : index
    %145 = vector.load %arg3[%c1_66, %c2_67, %c0_68] : memref<2x10x128xf32, #tpu.memory_space<vmem>>, vector<1x1x128xf32>
    %146 = vector.shape_cast %145 : vector<1x1x128xf32> to vector<1x128xf32>
    %147 = vector.broadcast %146 : vector<1x128xf32> to vector<8x128xf32>
    %148 = arith.addf %144, %147 : vector<8x128xf32>
    %149 = arith.truncf %138 : vector<8x128xf32> to vector<8x128xbf16>
    %150 = arith.truncf %143 : vector<8x128xf32> to vector<8x128xbf16>
    %cst_69 = arith.constant dense<0.000000e+00> : vector<8x8xf32>
    %151 = tpu.matmul %149, %150, %cst_69 {dimension_numbers = #tpu.dot_dimension_numbers<[1], [1], [0], [0], [0, 0, 1, 0], [], []>} : vector<8x128xbf16>, vector<8x128xbf16>, vector<8x8xf32> -> vector<8x8xf32>
    %cst_70 = arith.constant 0.0883883461 : f32
    %152 = vector.broadcast %cst_70 : f32 to vector<8x8xf32>
    %153 = arith.mulf %151, %152 : vector<8x8xf32>
    %cst_71 = arith.constant dense<0xFF800000> : vector<8xf32>
    %154 = vector.multi_reduction <maximumf>, %153, %cst_71 [1] : vector<8x8xf32> to vector<8xf32>
    %155 = vector.shape_cast %154 : vector<8xf32> to vector<8x1xf32>
    %156 = vector.broadcast %155 : vector<8x1xf32> to vector<8x8xf32>
    %157 = arith.subf %153, %156 : vector<8x8xf32>
    %158 = math.exp %157 : vector<8x8xf32>
    %cst_72 = arith.constant dense<0.000000e+00> : vector<8xf32>
    %159 = vector.multi_reduction <add>, %158, %cst_72 [1] : vector<8x8xf32> to vector<8xf32>
    %160 = vector.shape_cast %159 : vector<8xf32> to vector<8x1xf32>
    %161 = tpu.reciprocal %160 {approx = true} : vector<8x1xf32> -> vector<8x1xf32>
    %162 = vector.broadcast %161 : vector<8x1xf32> to vector<8x8xf32>
    %163 = arith.mulf %158, %162 : vector<8x8xf32>
    %164 = arith.truncf %163 : vector<8x8xf32> to vector<8x8xbf16>
    %165 = arith.truncf %148 : vector<8x128xf32> to vector<8x128xbf16>
    %cst_73 = arith.constant dense<0.000000e+00> : vector<8x128xf32>
    %166 = tpu.matmul %164, %165, %cst_73 {dimension_numbers = #tpu.dot_dimension_numbers<[1], [0], [0], [1], [0, 0, 1, 1], [], []>} : vector<8x8xbf16>, vector<8x128xbf16>, vector<8x128xf32> -> vector<8x128xf32>
    %c1_74 = arith.constant 1 : index
    %c0_75 = arith.constant 0 : index
    %c384_76 = arith.constant 384 : index
    %167 = vector.load %arg2[%c1_74, %c0_75, %c384_76] : memref<2x128x768xbf16, #tpu.memory_space<vmem>>, vector<1x128x128xbf16>
    %168 = vector.shape_cast %167 : vector<1x128x128xbf16> to vector<128x128xbf16>
    %169 = arith.truncf %166 : vector<8x128xf32> to vector<8x128xbf16>
    %cst_77 = arith.constant dense<0.000000e+00> : vector<8x128xf32>
    %170 = tpu.matmul %169, %168, %cst_77 {dimension_numbers = #tpu.dot_dimension_numbers<[1], [0], [0], [1], [0, 0, 1, 1], [], []>} : vector<8x128xbf16>, vector<128x128xbf16>, vector<8x128xf32> -> vector<8x128xf32>
    %c1_78 = arith.constant 1 : index
    %c3_79 = arith.constant 3 : index
    %c0_80 = arith.constant 0 : index
    %171 = vector.load %arg3[%c1_78, %c3_79, %c0_80] : memref<2x10x128xf32, #tpu.memory_space<vmem>>, vector<1x1x128xf32>
    %172 = vector.shape_cast %171 : vector<1x1x128xf32> to vector<1x128xf32>
    %173 = vector.broadcast %172 : vector<1x128xf32> to vector<8x128xf32>
    %174 = arith.addf %170, %173 : vector<8x128xf32>
    %175 = arith.addf %129, %174 : vector<8x128xf32>
    %c1_81 = arith.constant 1 : index
    %c4_82 = arith.constant 4 : index
    %c0_83 = arith.constant 0 : index
    %176 = vector.load %arg3[%c1_81, %c4_82, %c0_83] : memref<2x10x128xf32, #tpu.memory_space<vmem>>, vector<1x1x128xf32>
    %177 = vector.shape_cast %176 : vector<1x1x128xf32> to vector<1x128xf32>
    %c1_84 = arith.constant 1 : index
    %c5_85 = arith.constant 5 : index
    %c0_86 = arith.constant 0 : index
    %178 = vector.load %arg3[%c1_84, %c5_85, %c0_86] : memref<2x10x128xf32, #tpu.memory_space<vmem>>, vector<1x1x128xf32>
    %179 = vector.shape_cast %178 : vector<1x1x128xf32> to vector<1x128xf32>
    %cst_87 = arith.constant dense<0.000000e+00> : vector<8xf32>
    %180 = vector.multi_reduction <add>, %175, %cst_87 [1] : vector<8x128xf32> to vector<8xf32>
    %181 = vector.shape_cast %180 : vector<8xf32> to vector<8x1xf32>
    %cst_88 = arith.constant 1.280000e+02 : f32
    %182 = vector.broadcast %cst_88 : f32 to vector<8x1xf32>
    %183 = arith.divf %181, %182 : vector<8x1xf32>
    %184 = vector.broadcast %183 : vector<8x1xf32> to vector<8x128xf32>
    %185 = arith.subf %175, %184 : vector<8x128xf32>
    %186 = arith.mulf %185, %185 : vector<8x128xf32>
    %cst_89 = arith.constant dense<0.000000e+00> : vector<8xf32>
    %187 = vector.multi_reduction <add>, %186, %cst_89 [1] : vector<8x128xf32> to vector<8xf32>
    %188 = vector.shape_cast %187 : vector<8xf32> to vector<8x1xf32>
    %cst_90 = arith.constant 1.280000e+02 : f32
    %189 = vector.broadcast %cst_90 : f32 to vector<8x1xf32>
    %190 = arith.divf %188, %189 : vector<8x1xf32>
    %191 = vector.broadcast %183 : vector<8x1xf32> to vector<8x128xf32>
    %192 = arith.subf %175, %191 : vector<8x128xf32>
    %cst_91 = arith.constant 9.99999974E-6 : f32
    %193 = vector.broadcast %cst_91 : f32 to vector<8x1xf32>
    %194 = arith.addf %190, %193 : vector<8x1xf32>
    %195 = math.rsqrt %194 : vector<8x1xf32>
    %196 = vector.broadcast %195 : vector<8x1xf32> to vector<8x128xf32>
    %197 = arith.mulf %192, %196 : vector<8x128xf32>
    %198 = vector.broadcast %177 : vector<1x128xf32> to vector<8x128xf32>
    %199 = arith.mulf %197, %198 : vector<8x128xf32>
    %200 = vector.broadcast %179 : vector<1x128xf32> to vector<8x128xf32>
    %201 = arith.addf %199, %200 : vector<8x128xf32>
    %c1_92 = arith.constant 1 : index
    %c0_93 = arith.constant 0 : index
    %c512_94 = arith.constant 512 : index
    %202 = vector.load %arg2[%c1_92, %c0_93, %c512_94] : memref<2x128x768xbf16, #tpu.memory_space<vmem>>, vector<1x128x128xbf16>
    %203 = vector.shape_cast %202 : vector<1x128x128xbf16> to vector<128x128xbf16>
    %204 = arith.truncf %201 : vector<8x128xf32> to vector<8x128xbf16>
    %cst_95 = arith.constant dense<0.000000e+00> : vector<8x128xf32>
    %205 = tpu.matmul %204, %203, %cst_95 {dimension_numbers = #tpu.dot_dimension_numbers<[1], [0], [0], [1], [0, 0, 1, 1], [], []>} : vector<8x128xbf16>, vector<128x128xbf16>, vector<8x128xf32> -> vector<8x128xf32>
    %c1_96 = arith.constant 1 : index
    %c6_97 = arith.constant 6 : index
    %c0_98 = arith.constant 0 : index
    %206 = vector.load %arg3[%c1_96, %c6_97, %c0_98] : memref<2x10x128xf32, #tpu.memory_space<vmem>>, vector<1x1x128xf32>
    %207 = vector.shape_cast %206 : vector<1x1x128xf32> to vector<1x128xf32>
    %208 = vector.broadcast %207 : vector<1x128xf32> to vector<8x128xf32>
    %209 = arith.addf %205, %208 : vector<8x128xf32>
    %cst_99 = arith.constant 0.000000e+00 : f32
    %210 = vector.broadcast %cst_99 : f32 to vector<8x128xf32>
    %211 = arith.maximumf %209, %210 : vector<8x128xf32>
    %c1_100 = arith.constant 1 : index
    %c0_101 = arith.constant 0 : index
    %c640_102 = arith.constant 640 : index
    %212 = vector.load %arg2[%c1_100, %c0_101, %c640_102] : memref<2x128x768xbf16, #tpu.memory_space<vmem>>, vector<1x128x128xbf16>
    %213 = vector.shape_cast %212 : vector<1x128x128xbf16> to vector<128x128xbf16>
    %214 = arith.truncf %211 : vector<8x128xf32> to vector<8x128xbf16>
    %cst_103 = arith.constant dense<0.000000e+00> : vector<8x128xf32>
    %215 = tpu.matmul %214, %213, %cst_103 {dimension_numbers = #tpu.dot_dimension_numbers<[1], [0], [0], [1], [0, 0, 1, 1], [], []>} : vector<8x128xbf16>, vector<128x128xbf16>, vector<8x128xf32> -> vector<8x128xf32>
    %c1_104 = arith.constant 1 : index
    %c7_105 = arith.constant 7 : index
    %c0_106 = arith.constant 0 : index
    %216 = vector.load %arg3[%c1_104, %c7_105, %c0_106] : memref<2x10x128xf32, #tpu.memory_space<vmem>>, vector<1x1x128xf32>
    %217 = vector.shape_cast %216 : vector<1x1x128xf32> to vector<1x128xf32>
    %218 = vector.broadcast %217 : vector<1x128xf32> to vector<8x128xf32>
    %219 = arith.addf %215, %218 : vector<8x128xf32>
    %220 = arith.addf %201, %219 : vector<8x128xf32>
    %c1_107 = arith.constant 1 : index
    %c8_108 = arith.constant 8 : index
    %c0_109 = arith.constant 0 : index
    %221 = vector.load %arg3[%c1_107, %c8_108, %c0_109] : memref<2x10x128xf32, #tpu.memory_space<vmem>>, vector<1x1x128xf32>
    %222 = vector.shape_cast %221 : vector<1x1x128xf32> to vector<1x128xf32>
    %c1_110 = arith.constant 1 : index
    %c9_111 = arith.constant 9 : index
    %c0_112 = arith.constant 0 : index
    %223 = vector.load %arg3[%c1_110, %c9_111, %c0_112] : memref<2x10x128xf32, #tpu.memory_space<vmem>>, vector<1x1x128xf32>
    %224 = vector.shape_cast %223 : vector<1x1x128xf32> to vector<1x128xf32>
    %cst_113 = arith.constant dense<0.000000e+00> : vector<8xf32>
    %225 = vector.multi_reduction <add>, %220, %cst_113 [1] : vector<8x128xf32> to vector<8xf32>
    %226 = vector.shape_cast %225 : vector<8xf32> to vector<8x1xf32>
    %cst_114 = arith.constant 1.280000e+02 : f32
    %227 = vector.broadcast %cst_114 : f32 to vector<8x1xf32>
    %228 = arith.divf %226, %227 : vector<8x1xf32>
    %229 = vector.broadcast %228 : vector<8x1xf32> to vector<8x128xf32>
    %230 = arith.subf %220, %229 : vector<8x128xf32>
    %231 = arith.mulf %230, %230 : vector<8x128xf32>
    %cst_115 = arith.constant dense<0.000000e+00> : vector<8xf32>
    %232 = vector.multi_reduction <add>, %231, %cst_115 [1] : vector<8x128xf32> to vector<8xf32>
    %233 = vector.shape_cast %232 : vector<8xf32> to vector<8x1xf32>
    %cst_116 = arith.constant 1.280000e+02 : f32
    %234 = vector.broadcast %cst_116 : f32 to vector<8x1xf32>
    %235 = arith.divf %233, %234 : vector<8x1xf32>
    %236 = vector.broadcast %228 : vector<8x1xf32> to vector<8x128xf32>
    %237 = arith.subf %220, %236 : vector<8x128xf32>
    %cst_117 = arith.constant 9.99999974E-6 : f32
    %238 = vector.broadcast %cst_117 : f32 to vector<8x1xf32>
    %239 = arith.addf %235, %238 : vector<8x1xf32>
    %240 = math.rsqrt %239 : vector<8x1xf32>
    %241 = vector.broadcast %240 : vector<8x1xf32> to vector<8x128xf32>
    %242 = arith.mulf %237, %241 : vector<8x128xf32>
    %243 = vector.broadcast %222 : vector<1x128xf32> to vector<8x128xf32>
    %244 = arith.mulf %242, %243 : vector<8x128xf32>
    %245 = vector.broadcast %224 : vector<1x128xf32> to vector<8x128xf32>
    %246 = arith.addf %244, %245 : vector<8x128xf32>
    %c1_118 = arith.constant 1 : index
    %c0_119 = arith.constant 0 : index
    %247 = vector.load %arg8[%c1_118, %c0_119] : memref<6x128xf32, #tpu.memory_space<vmem>>, vector<1x128xf32>
    %c2_120 = arith.constant 2 : index
    %c0_121 = arith.constant 0 : index
    %248 = vector.load %arg8[%c2_120, %c0_121] : memref<6x128xf32, #tpu.memory_space<vmem>>, vector<1x128xf32>
    %cst_122 = arith.constant dense<0.000000e+00> : vector<8xf32>
    %249 = vector.multi_reduction <add>, %246, %cst_122 [1] : vector<8x128xf32> to vector<8xf32>
    %250 = vector.shape_cast %249 : vector<8xf32> to vector<8x1xf32>
    %cst_123 = arith.constant 1.280000e+02 : f32
    %251 = vector.broadcast %cst_123 : f32 to vector<8x1xf32>
    %252 = arith.divf %250, %251 : vector<8x1xf32>
    %253 = vector.broadcast %252 : vector<8x1xf32> to vector<8x128xf32>
    %254 = arith.subf %246, %253 : vector<8x128xf32>
    %255 = arith.mulf %254, %254 : vector<8x128xf32>
    %cst_124 = arith.constant dense<0.000000e+00> : vector<8xf32>
    %256 = vector.multi_reduction <add>, %255, %cst_124 [1] : vector<8x128xf32> to vector<8xf32>
    %257 = vector.shape_cast %256 : vector<8xf32> to vector<8x1xf32>
    %cst_125 = arith.constant 1.280000e+02 : f32
    %258 = vector.broadcast %cst_125 : f32 to vector<8x1xf32>
    %259 = arith.divf %257, %258 : vector<8x1xf32>
    %260 = vector.broadcast %252 : vector<8x1xf32> to vector<8x128xf32>
    %261 = arith.subf %246, %260 : vector<8x128xf32>
    %cst_126 = arith.constant 9.99999974E-6 : f32
    %262 = vector.broadcast %cst_126 : f32 to vector<8x1xf32>
    %263 = arith.addf %259, %262 : vector<8x1xf32>
    %264 = math.rsqrt %263 : vector<8x1xf32>
    %265 = vector.broadcast %264 : vector<8x1xf32> to vector<8x128xf32>
    %266 = arith.mulf %261, %265 : vector<8x128xf32>
    %267 = vector.broadcast %247 : vector<1x128xf32> to vector<8x128xf32>
    %268 = arith.mulf %266, %267 : vector<8x128xf32>
    %269 = vector.broadcast %248 : vector<1x128xf32> to vector<8x128xf32>
    %270 = arith.addf %268, %269 : vector<8x128xf32>
    %c0_127 = arith.constant 0 : index
    %c0_128 = arith.constant 0 : index
    %271 = vector.load %arg5[%c0_127, %c0_128] : memref<128x512xbf16, #tpu.memory_space<vmem>>, vector<128x512xbf16>
    %272 = arith.truncf %270 : vector<8x128xf32> to vector<8x128xbf16>
    %cst_129 = arith.constant dense<0.000000e+00> : vector<8x512xf32>
    %273 = tpu.matmul %272, %271, %cst_129 {dimension_numbers = #tpu.dot_dimension_numbers<[1], [0], [0], [1], [0, 0, 1, 1], [], []>} : vector<8x128xbf16>, vector<128x512xbf16>, vector<8x512xf32> -> vector<8x512xf32>
    %c0_130 = arith.constant 0 : index
    %c0_131 = arith.constant 0 : index
    %c0_132 = arith.constant 0 : index
    %274 = vector.load %arg4[%c0_130, %c0_131, %c0_132] : memref<2x128x1024xbf16, #tpu.memory_space<vmem>>, vector<1x128x384xbf16>
    %275 = vector.shape_cast %274 : vector<1x128x384xbf16> to vector<128x384xbf16>
    %276 = arith.truncf %12 : vector<8x128xf32> to vector<8x128xbf16>
    %cst_133 = arith.constant dense<0.000000e+00> : vector<8x384xf32>
    %277 = tpu.matmul %276, %275, %cst_133 {dimension_numbers = #tpu.dot_dimension_numbers<[1], [0], [0], [1], [0, 0, 1, 1], [], []>} : vector<8x128xbf16>, vector<128x384xbf16>, vector<8x384xf32> -> vector<8x384xf32>
    %278 = vector.extract_strided_slice %277 {offsets = [0, 0], sizes = [8, 128], strides = [1, 1]} : vector<8x384xf32> to vector<8x128xf32>
    %c0_134 = arith.constant 0 : index
    %c0_135 = arith.constant 0 : index
    %c0_136 = arith.constant 0 : index
    %279 = vector.load %arg6[%c0_134, %c0_135, %c0_136] : memref<2x16x128xf32, #tpu.memory_space<vmem>>, vector<1x1x128xf32>
    %280 = vector.shape_cast %279 : vector<1x1x128xf32> to vector<1x128xf32>
    %281 = vector.broadcast %280 : vector<1x128xf32> to vector<8x128xf32>
    %282 = arith.addf %278, %281 : vector<8x128xf32>
    %283 = vector.extract_strided_slice %277 {offsets = [0, 128], sizes = [8, 128], strides = [1, 1]} : vector<8x384xf32> to vector<8x128xf32>
    %c0_137 = arith.constant 0 : index
    %c1_138 = arith.constant 1 : index
    %c0_139 = arith.constant 0 : index
    %284 = vector.load %arg6[%c0_137, %c1_138, %c0_139] : memref<2x16x128xf32, #tpu.memory_space<vmem>>, vector<1x1x128xf32>
    %285 = vector.shape_cast %284 : vector<1x1x128xf32> to vector<1x128xf32>
    %286 = vector.broadcast %285 : vector<1x128xf32> to vector<8x128xf32>
    %287 = arith.addf %283, %286 : vector<8x128xf32>
    %288 = vector.extract_strided_slice %277 {offsets = [0, 256], sizes = [8, 128], strides = [1, 1]} : vector<8x384xf32> to vector<8x128xf32>
    %c0_140 = arith.constant 0 : index
    %c2_141 = arith.constant 2 : index
    %c0_142 = arith.constant 0 : index
    %289 = vector.load %arg6[%c0_140, %c2_141, %c0_142] : memref<2x16x128xf32, #tpu.memory_space<vmem>>, vector<1x1x128xf32>
    %290 = vector.shape_cast %289 : vector<1x1x128xf32> to vector<1x128xf32>
    %291 = vector.broadcast %290 : vector<1x128xf32> to vector<8x128xf32>
    %292 = arith.addf %288, %291 : vector<8x128xf32>
    %293 = arith.truncf %282 : vector<8x128xf32> to vector<8x128xbf16>
    %294 = arith.truncf %287 : vector<8x128xf32> to vector<8x128xbf16>
    %cst_143 = arith.constant dense<0.000000e+00> : vector<8x8xf32>
    %295 = tpu.matmul %293, %294, %cst_143 {dimension_numbers = #tpu.dot_dimension_numbers<[1], [1], [0], [0], [0, 0, 1, 0], [], []>} : vector<8x128xbf16>, vector<8x128xbf16>, vector<8x8xf32> -> vector<8x8xf32>
    %cst_144 = arith.constant 0.0883883461 : f32
    %296 = vector.broadcast %cst_144 : f32 to vector<8x8xf32>
    %297 = arith.mulf %295, %296 : vector<8x8xf32>
    %cst_145 = arith.constant dense<0xFF800000> : vector<8xf32>
    %298 = vector.multi_reduction <maximumf>, %297, %cst_145 [1] : vector<8x8xf32> to vector<8xf32>
    %299 = vector.shape_cast %298 : vector<8xf32> to vector<8x1xf32>
    %300 = vector.broadcast %299 : vector<8x1xf32> to vector<8x8xf32>
    %301 = arith.subf %297, %300 : vector<8x8xf32>
    %302 = math.exp %301 : vector<8x8xf32>
    %cst_146 = arith.constant dense<0.000000e+00> : vector<8xf32>
    %303 = vector.multi_reduction <add>, %302, %cst_146 [1] : vector<8x8xf32> to vector<8xf32>
    %304 = vector.shape_cast %303 : vector<8xf32> to vector<8x1xf32>
    %305 = tpu.reciprocal %304 {approx = true} : vector<8x1xf32> -> vector<8x1xf32>
    %306 = vector.broadcast %305 : vector<8x1xf32> to vector<8x8xf32>
    %307 = arith.mulf %302, %306 : vector<8x8xf32>
    %308 = arith.truncf %307 : vector<8x8xf32> to vector<8x8xbf16>
    %309 = arith.truncf %292 : vector<8x128xf32> to vector<8x128xbf16>
    %cst_147 = arith.constant dense<0.000000e+00> : vector<8x128xf32>
    %310 = tpu.matmul %308, %309, %cst_147 {dimension_numbers = #tpu.dot_dimension_numbers<[1], [0], [0], [1], [0, 0, 1, 1], [], []>} : vector<8x8xbf16>, vector<8x128xbf16>, vector<8x128xf32> -> vector<8x128xf32>
    %c0_148 = arith.constant 0 : index
    %c0_149 = arith.constant 0 : index
    %c384_150 = arith.constant 384 : index
    %311 = vector.load %arg4[%c0_148, %c0_149, %c384_150] : memref<2x128x1024xbf16, #tpu.memory_space<vmem>>, vector<1x128x128xbf16>
    %312 = vector.shape_cast %311 : vector<1x128x128xbf16> to vector<128x128xbf16>
    %313 = arith.truncf %310 : vector<8x128xf32> to vector<8x128xbf16>
    %cst_151 = arith.constant dense<0.000000e+00> : vector<8x128xf32>
    %314 = tpu.matmul %313, %312, %cst_151 {dimension_numbers = #tpu.dot_dimension_numbers<[1], [0], [0], [1], [0, 0, 1, 1], [], []>} : vector<8x128xbf16>, vector<128x128xbf16>, vector<8x128xf32> -> vector<8x128xf32>
    %c0_152 = arith.constant 0 : index
    %c3_153 = arith.constant 3 : index
    %c0_154 = arith.constant 0 : index
    %315 = vector.load %arg6[%c0_152, %c3_153, %c0_154] : memref<2x16x128xf32, #tpu.memory_space<vmem>>, vector<1x1x128xf32>
    %316 = vector.shape_cast %315 : vector<1x1x128xf32> to vector<1x128xf32>
    %317 = vector.broadcast %316 : vector<1x128xf32> to vector<8x128xf32>
    %318 = arith.addf %314, %317 : vector<8x128xf32>
    %319 = arith.addf %12, %318 : vector<8x128xf32>
    %c0_155 = arith.constant 0 : index
    %c4_156 = arith.constant 4 : index
    %c0_157 = arith.constant 0 : index
    %320 = vector.load %arg6[%c0_155, %c4_156, %c0_157] : memref<2x16x128xf32, #tpu.memory_space<vmem>>, vector<1x1x128xf32>
    %321 = vector.shape_cast %320 : vector<1x1x128xf32> to vector<1x128xf32>
    %c0_158 = arith.constant 0 : index
    %c5_159 = arith.constant 5 : index
    %c0_160 = arith.constant 0 : index
    %322 = vector.load %arg6[%c0_158, %c5_159, %c0_160] : memref<2x16x128xf32, #tpu.memory_space<vmem>>, vector<1x1x128xf32>
    %323 = vector.shape_cast %322 : vector<1x1x128xf32> to vector<1x128xf32>
    %cst_161 = arith.constant dense<0.000000e+00> : vector<8xf32>
    %324 = vector.multi_reduction <add>, %319, %cst_161 [1] : vector<8x128xf32> to vector<8xf32>
    %325 = vector.shape_cast %324 : vector<8xf32> to vector<8x1xf32>
    %cst_162 = arith.constant 1.280000e+02 : f32
    %326 = vector.broadcast %cst_162 : f32 to vector<8x1xf32>
    %327 = arith.divf %325, %326 : vector<8x1xf32>
    %328 = vector.broadcast %327 : vector<8x1xf32> to vector<8x128xf32>
    %329 = arith.subf %319, %328 : vector<8x128xf32>
    %330 = arith.mulf %329, %329 : vector<8x128xf32>
    %cst_163 = arith.constant dense<0.000000e+00> : vector<8xf32>
    %331 = vector.multi_reduction <add>, %330, %cst_163 [1] : vector<8x128xf32> to vector<8xf32>
    %332 = vector.shape_cast %331 : vector<8xf32> to vector<8x1xf32>
    %cst_164 = arith.constant 1.280000e+02 : f32
    %333 = vector.broadcast %cst_164 : f32 to vector<8x1xf32>
    %334 = arith.divf %332, %333 : vector<8x1xf32>
    %335 = vector.broadcast %327 : vector<8x1xf32> to vector<8x128xf32>
    %336 = arith.subf %319, %335 : vector<8x128xf32>
    %cst_165 = arith.constant 9.99999974E-6 : f32
    %337 = vector.broadcast %cst_165 : f32 to vector<8x1xf32>
    %338 = arith.addf %334, %337 : vector<8x1xf32>
    %339 = math.rsqrt %338 : vector<8x1xf32>
    %340 = vector.broadcast %339 : vector<8x1xf32> to vector<8x128xf32>
    %341 = arith.mulf %336, %340 : vector<8x128xf32>
    %342 = vector.broadcast %321 : vector<1x128xf32> to vector<8x128xf32>
    %343 = arith.mulf %341, %342 : vector<8x128xf32>
    %344 = vector.broadcast %323 : vector<1x128xf32> to vector<8x128xf32>
    %345 = arith.addf %343, %344 : vector<8x128xf32>
    %c0_166 = arith.constant 0 : index
    %c0_167 = arith.constant 0 : index
    %c512_168 = arith.constant 512 : index
    %346 = vector.load %arg4[%c0_166, %c0_167, %c512_168] : memref<2x128x1024xbf16, #tpu.memory_space<vmem>>, vector<1x128x128xbf16>
    %347 = vector.shape_cast %346 : vector<1x128x128xbf16> to vector<128x128xbf16>
    %348 = arith.truncf %345 : vector<8x128xf32> to vector<8x128xbf16>
    %cst_169 = arith.constant dense<0.000000e+00> : vector<8x128xf32>
    %349 = tpu.matmul %348, %347, %cst_169 {dimension_numbers = #tpu.dot_dimension_numbers<[1], [0], [0], [1], [0, 0, 1, 1], [], []>} : vector<8x128xbf16>, vector<128x128xbf16>, vector<8x128xf32> -> vector<8x128xf32>
    %c0_170 = arith.constant 0 : index
    %c6_171 = arith.constant 6 : index
    %c0_172 = arith.constant 0 : index
    %350 = vector.load %arg6[%c0_170, %c6_171, %c0_172] : memref<2x16x128xf32, #tpu.memory_space<vmem>>, vector<1x1x128xf32>
    %351 = vector.shape_cast %350 : vector<1x1x128xf32> to vector<1x128xf32>
    %352 = vector.broadcast %351 : vector<1x128xf32> to vector<8x128xf32>
    %353 = arith.addf %349, %352 : vector<8x128xf32>
    %354 = vector.extract_strided_slice %273 {offsets = [0, 0], sizes = [8, 128], strides = [1, 1]} : vector<8x512xf32> to vector<8x128xf32>
    %c0_173 = arith.constant 0 : index
    %c14 = arith.constant 14 : index
    %c0_174 = arith.constant 0 : index
    %355 = vector.load %arg6[%c0_173, %c14, %c0_174] : memref<2x16x128xf32, #tpu.memory_space<vmem>>, vector<1x1x128xf32>
    %356 = vector.shape_cast %355 : vector<1x1x128xf32> to vector<1x128xf32>
    %357 = vector.broadcast %356 : vector<1x128xf32> to vector<8x128xf32>
    %358 = arith.addf %354, %357 : vector<8x128xf32>
    %359 = vector.extract_strided_slice %273 {offsets = [0, 128], sizes = [8, 128], strides = [1, 1]} : vector<8x512xf32> to vector<8x128xf32>
    %c0_175 = arith.constant 0 : index
    %c15 = arith.constant 15 : index
    %c0_176 = arith.constant 0 : index
    %360 = vector.load %arg6[%c0_175, %c15, %c0_176] : memref<2x16x128xf32, #tpu.memory_space<vmem>>, vector<1x1x128xf32>
    %361 = vector.shape_cast %360 : vector<1x1x128xf32> to vector<1x128xf32>
    %362 = vector.broadcast %361 : vector<1x128xf32> to vector<8x128xf32>
    %363 = arith.addf %359, %362 : vector<8x128xf32>
    %364 = arith.truncf %353 : vector<8x128xf32> to vector<8x128xbf16>
    %365 = arith.truncf %358 : vector<8x128xf32> to vector<8x128xbf16>
    %cst_177 = arith.constant dense<0.000000e+00> : vector<8x8xf32>
    %366 = tpu.matmul %364, %365, %cst_177 {dimension_numbers = #tpu.dot_dimension_numbers<[1], [1], [0], [0], [0, 0, 1, 0], [], []>} : vector<8x128xbf16>, vector<8x128xbf16>, vector<8x8xf32> -> vector<8x8xf32>
    %cst_178 = arith.constant 0.0883883461 : f32
    %367 = vector.broadcast %cst_178 : f32 to vector<8x8xf32>
    %368 = arith.mulf %366, %367 : vector<8x8xf32>
    %cst_179 = arith.constant dense<0xFF800000> : vector<8xf32>
    %369 = vector.multi_reduction <maximumf>, %368, %cst_179 [1] : vector<8x8xf32> to vector<8xf32>
    %370 = vector.shape_cast %369 : vector<8xf32> to vector<8x1xf32>
    %371 = vector.broadcast %370 : vector<8x1xf32> to vector<8x8xf32>
    %372 = arith.subf %368, %371 : vector<8x8xf32>
    %373 = math.exp %372 : vector<8x8xf32>
    %cst_180 = arith.constant dense<0.000000e+00> : vector<8xf32>
    %374 = vector.multi_reduction <add>, %373, %cst_180 [1] : vector<8x8xf32> to vector<8xf32>
    %375 = vector.shape_cast %374 : vector<8xf32> to vector<8x1xf32>
    %376 = tpu.reciprocal %375 {approx = true} : vector<8x1xf32> -> vector<8x1xf32>
    %377 = vector.broadcast %376 : vector<8x1xf32> to vector<8x8xf32>
    %378 = arith.mulf %373, %377 : vector<8x8xf32>
    %379 = arith.truncf %378 : vector<8x8xf32> to vector<8x8xbf16>
    %380 = arith.truncf %363 : vector<8x128xf32> to vector<8x128xbf16>
    %cst_181 = arith.constant dense<0.000000e+00> : vector<8x128xf32>
    %381 = tpu.matmul %379, %380, %cst_181 {dimension_numbers = #tpu.dot_dimension_numbers<[1], [0], [0], [1], [0, 0, 1, 1], [], []>} : vector<8x8xbf16>, vector<8x128xbf16>, vector<8x128xf32> -> vector<8x128xf32>
    %c0_182 = arith.constant 0 : index
    %c0_183 = arith.constant 0 : index
    %c640_184 = arith.constant 640 : index
    %382 = vector.load %arg4[%c0_182, %c0_183, %c640_184] : memref<2x128x1024xbf16, #tpu.memory_space<vmem>>, vector<1x128x128xbf16>
    %383 = vector.shape_cast %382 : vector<1x128x128xbf16> to vector<128x128xbf16>
    %384 = arith.truncf %381 : vector<8x128xf32> to vector<8x128xbf16>
    %cst_185 = arith.constant dense<0.000000e+00> : vector<8x128xf32>
    %385 = tpu.matmul %384, %383, %cst_185 {dimension_numbers = #tpu.dot_dimension_numbers<[1], [0], [0], [1], [0, 0, 1, 1], [], []>} : vector<8x128xbf16>, vector<128x128xbf16>, vector<8x128xf32> -> vector<8x128xf32>
    %c0_186 = arith.constant 0 : index
    %c7_187 = arith.constant 7 : index
    %c0_188 = arith.constant 0 : index
    %386 = vector.load %arg6[%c0_186, %c7_187, %c0_188] : memref<2x16x128xf32, #tpu.memory_space<vmem>>, vector<1x1x128xf32>
    %387 = vector.shape_cast %386 : vector<1x1x128xf32> to vector<1x128xf32>
    %388 = vector.broadcast %387 : vector<1x128xf32> to vector<8x128xf32>
    %389 = arith.addf %385, %388 : vector<8x128xf32>
    %390 = arith.addf %345, %389 : vector<8x128xf32>
    %c0_189 = arith.constant 0 : index
    %c8_190 = arith.constant 8 : index
    %c0_191 = arith.constant 0 : index
    %391 = vector.load %arg6[%c0_189, %c8_190, %c0_191] : memref<2x16x128xf32, #tpu.memory_space<vmem>>, vector<1x1x128xf32>
    %392 = vector.shape_cast %391 : vector<1x1x128xf32> to vector<1x128xf32>
    %c0_192 = arith.constant 0 : index
    %c9_193 = arith.constant 9 : index
    %c0_194 = arith.constant 0 : index
    %393 = vector.load %arg6[%c0_192, %c9_193, %c0_194] : memref<2x16x128xf32, #tpu.memory_space<vmem>>, vector<1x1x128xf32>
    %394 = vector.shape_cast %393 : vector<1x1x128xf32> to vector<1x128xf32>
    %cst_195 = arith.constant dense<0.000000e+00> : vector<8xf32>
    %395 = vector.multi_reduction <add>, %390, %cst_195 [1] : vector<8x128xf32> to vector<8xf32>
    %396 = vector.shape_cast %395 : vector<8xf32> to vector<8x1xf32>
    %cst_196 = arith.constant 1.280000e+02 : f32
    %397 = vector.broadcast %cst_196 : f32 to vector<8x1xf32>
    %398 = arith.divf %396, %397 : vector<8x1xf32>
    %399 = vector.broadcast %398 : vector<8x1xf32> to vector<8x128xf32>
    %400 = arith.subf %390, %399 : vector<8x128xf32>
    %401 = arith.mulf %400, %400 : vector<8x128xf32>
    %cst_197 = arith.constant dense<0.000000e+00> : vector<8xf32>
    %402 = vector.multi_reduction <add>, %401, %cst_197 [1] : vector<8x128xf32> to vector<8xf32>
    %403 = vector.shape_cast %402 : vector<8xf32> to vector<8x1xf32>
    %cst_198 = arith.constant 1.280000e+02 : f32
    %404 = vector.broadcast %cst_198 : f32 to vector<8x1xf32>
    %405 = arith.divf %403, %404 : vector<8x1xf32>
    %406 = vector.broadcast %398 : vector<8x1xf32> to vector<8x128xf32>
    %407 = arith.subf %390, %406 : vector<8x128xf32>
    %cst_199 = arith.constant 9.99999974E-6 : f32
    %408 = vector.broadcast %cst_199 : f32 to vector<8x1xf32>
    %409 = arith.addf %405, %408 : vector<8x1xf32>
    %410 = math.rsqrt %409 : vector<8x1xf32>
    %411 = vector.broadcast %410 : vector<8x1xf32> to vector<8x128xf32>
    %412 = arith.mulf %407, %411 : vector<8x128xf32>
    %413 = vector.broadcast %392 : vector<1x128xf32> to vector<8x128xf32>
    %414 = arith.mulf %412, %413 : vector<8x128xf32>
    %415 = vector.broadcast %394 : vector<1x128xf32> to vector<8x128xf32>
    %416 = arith.addf %414, %415 : vector<8x128xf32>
    %c0_200 = arith.constant 0 : index
    %c0_201 = arith.constant 0 : index
    %c768 = arith.constant 768 : index
    %417 = vector.load %arg4[%c0_200, %c0_201, %c768] : memref<2x128x1024xbf16, #tpu.memory_space<vmem>>, vector<1x128x128xbf16>
    %418 = vector.shape_cast %417 : vector<1x128x128xbf16> to vector<128x128xbf16>
    %419 = arith.truncf %416 : vector<8x128xf32> to vector<8x128xbf16>
    %cst_202 = arith.constant dense<0.000000e+00> : vector<8x128xf32>
    %420 = tpu.matmul %419, %418, %cst_202 {dimension_numbers = #tpu.dot_dimension_numbers<[1], [0], [0], [1], [0, 0, 1, 1], [], []>} : vector<8x128xbf16>, vector<128x128xbf16>, vector<8x128xf32> -> vector<8x128xf32>
    %c0_203 = arith.constant 0 : index
    %c10 = arith.constant 10 : index
    %c0_204 = arith.constant 0 : index
    %421 = vector.load %arg6[%c0_203, %c10, %c0_204] : memref<2x16x128xf32, #tpu.memory_space<vmem>>, vector<1x1x128xf32>
    %422 = vector.shape_cast %421 : vector<1x1x128xf32> to vector<1x128xf32>
    %423 = vector.broadcast %422 : vector<1x128xf32> to vector<8x128xf32>
    %424 = arith.addf %420, %423 : vector<8x128xf32>
    %cst_205 = arith.constant 0.000000e+00 : f32
    %425 = vector.broadcast %cst_205 : f32 to vector<8x128xf32>
    %426 = arith.maximumf %424, %425 : vector<8x128xf32>
    %c0_206 = arith.constant 0 : index
    %c0_207 = arith.constant 0 : index
    %c896 = arith.constant 896 : index
    %427 = vector.load %arg4[%c0_206, %c0_207, %c896] : memref<2x128x1024xbf16, #tpu.memory_space<vmem>>, vector<1x128x128xbf16>
    %428 = vector.shape_cast %427 : vector<1x128x128xbf16> to vector<128x128xbf16>
    %429 = arith.truncf %426 : vector<8x128xf32> to vector<8x128xbf16>
    %cst_208 = arith.constant dense<0.000000e+00> : vector<8x128xf32>
    %430 = tpu.matmul %429, %428, %cst_208 {dimension_numbers = #tpu.dot_dimension_numbers<[1], [0], [0], [1], [0, 0, 1, 1], [], []>} : vector<8x128xbf16>, vector<128x128xbf16>, vector<8x128xf32> -> vector<8x128xf32>
    %c0_209 = arith.constant 0 : index
    %c11 = arith.constant 11 : index
    %c0_210 = arith.constant 0 : index
    %431 = vector.load %arg6[%c0_209, %c11, %c0_210] : memref<2x16x128xf32, #tpu.memory_space<vmem>>, vector<1x1x128xf32>
    %432 = vector.shape_cast %431 : vector<1x1x128xf32> to vector<1x128xf32>
    %433 = vector.broadcast %432 : vector<1x128xf32> to vector<8x128xf32>
    %434 = arith.addf %430, %433 : vector<8x128xf32>
    %435 = arith.addf %416, %434 : vector<8x128xf32>
    %c0_211 = arith.constant 0 : index
    %c12 = arith.constant 12 : index
    %c0_212 = arith.constant 0 : index
    %436 = vector.load %arg6[%c0_211, %c12, %c0_212] : memref<2x16x128xf32, #tpu.memory_space<vmem>>, vector<1x1x128xf32>
    %437 = vector.shape_cast %436 : vector<1x1x128xf32> to vector<1x128xf32>
    %c0_213 = arith.constant 0 : index
    %c13 = arith.constant 13 : index
    %c0_214 = arith.constant 0 : index
    %438 = vector.load %arg6[%c0_213, %c13, %c0_214] : memref<2x16x128xf32, #tpu.memory_space<vmem>>, vector<1x1x128xf32>
    %439 = vector.shape_cast %438 : vector<1x1x128xf32> to vector<1x128xf32>
    %cst_215 = arith.constant dense<0.000000e+00> : vector<8xf32>
    %440 = vector.multi_reduction <add>, %435, %cst_215 [1] : vector<8x128xf32> to vector<8xf32>
    %441 = vector.shape_cast %440 : vector<8xf32> to vector<8x1xf32>
    %cst_216 = arith.constant 1.280000e+02 : f32
    %442 = vector.broadcast %cst_216 : f32 to vector<8x1xf32>
    %443 = arith.divf %441, %442 : vector<8x1xf32>
    %444 = vector.broadcast %443 : vector<8x1xf32> to vector<8x128xf32>
    %445 = arith.subf %435, %444 : vector<8x128xf32>
    %446 = arith.mulf %445, %445 : vector<8x128xf32>
    %cst_217 = arith.constant dense<0.000000e+00> : vector<8xf32>
    %447 = vector.multi_reduction <add>, %446, %cst_217 [1] : vector<8x128xf32> to vector<8xf32>
    %448 = vector.shape_cast %447 : vector<8xf32> to vector<8x1xf32>
    %cst_218 = arith.constant 1.280000e+02 : f32
    %449 = vector.broadcast %cst_218 : f32 to vector<8x1xf32>
    %450 = arith.divf %448, %449 : vector<8x1xf32>
    %451 = vector.broadcast %443 : vector<8x1xf32> to vector<8x128xf32>
    %452 = arith.subf %435, %451 : vector<8x128xf32>
    %cst_219 = arith.constant 9.99999974E-6 : f32
    %453 = vector.broadcast %cst_219 : f32 to vector<8x1xf32>
    %454 = arith.addf %450, %453 : vector<8x1xf32>
    %455 = math.rsqrt %454 : vector<8x1xf32>
    %456 = vector.broadcast %455 : vector<8x1xf32> to vector<8x128xf32>
    %457 = arith.mulf %452, %456 : vector<8x128xf32>
    %458 = vector.broadcast %437 : vector<1x128xf32> to vector<8x128xf32>
    %459 = arith.mulf %457, %458 : vector<8x128xf32>
    %460 = vector.broadcast %439 : vector<1x128xf32> to vector<8x128xf32>
    %461 = arith.addf %459, %460 : vector<8x128xf32>
    %c1_220 = arith.constant 1 : index
    %c0_221 = arith.constant 0 : index
    %c0_222 = arith.constant 0 : index
    %462 = vector.load %arg4[%c1_220, %c0_221, %c0_222] : memref<2x128x1024xbf16, #tpu.memory_space<vmem>>, vector<1x128x384xbf16>
    %463 = vector.shape_cast %462 : vector<1x128x384xbf16> to vector<128x384xbf16>
    %464 = arith.truncf %461 : vector<8x128xf32> to vector<8x128xbf16>
    %cst_223 = arith.constant dense<0.000000e+00> : vector<8x384xf32>
    %465 = tpu.matmul %464, %463, %cst_223 {dimension_numbers = #tpu.dot_dimension_numbers<[1], [0], [0], [1], [0, 0, 1, 1], [], []>} : vector<8x128xbf16>, vector<128x384xbf16>, vector<8x384xf32> -> vector<8x384xf32>
    %466 = vector.extract_strided_slice %465 {offsets = [0, 0], sizes = [8, 128], strides = [1, 1]} : vector<8x384xf32> to vector<8x128xf32>
    %c1_224 = arith.constant 1 : index
    %c0_225 = arith.constant 0 : index
    %c0_226 = arith.constant 0 : index
    %467 = vector.load %arg6[%c1_224, %c0_225, %c0_226] : memref<2x16x128xf32, #tpu.memory_space<vmem>>, vector<1x1x128xf32>
    %468 = vector.shape_cast %467 : vector<1x1x128xf32> to vector<1x128xf32>
    %469 = vector.broadcast %468 : vector<1x128xf32> to vector<8x128xf32>
    %470 = arith.addf %466, %469 : vector<8x128xf32>
    %471 = vector.extract_strided_slice %465 {offsets = [0, 128], sizes = [8, 128], strides = [1, 1]} : vector<8x384xf32> to vector<8x128xf32>
    %c1_227 = arith.constant 1 : index
    %c1_228 = arith.constant 1 : index
    %c0_229 = arith.constant 0 : index
    %472 = vector.load %arg6[%c1_227, %c1_228, %c0_229] : memref<2x16x128xf32, #tpu.memory_space<vmem>>, vector<1x1x128xf32>
    %473 = vector.shape_cast %472 : vector<1x1x128xf32> to vector<1x128xf32>
    %474 = vector.broadcast %473 : vector<1x128xf32> to vector<8x128xf32>
    %475 = arith.addf %471, %474 : vector<8x128xf32>
    %476 = vector.extract_strided_slice %465 {offsets = [0, 256], sizes = [8, 128], strides = [1, 1]} : vector<8x384xf32> to vector<8x128xf32>
    %c1_230 = arith.constant 1 : index
    %c2_231 = arith.constant 2 : index
    %c0_232 = arith.constant 0 : index
    %477 = vector.load %arg6[%c1_230, %c2_231, %c0_232] : memref<2x16x128xf32, #tpu.memory_space<vmem>>, vector<1x1x128xf32>
    %478 = vector.shape_cast %477 : vector<1x1x128xf32> to vector<1x128xf32>
    %479 = vector.broadcast %478 : vector<1x128xf32> to vector<8x128xf32>
    %480 = arith.addf %476, %479 : vector<8x128xf32>
    %481 = arith.truncf %470 : vector<8x128xf32> to vector<8x128xbf16>
    %482 = arith.truncf %475 : vector<8x128xf32> to vector<8x128xbf16>
    %cst_233 = arith.constant dense<0.000000e+00> : vector<8x8xf32>
    %483 = tpu.matmul %481, %482, %cst_233 {dimension_numbers = #tpu.dot_dimension_numbers<[1], [1], [0], [0], [0, 0, 1, 0], [], []>} : vector<8x128xbf16>, vector<8x128xbf16>, vector<8x8xf32> -> vector<8x8xf32>
    %cst_234 = arith.constant 0.0883883461 : f32
    %484 = vector.broadcast %cst_234 : f32 to vector<8x8xf32>
    %485 = arith.mulf %483, %484 : vector<8x8xf32>
    %cst_235 = arith.constant dense<0xFF800000> : vector<8xf32>
    %486 = vector.multi_reduction <maximumf>, %485, %cst_235 [1] : vector<8x8xf32> to vector<8xf32>
    %487 = vector.shape_cast %486 : vector<8xf32> to vector<8x1xf32>
    %488 = vector.broadcast %487 : vector<8x1xf32> to vector<8x8xf32>
    %489 = arith.subf %485, %488 : vector<8x8xf32>
    %490 = math.exp %489 : vector<8x8xf32>
    %cst_236 = arith.constant dense<0.000000e+00> : vector<8xf32>
    %491 = vector.multi_reduction <add>, %490, %cst_236 [1] : vector<8x8xf32> to vector<8xf32>
    %492 = vector.shape_cast %491 : vector<8xf32> to vector<8x1xf32>
    %493 = tpu.reciprocal %492 {approx = true} : vector<8x1xf32> -> vector<8x1xf32>
    %494 = vector.broadcast %493 : vector<8x1xf32> to vector<8x8xf32>
    %495 = arith.mulf %490, %494 : vector<8x8xf32>
    %496 = arith.truncf %495 : vector<8x8xf32> to vector<8x8xbf16>
    %497 = arith.truncf %480 : vector<8x128xf32> to vector<8x128xbf16>
    %cst_237 = arith.constant dense<0.000000e+00> : vector<8x128xf32>
    %498 = tpu.matmul %496, %497, %cst_237 {dimension_numbers = #tpu.dot_dimension_numbers<[1], [0], [0], [1], [0, 0, 1, 1], [], []>} : vector<8x8xbf16>, vector<8x128xbf16>, vector<8x128xf32> -> vector<8x128xf32>
    %c1_238 = arith.constant 1 : index
    %c0_239 = arith.constant 0 : index
    %c384_240 = arith.constant 384 : index
    %499 = vector.load %arg4[%c1_238, %c0_239, %c384_240] : memref<2x128x1024xbf16, #tpu.memory_space<vmem>>, vector<1x128x128xbf16>
    %500 = vector.shape_cast %499 : vector<1x128x128xbf16> to vector<128x128xbf16>
    %501 = arith.truncf %498 : vector<8x128xf32> to vector<8x128xbf16>
    %cst_241 = arith.constant dense<0.000000e+00> : vector<8x128xf32>
    %502 = tpu.matmul %501, %500, %cst_241 {dimension_numbers = #tpu.dot_dimension_numbers<[1], [0], [0], [1], [0, 0, 1, 1], [], []>} : vector<8x128xbf16>, vector<128x128xbf16>, vector<8x128xf32> -> vector<8x128xf32>
    %c1_242 = arith.constant 1 : index
    %c3_243 = arith.constant 3 : index
    %c0_244 = arith.constant 0 : index
    %503 = vector.load %arg6[%c1_242, %c3_243, %c0_244] : memref<2x16x128xf32, #tpu.memory_space<vmem>>, vector<1x1x128xf32>
    %504 = vector.shape_cast %503 : vector<1x1x128xf32> to vector<1x128xf32>
    %505 = vector.broadcast %504 : vector<1x128xf32> to vector<8x128xf32>
    %506 = arith.addf %502, %505 : vector<8x128xf32>
    %507 = arith.addf %461, %506 : vector<8x128xf32>
    %c1_245 = arith.constant 1 : index
    %c4_246 = arith.constant 4 : index
    %c0_247 = arith.constant 0 : index
    %508 = vector.load %arg6[%c1_245, %c4_246, %c0_247] : memref<2x16x128xf32, #tpu.memory_space<vmem>>, vector<1x1x128xf32>
    %509 = vector.shape_cast %508 : vector<1x1x128xf32> to vector<1x128xf32>
    %c1_248 = arith.constant 1 : index
    %c5_249 = arith.constant 5 : index
    %c0_250 = arith.constant 0 : index
    %510 = vector.load %arg6[%c1_248, %c5_249, %c0_250] : memref<2x16x128xf32, #tpu.memory_space<vmem>>, vector<1x1x128xf32>
    %511 = vector.shape_cast %510 : vector<1x1x128xf32> to vector<1x128xf32>
    %cst_251 = arith.constant dense<0.000000e+00> : vector<8xf32>
    %512 = vector.multi_reduction <add>, %507, %cst_251 [1] : vector<8x128xf32> to vector<8xf32>
    %513 = vector.shape_cast %512 : vector<8xf32> to vector<8x1xf32>
    %cst_252 = arith.constant 1.280000e+02 : f32
    %514 = vector.broadcast %cst_252 : f32 to vector<8x1xf32>
    %515 = arith.divf %513, %514 : vector<8x1xf32>
    %516 = vector.broadcast %515 : vector<8x1xf32> to vector<8x128xf32>
    %517 = arith.subf %507, %516 : vector<8x128xf32>
    %518 = arith.mulf %517, %517 : vector<8x128xf32>
    %cst_253 = arith.constant dense<0.000000e+00> : vector<8xf32>
    %519 = vector.multi_reduction <add>, %518, %cst_253 [1] : vector<8x128xf32> to vector<8xf32>
    %520 = vector.shape_cast %519 : vector<8xf32> to vector<8x1xf32>
    %cst_254 = arith.constant 1.280000e+02 : f32
    %521 = vector.broadcast %cst_254 : f32 to vector<8x1xf32>
    %522 = arith.divf %520, %521 : vector<8x1xf32>
    %523 = vector.broadcast %515 : vector<8x1xf32> to vector<8x128xf32>
    %524 = arith.subf %507, %523 : vector<8x128xf32>
    %cst_255 = arith.constant 9.99999974E-6 : f32
    %525 = vector.broadcast %cst_255 : f32 to vector<8x1xf32>
    %526 = arith.addf %522, %525 : vector<8x1xf32>
    %527 = math.rsqrt %526 : vector<8x1xf32>
    %528 = vector.broadcast %527 : vector<8x1xf32> to vector<8x128xf32>
    %529 = arith.mulf %524, %528 : vector<8x128xf32>
    %530 = vector.broadcast %509 : vector<1x128xf32> to vector<8x128xf32>
    %531 = arith.mulf %529, %530 : vector<8x128xf32>
    %532 = vector.broadcast %511 : vector<1x128xf32> to vector<8x128xf32>
    %533 = arith.addf %531, %532 : vector<8x128xf32>
    %c1_256 = arith.constant 1 : index
    %c0_257 = arith.constant 0 : index
    %c512_258 = arith.constant 512 : index
    %534 = vector.load %arg4[%c1_256, %c0_257, %c512_258] : memref<2x128x1024xbf16, #tpu.memory_space<vmem>>, vector<1x128x128xbf16>
    %535 = vector.shape_cast %534 : vector<1x128x128xbf16> to vector<128x128xbf16>
    %536 = arith.truncf %533 : vector<8x128xf32> to vector<8x128xbf16>
    %cst_259 = arith.constant dense<0.000000e+00> : vector<8x128xf32>
    %537 = tpu.matmul %536, %535, %cst_259 {dimension_numbers = #tpu.dot_dimension_numbers<[1], [0], [0], [1], [0, 0, 1, 1], [], []>} : vector<8x128xbf16>, vector<128x128xbf16>, vector<8x128xf32> -> vector<8x128xf32>
    %c1_260 = arith.constant 1 : index
    %c6_261 = arith.constant 6 : index
    %c0_262 = arith.constant 0 : index
    %538 = vector.load %arg6[%c1_260, %c6_261, %c0_262] : memref<2x16x128xf32, #tpu.memory_space<vmem>>, vector<1x1x128xf32>
    %539 = vector.shape_cast %538 : vector<1x1x128xf32> to vector<1x128xf32>
    %540 = vector.broadcast %539 : vector<1x128xf32> to vector<8x128xf32>
    %541 = arith.addf %537, %540 : vector<8x128xf32>
    %542 = vector.extract_strided_slice %273 {offsets = [0, 256], sizes = [8, 128], strides = [1, 1]} : vector<8x512xf32> to vector<8x128xf32>
    %c1_263 = arith.constant 1 : index
    %c14_264 = arith.constant 14 : index
    %c0_265 = arith.constant 0 : index
    %543 = vector.load %arg6[%c1_263, %c14_264, %c0_265] : memref<2x16x128xf32, #tpu.memory_space<vmem>>, vector<1x1x128xf32>
    %544 = vector.shape_cast %543 : vector<1x1x128xf32> to vector<1x128xf32>
    %545 = vector.broadcast %544 : vector<1x128xf32> to vector<8x128xf32>
    %546 = arith.addf %542, %545 : vector<8x128xf32>
    %547 = vector.extract_strided_slice %273 {offsets = [0, 384], sizes = [8, 128], strides = [1, 1]} : vector<8x512xf32> to vector<8x128xf32>
    %c1_266 = arith.constant 1 : index
    %c15_267 = arith.constant 15 : index
    %c0_268 = arith.constant 0 : index
    %548 = vector.load %arg6[%c1_266, %c15_267, %c0_268] : memref<2x16x128xf32, #tpu.memory_space<vmem>>, vector<1x1x128xf32>
    %549 = vector.shape_cast %548 : vector<1x1x128xf32> to vector<1x128xf32>
    %550 = vector.broadcast %549 : vector<1x128xf32> to vector<8x128xf32>
    %551 = arith.addf %547, %550 : vector<8x128xf32>
    %552 = arith.truncf %541 : vector<8x128xf32> to vector<8x128xbf16>
    %553 = arith.truncf %546 : vector<8x128xf32> to vector<8x128xbf16>
    %cst_269 = arith.constant dense<0.000000e+00> : vector<8x8xf32>
    %554 = tpu.matmul %552, %553, %cst_269 {dimension_numbers = #tpu.dot_dimension_numbers<[1], [1], [0], [0], [0, 0, 1, 0], [], []>} : vector<8x128xbf16>, vector<8x128xbf16>, vector<8x8xf32> -> vector<8x8xf32>
    %cst_270 = arith.constant 0.0883883461 : f32
    %555 = vector.broadcast %cst_270 : f32 to vector<8x8xf32>
    %556 = arith.mulf %554, %555 : vector<8x8xf32>
    %cst_271 = arith.constant dense<0xFF800000> : vector<8xf32>
    %557 = vector.multi_reduction <maximumf>, %556, %cst_271 [1] : vector<8x8xf32> to vector<8xf32>
    %558 = vector.shape_cast %557 : vector<8xf32> to vector<8x1xf32>
    %559 = vector.broadcast %558 : vector<8x1xf32> to vector<8x8xf32>
    %560 = arith.subf %556, %559 : vector<8x8xf32>
    %561 = math.exp %560 : vector<8x8xf32>
    %cst_272 = arith.constant dense<0.000000e+00> : vector<8xf32>
    %562 = vector.multi_reduction <add>, %561, %cst_272 [1] : vector<8x8xf32> to vector<8xf32>
    %563 = vector.shape_cast %562 : vector<8xf32> to vector<8x1xf32>
    %564 = tpu.reciprocal %563 {approx = true} : vector<8x1xf32> -> vector<8x1xf32>
    %565 = vector.broadcast %564 : vector<8x1xf32> to vector<8x8xf32>
    %566 = arith.mulf %561, %565 : vector<8x8xf32>
    %567 = arith.truncf %566 : vector<8x8xf32> to vector<8x8xbf16>
    %568 = arith.truncf %551 : vector<8x128xf32> to vector<8x128xbf16>
    %cst_273 = arith.constant dense<0.000000e+00> : vector<8x128xf32>
    %569 = tpu.matmul %567, %568, %cst_273 {dimension_numbers = #tpu.dot_dimension_numbers<[1], [0], [0], [1], [0, 0, 1, 1], [], []>} : vector<8x8xbf16>, vector<8x128xbf16>, vector<8x128xf32> -> vector<8x128xf32>
    %c1_274 = arith.constant 1 : index
    %c0_275 = arith.constant 0 : index
    %c640_276 = arith.constant 640 : index
    %570 = vector.load %arg4[%c1_274, %c0_275, %c640_276] : memref<2x128x1024xbf16, #tpu.memory_space<vmem>>, vector<1x128x128xbf16>
    %571 = vector.shape_cast %570 : vector<1x128x128xbf16> to vector<128x128xbf16>
    %572 = arith.truncf %569 : vector<8x128xf32> to vector<8x128xbf16>
    %cst_277 = arith.constant dense<0.000000e+00> : vector<8x128xf32>
    %573 = tpu.matmul %572, %571, %cst_277 {dimension_numbers = #tpu.dot_dimension_numbers<[1], [0], [0], [1], [0, 0, 1, 1], [], []>} : vector<8x128xbf16>, vector<128x128xbf16>, vector<8x128xf32> -> vector<8x128xf32>
    %c1_278 = arith.constant 1 : index
    %c7_279 = arith.constant 7 : index
    %c0_280 = arith.constant 0 : index
    %574 = vector.load %arg6[%c1_278, %c7_279, %c0_280] : memref<2x16x128xf32, #tpu.memory_space<vmem>>, vector<1x1x128xf32>
    %575 = vector.shape_cast %574 : vector<1x1x128xf32> to vector<1x128xf32>
    %576 = vector.broadcast %575 : vector<1x128xf32> to vector<8x128xf32>
    %577 = arith.addf %573, %576 : vector<8x128xf32>
    %578 = arith.addf %533, %577 : vector<8x128xf32>
    %c1_281 = arith.constant 1 : index
    %c8_282 = arith.constant 8 : index
    %c0_283 = arith.constant 0 : index
    %579 = vector.load %arg6[%c1_281, %c8_282, %c0_283] : memref<2x16x128xf32, #tpu.memory_space<vmem>>, vector<1x1x128xf32>
    %580 = vector.shape_cast %579 : vector<1x1x128xf32> to vector<1x128xf32>
    %c1_284 = arith.constant 1 : index
    %c9_285 = arith.constant 9 : index
    %c0_286 = arith.constant 0 : index
    %581 = vector.load %arg6[%c1_284, %c9_285, %c0_286] : memref<2x16x128xf32, #tpu.memory_space<vmem>>, vector<1x1x128xf32>
    %582 = vector.shape_cast %581 : vector<1x1x128xf32> to vector<1x128xf32>
    %cst_287 = arith.constant dense<0.000000e+00> : vector<8xf32>
    %583 = vector.multi_reduction <add>, %578, %cst_287 [1] : vector<8x128xf32> to vector<8xf32>
    %584 = vector.shape_cast %583 : vector<8xf32> to vector<8x1xf32>
    %cst_288 = arith.constant 1.280000e+02 : f32
    %585 = vector.broadcast %cst_288 : f32 to vector<8x1xf32>
    %586 = arith.divf %584, %585 : vector<8x1xf32>
    %587 = vector.broadcast %586 : vector<8x1xf32> to vector<8x128xf32>
    %588 = arith.subf %578, %587 : vector<8x128xf32>
    %589 = arith.mulf %588, %588 : vector<8x128xf32>
    %cst_289 = arith.constant dense<0.000000e+00> : vector<8xf32>
    %590 = vector.multi_reduction <add>, %589, %cst_289 [1] : vector<8x128xf32> to vector<8xf32>
    %591 = vector.shape_cast %590 : vector<8xf32> to vector<8x1xf32>
    %cst_290 = arith.constant 1.280000e+02 : f32
    %592 = vector.broadcast %cst_290 : f32 to vector<8x1xf32>
    %593 = arith.divf %591, %592 : vector<8x1xf32>
    %594 = vector.broadcast %586 : vector<8x1xf32> to vector<8x128xf32>
    %595 = arith.subf %578, %594 : vector<8x128xf32>
    %cst_291 = arith.constant 9.99999974E-6 : f32
    %596 = vector.broadcast %cst_291 : f32 to vector<8x1xf32>
    %597 = arith.addf %593, %596 : vector<8x1xf32>
    %598 = math.rsqrt %597 : vector<8x1xf32>
    %599 = vector.broadcast %598 : vector<8x1xf32> to vector<8x128xf32>
    %600 = arith.mulf %595, %599 : vector<8x128xf32>
    %601 = vector.broadcast %580 : vector<1x128xf32> to vector<8x128xf32>
    %602 = arith.mulf %600, %601 : vector<8x128xf32>
    %603 = vector.broadcast %582 : vector<1x128xf32> to vector<8x128xf32>
    %604 = arith.addf %602, %603 : vector<8x128xf32>
    %c1_292 = arith.constant 1 : index
    %c0_293 = arith.constant 0 : index
    %c768_294 = arith.constant 768 : index
    %605 = vector.load %arg4[%c1_292, %c0_293, %c768_294] : memref<2x128x1024xbf16, #tpu.memory_space<vmem>>, vector<1x128x128xbf16>
    %606 = vector.shape_cast %605 : vector<1x128x128xbf16> to vector<128x128xbf16>
    %607 = arith.truncf %604 : vector<8x128xf32> to vector<8x128xbf16>
    %cst_295 = arith.constant dense<0.000000e+00> : vector<8x128xf32>
    %608 = tpu.matmul %607, %606, %cst_295 {dimension_numbers = #tpu.dot_dimension_numbers<[1], [0], [0], [1], [0, 0, 1, 1], [], []>} : vector<8x128xbf16>, vector<128x128xbf16>, vector<8x128xf32> -> vector<8x128xf32>
    %c1_296 = arith.constant 1 : index
    %c10_297 = arith.constant 10 : index
    %c0_298 = arith.constant 0 : index
    %609 = vector.load %arg6[%c1_296, %c10_297, %c0_298] : memref<2x16x128xf32, #tpu.memory_space<vmem>>, vector<1x1x128xf32>
    %610 = vector.shape_cast %609 : vector<1x1x128xf32> to vector<1x128xf32>
    %611 = vector.broadcast %610 : vector<1x128xf32> to vector<8x128xf32>
    %612 = arith.addf %608, %611 : vector<8x128xf32>
    %cst_299 = arith.constant 0.000000e+00 : f32
    %613 = vector.broadcast %cst_299 : f32 to vector<8x128xf32>
    %614 = arith.maximumf %612, %613 : vector<8x128xf32>
    %c1_300 = arith.constant 1 : index
    %c0_301 = arith.constant 0 : index
    %c896_302 = arith.constant 896 : index
    %615 = vector.load %arg4[%c1_300, %c0_301, %c896_302] : memref<2x128x1024xbf16, #tpu.memory_space<vmem>>, vector<1x128x128xbf16>
    %616 = vector.shape_cast %615 : vector<1x128x128xbf16> to vector<128x128xbf16>
    %617 = arith.truncf %614 : vector<8x128xf32> to vector<8x128xbf16>
    %cst_303 = arith.constant dense<0.000000e+00> : vector<8x128xf32>
    %618 = tpu.matmul %617, %616, %cst_303 {dimension_numbers = #tpu.dot_dimension_numbers<[1], [0], [0], [1], [0, 0, 1, 1], [], []>} : vector<8x128xbf16>, vector<128x128xbf16>, vector<8x128xf32> -> vector<8x128xf32>
    %c1_304 = arith.constant 1 : index
    %c11_305 = arith.constant 11 : index
    %c0_306 = arith.constant 0 : index
    %619 = vector.load %arg6[%c1_304, %c11_305, %c0_306] : memref<2x16x128xf32, #tpu.memory_space<vmem>>, vector<1x1x128xf32>
    %620 = vector.shape_cast %619 : vector<1x1x128xf32> to vector<1x128xf32>
    %621 = vector.broadcast %620 : vector<1x128xf32> to vector<8x128xf32>
    %622 = arith.addf %618, %621 : vector<8x128xf32>
    %623 = arith.addf %604, %622 : vector<8x128xf32>
    %c1_307 = arith.constant 1 : index
    %c12_308 = arith.constant 12 : index
    %c0_309 = arith.constant 0 : index
    %624 = vector.load %arg6[%c1_307, %c12_308, %c0_309] : memref<2x16x128xf32, #tpu.memory_space<vmem>>, vector<1x1x128xf32>
    %625 = vector.shape_cast %624 : vector<1x1x128xf32> to vector<1x128xf32>
    %c1_310 = arith.constant 1 : index
    %c13_311 = arith.constant 13 : index
    %c0_312 = arith.constant 0 : index
    %626 = vector.load %arg6[%c1_310, %c13_311, %c0_312] : memref<2x16x128xf32, #tpu.memory_space<vmem>>, vector<1x1x128xf32>
    %627 = vector.shape_cast %626 : vector<1x1x128xf32> to vector<1x128xf32>
    %cst_313 = arith.constant dense<0.000000e+00> : vector<8xf32>
    %628 = vector.multi_reduction <add>, %623, %cst_313 [1] : vector<8x128xf32> to vector<8xf32>
    %629 = vector.shape_cast %628 : vector<8xf32> to vector<8x1xf32>
    %cst_314 = arith.constant 1.280000e+02 : f32
    %630 = vector.broadcast %cst_314 : f32 to vector<8x1xf32>
    %631 = arith.divf %629, %630 : vector<8x1xf32>
    %632 = vector.broadcast %631 : vector<8x1xf32> to vector<8x128xf32>
    %633 = arith.subf %623, %632 : vector<8x128xf32>
    %634 = arith.mulf %633, %633 : vector<8x128xf32>
    %cst_315 = arith.constant dense<0.000000e+00> : vector<8xf32>
    %635 = vector.multi_reduction <add>, %634, %cst_315 [1] : vector<8x128xf32> to vector<8xf32>
    %636 = vector.shape_cast %635 : vector<8xf32> to vector<8x1xf32>
    %cst_316 = arith.constant 1.280000e+02 : f32
    %637 = vector.broadcast %cst_316 : f32 to vector<8x1xf32>
    %638 = arith.divf %636, %637 : vector<8x1xf32>
    %639 = vector.broadcast %631 : vector<8x1xf32> to vector<8x128xf32>
    %640 = arith.subf %623, %639 : vector<8x128xf32>
    %cst_317 = arith.constant 9.99999974E-6 : f32
    %641 = vector.broadcast %cst_317 : f32 to vector<8x1xf32>
    %642 = arith.addf %638, %641 : vector<8x1xf32>
    %643 = math.rsqrt %642 : vector<8x1xf32>
    %644 = vector.broadcast %643 : vector<8x1xf32> to vector<8x128xf32>
    %645 = arith.mulf %640, %644 : vector<8x128xf32>
    %646 = vector.broadcast %625 : vector<1x128xf32> to vector<8x128xf32>
    %647 = arith.mulf %645, %646 : vector<8x128xf32>
    %648 = vector.broadcast %627 : vector<1x128xf32> to vector<8x128xf32>
    %649 = arith.addf %647, %648 : vector<8x128xf32>
    %c3_318 = arith.constant 3 : index
    %c0_319 = arith.constant 0 : index
    %650 = vector.load %arg8[%c3_318, %c0_319] : memref<6x128xf32, #tpu.memory_space<vmem>>, vector<1x128xf32>
    %c4_320 = arith.constant 4 : index
    %c0_321 = arith.constant 0 : index
    %651 = vector.load %arg8[%c4_320, %c0_321] : memref<6x128xf32, #tpu.memory_space<vmem>>, vector<1x128xf32>
    %cst_322 = arith.constant dense<0.000000e+00> : vector<8xf32>
    %652 = vector.multi_reduction <add>, %649, %cst_322 [1] : vector<8x128xf32> to vector<8xf32>
    %653 = vector.shape_cast %652 : vector<8xf32> to vector<8x1xf32>
    %cst_323 = arith.constant 1.280000e+02 : f32
    %654 = vector.broadcast %cst_323 : f32 to vector<8x1xf32>
    %655 = arith.divf %653, %654 : vector<8x1xf32>
    %656 = vector.broadcast %655 : vector<8x1xf32> to vector<8x128xf32>
    %657 = arith.subf %649, %656 : vector<8x128xf32>
    %658 = arith.mulf %657, %657 : vector<8x128xf32>
    %cst_324 = arith.constant dense<0.000000e+00> : vector<8xf32>
    %659 = vector.multi_reduction <add>, %658, %cst_324 [1] : vector<8x128xf32> to vector<8xf32>
    %660 = vector.shape_cast %659 : vector<8xf32> to vector<8x1xf32>
    %cst_325 = arith.constant 1.280000e+02 : f32
    %661 = vector.broadcast %cst_325 : f32 to vector<8x1xf32>
    %662 = arith.divf %660, %661 : vector<8x1xf32>
    %663 = vector.broadcast %655 : vector<8x1xf32> to vector<8x128xf32>
    %664 = arith.subf %649, %663 : vector<8x128xf32>
    %cst_326 = arith.constant 9.99999974E-6 : f32
    %665 = vector.broadcast %cst_326 : f32 to vector<8x1xf32>
    %666 = arith.addf %662, %665 : vector<8x1xf32>
    %667 = math.rsqrt %666 : vector<8x1xf32>
    %668 = vector.broadcast %667 : vector<8x1xf32> to vector<8x128xf32>
    %669 = arith.mulf %664, %668 : vector<8x128xf32>
    %670 = vector.broadcast %650 : vector<1x128xf32> to vector<8x128xf32>
    %671 = arith.mulf %669, %670 : vector<8x128xf32>
    %672 = vector.broadcast %651 : vector<1x128xf32> to vector<8x128xf32>
    %673 = arith.addf %671, %672 : vector<8x128xf32>
    %c0_327 = arith.constant 0 : index
    %c0_328 = arith.constant 0 : index
    %674 = vector.load %arg7[%c0_327, %c0_328] : memref<128x128xbf16, #tpu.memory_space<vmem>>, vector<128x128xbf16>
    %675 = arith.truncf %673 : vector<8x128xf32> to vector<8x128xbf16>
    %cst_329 = arith.constant dense<0.000000e+00> : vector<8x128xf32>
    %676 = tpu.matmul %675, %674, %cst_329 {dimension_numbers = #tpu.dot_dimension_numbers<[1], [0], [0], [1], [0, 0, 1, 1], [], []>} : vector<8x128xbf16>, vector<128x128xbf16>, vector<8x128xf32> -> vector<8x128xf32>
    %c5_330 = arith.constant 5 : index
    %c0_331 = arith.constant 0 : index
    %677 = vector.load %arg8[%c5_330, %c0_331] : memref<6x128xf32, #tpu.memory_space<vmem>>, vector<1x128xf32>
    %678 = vector.broadcast %677 : vector<1x128xf32> to vector<8x128xf32>
    %679 = arith.addf %676, %678 : vector<8x128xf32>
    %c0_332 = arith.constant 0 : index
    %c0_333 = arith.constant 0 : index
    %680 = vector.load %arg9[%c0_332, %c0_333] : memref<8x128xf32, #tpu.memory_space<vmem>>, vector<8x128xf32>
    tpu.vector_store %arg9[%c0_332, %c0_333], %679 {strides = array<i32>} : memref<8x128xf32, #tpu.memory_space<vmem>>, vector<8x128xf32>,
    return
  }
}

</mosaic_0001>

<llo_original>
// kernel: transformer_forward.1
$region0: #{transformer_forward.1}
  #allocation0 [shape = 'u32[]', space=smem, size = 0x4, offset = 0x4, fixed_abs, tag = 'smem constant byte address 0x4 - core index']
  #allocation1 [shape = 'u32[72,128]{1,0:T(1,128)}', space=vmem, size = 0x9000, scoped, tag = 'internal scratch']
  %s0 = inlined_call_operand.vmem [shape: f32[8,128], index: 0, kind: input, shape index: {}]
  %s1 = inlined_call_operand.vmem [shape: bf16[128,128], index: 1, kind: input, shape index: {}]
  %s2 = inlined_call_operand.hbm [shape: bf16[2,128,768], index: 2, kind: input, shape index: {}]
  %s3 = inlined_call_operand.vmem [shape: f32[2,10,128], index: 3, kind: input, shape index: {}]
  %s4 = inlined_call_operand.hbm [shape: bf16[2,128,1024], index: 4, kind: input, shape index: {}]
  %s5 = inlined_call_operand.hbm [shape: bf16[128,512], index: 5, kind: input, shape index: {}]
  %s6 = inlined_call_operand.hbm [shape: f32[2,16,128], index: 6, kind: input, shape index: {}]
  %s7 = inlined_call_operand.hbm [shape: bf16[128,128], index: 7, kind: input, shape index: {}]
  %s8 = inlined_call_operand.vmem [shape: f32[6,128], index: 8, kind: input, shape index: {}]
  %s9 = inlined_call_operand.vmem [shape: f32[8,128], index: 9, kind: output, shape index: {}]
  %s10 = sld [smem:[#allocation0]]
  $region66: #{transformer_forward.1} parent=0
    _
  %s12 = ssub.s32 1, %s10
  %s13 = scalar_select 0, %s12, %s10
  $region1: #{transformer_forward.1} parent=0
    #allocation2 [shape = 'u8[393216]{0}', space=vmem, size = 0x60000, scoped, tag = 'input window, operand 2, single buffered']
    #allocation3 [shape = 's32[1]{0}', space=sflag, size = 0x4, scoped, tag = 'scoped memory for transformer_forward.1']
    #allocation4 [shape = 'u8[524288]{0}', space=vmem, size = 0x80000, scoped, tag = 'input window, operand 4, single buffered']
    #allocation5 [shape = 's32[1]{0}', space=sflag, size = 0x4, scoped, tag = 'scoped memory for transformer_forward.1']
    #allocation6 [shape = 'u8[131072]{0}', space=vmem, size = 0x20000, scoped, tag = 'input window, operand 5, single buffered']
    #allocation7 [shape = 'u8[16384]{0}', space=vmem, size = 0x4000, scoped, tag = 'input window, operand 6, single buffered']
    #allocation8 [shape = 's32[1]{0}', space=sflag, size = 0x4, scoped, tag = 'scoped memory for transformer_forward.1']
    #allocation9 [shape = 'u8[32768]{0}', space=vmem, size = 0x8000, scoped, tag = 'input window, operand 7, single buffered']
    %14 = vsyncpa [#allocation3], 0
    %15 = vsyncpa [#allocation5], 0
    %16 = vsyncpa [#allocation8], 0
    // Predicated region
    $region2: #{transformer_forward.1} parent=1 // pred_check
      _
    $region3: #{transformer_forward.1} parent=1 // pred_check_branch
      %18 = sbr.rel (0) target = $region5
    $region4: #{transformer_forward.1} parent=1 // pred_region
      _
    $region5: #{transformer_forward.1} parent=1 // pred_fallthru
      _
    // Predicated region
    $region6: #{transformer_forward.1} parent=1 // pred_check
      _
    $region7: #{transformer_forward.1} parent=1 // pred_check_branch
      %20 = sbr.rel (0) target = $region9
    $region8: #{transformer_forward.1} parent=1 // pred_region
      _
    $region9: #{transformer_forward.1} parent=1 // pred_fallthru
      _
    // Predicated region
    $region10: #{transformer_forward.1} parent=1 // pred_check
      _
    $region11: #{transformer_forward.1} parent=1 // pred_check_branch
      %22 = sbr.rel (0) target = $region13
    $region12: #{transformer_forward.1} parent=1 // pred_region
      %24 = vsyncadd [#allocation3], 0
      %s25 = sshll.u32 %s2, 4
      %s26 = int_to_ptr.hbm [resolvable:$true] %s25
      %s27 = sshll.u32 [#allocation2], 4
      %s28 = int_to_ptr.vmem [resolvable:$true] %s27
      %33 = dma.hbm_to_vmem [thread:$0]  %s26, 12288, %s28, [#allocation3], 384, 384, 24
    $region13: #{transformer_forward.1} parent=1 // pred_fallthru
      _
    // Predicated region
    $region14: #{transformer_forward.1} parent=1 // pred_check
      _
    $region15: #{transformer_forward.1} parent=1 // pred_check_branch
      %35 = sbr.rel (0) target = $region17
    $region16: #{transformer_forward.1} parent=1 // pred_region
      _
    $region17: #{transformer_forward.1} parent=1 // pred_fallthru
      _
    // Predicated region
    $region18: #{transformer_forward.1} parent=1 // pred_check
      _
    $region19: #{transformer_forward.1} parent=1 // pred_check_branch
      %37 = sbr.rel (0) target = $region21
    $region20: #{transformer_forward.1} parent=1 // pred_region
      %39 = vsyncadd [#allocation5], 0
      %s40 = sshll.u32 %s4, 4
      %s41 = int_to_ptr.hbm [resolvable:$true] %s40
      %s42 = sshll.u32 [#allocation4], 4
      %s43 = int_to_ptr.vmem [resolvable:$true] %s42
      %48 = dma.hbm_to_vmem [thread:$0]  %s41, 16384, %s43, [#allocation5], 512, 512, 32
    $region21: #{transformer_forward.1} parent=1 // pred_fallthru
      _
    // Predicated region
    $region22: #{transformer_forward.1} parent=1 // pred_check
      _
    $region23: #{transformer_forward.1} parent=1 // pred_check_branch
      %50 = sbr.rel (0) target = $region25
    $region24: #{transformer_forward.1} parent=1 // pred_region
      %52 = vsyncadd [#allocation5], 0
      %s53 = sshll.u32 %s5, 4
      %s54 = int_to_ptr.hbm [resolvable:$true] %s53
      %s55 = sshll.u32 [#allocation6], 4
      %s56 = int_to_ptr.vmem [resolvable:$true] %s55
      %61 = dma.hbm_to_vmem [thread:$0]  %s54, 4096, %s56, [#allocation5], 256, 256, 16
    $region25: #{transformer_forward.1} parent=1 // pred_fallthru
      _
    // Predicated region
    $region26: #{transformer_forward.1} parent=1 // pred_check
      _
    $region27: #{transformer_forward.1} parent=1 // pred_check_branch
      %63 = sbr.rel (0) target = $region29
    $region28: #{transformer_forward.1} parent=1 // pred_region
      %65 = vsyncadd [#allocation8], 0
      %s66 = sshll.u32 %s6, 4
      %s67 = int_to_ptr.hbm [resolvable:$true] %s66
      %s68 = sshll.u32 [#allocation7], 4
      %s69 = int_to_ptr.vmem [resolvable:$true] %s68
      %74 = dma.hbm_to_vmem [thread:$0]  %s67, 512, %s69, [#allocation8], 128, 128, 8
    $region29: #{transformer_forward.1} parent=1 // pred_fallthru
      _
    // Predicated region
    $region30: #{transformer_forward.1} parent=1 // pred_check
      _
    $region31: #{transformer_forward.1} parent=1 // pred_check_branch
      %76 = sbr.rel (0) target = $region33
    $region32: #{transformer_forward.1} parent=1 // pred_region
      %78 = vsyncadd [#allocation8], 0
      %s79 = sshll.u32 %s7, 4
      %s80 = int_to_ptr.hbm [resolvable:$true] %s79
      %s81 = sshll.u32 [#allocation9], 4
      %s82 = int_to_ptr.vmem [resolvable:$true] %s81
      %87 = dma.hbm_to_vmem [thread:$0]  %s80, 1024, %s82, [#allocation8], 64, 64, 4
    $region33: #{transformer_forward.1} parent=1 // pred_fallthru
      _
    // Predicated region
    $region34: #{transformer_forward.1} parent=1 // pred_check
      _
    $region35: #{transformer_forward.1} parent=1 // pred_check_branch
      %89 = sbr.rel (0) target = $region37
    $region36: #{transformer_forward.1} parent=1 // pred_region
      _
    $region37: #{transformer_forward.1} parent=1 // pred_fallthru
      _
    // Predicated region
    $region38: #{transformer_forward.1} parent=1 // pred_check
      _
    $region39: #{transformer_forward.1} parent=1 // pred_check_branch
      %91 = sbr.rel (0) target = $region41
    $region40: #{transformer_forward.1} parent=1 // pred_region
      %93 = dma.done [#allocation3], 12288
    $region41: #{transformer_forward.1} parent=1 // pred_fallthru
      _
    // Predicated region
    $region42: #{transformer_forward.1} parent=1 // pred_check
      _
    $region43: #{transformer_forward.1} parent=1 // pred_check_branch
      %95 = sbr.rel (0) target = $region45
    $region44: #{transformer_forward.1} parent=1 // pred_region
      %97 = dma.done [#allocation5], 16384
    $region45: #{transformer_forward.1} parent=1 // pred_fallthru
      _
    // Predicated region
    $region46: #{transformer_forward.1} parent=1 // pred_check
      _
    $region47: #{transformer_forward.1} parent=1 // pred_check_branch
      %99 = sbr.rel (0) target = $region49
    $region48: #{transformer_forward.1} parent=1 // pred_region
      %101 = dma.done [#allocation5], 4096
    $region49: #{transformer_forward.1} parent=1 // pred_fallthru
      _
    // Predicated region
    $region50: #{transformer_forward.1} parent=1 // pred_check
      _
    $region51: #{transformer_forward.1} parent=1 // pred_check_branch
      %103 = sbr.rel (0) target = $region53
    $region52: #{transformer_forward.1} parent=1 // pred_region
      %105 = dma.done [#allocation8], 512
    $region53: #{transformer_forward.1} parent=1 // pred_fallthru
      _
    // Predicated region
    $region54: #{transformer_forward.1} parent=1 // pred_check
      _
    $region55: #{transformer_forward.1} parent=1 // pred_check_branch
      %107 = sbr.rel (0) target = $region57
    $region56: #{transformer_forward.1} parent=1 // pred_region
      %109 = dma.done [#allocation8], 1024
    $region57: #{transformer_forward.1} parent=1 // pred_fallthru
      _
    %v111 = vld [vmem:[%s0] sm:$0xff]
    %v112 = vld [vmem:[%s1] sm:$0xf]
    %v113 = vld [vmem:[%s1 + $0x4] sm:$0xf]
    %v114 = vld [vmem:[%s1 + $0x8] sm:$0xf]
    %v115 = vld [vmem:[%s1 + $0xc] sm:$0xf]
    %v116 = vld [vmem:[%s1 + $0x10] sm:$0xf]
    %v117 = vld [vmem:[%s1 + $0x14] sm:$0xf]
    %v118 = vld [vmem:[%s1 + $0x18] sm:$0xf]
    %v119 = vld [vmem:[%s1 + $0x1c] sm:$0xf]
    %v120 = vld [vmem:[%s1 + $0x20] sm:$0xf]
    %v121 = vld [vmem:[%s1 + $0x24] sm:$0xf]
    %v122 = vld [vmem:[%s1 + $0x28] sm:$0xf]
    %v123 = vld [vmem:[%s1 + $0x2c] sm:$0xf]
    %v124 = vld [vmem:[%s1 + $0x30] sm:$0xf]
    %v125 = vld [vmem:[%s1 + $0x34] sm:$0xf]
    %v126 = vld [vmem:[%s1 + $0x38] sm:$0xf]
    %v127 = vld [vmem:[%s1 + $0x3c] sm:$0xf]
    %v128 = vpack.c.bf16 %v111, %v111
    %v129 = vld [vmem:[%s8] sm:$0x1]
    %v130 = vperm.slane %v129, 0
    %v147 = vunpack.c.l.b16 %v112
    %v148 = vunpack.c.l.b16 %v113
    %v149 = vunpack.c.l.b16 %v114
    %v150 = vunpack.c.l.b16 %v115
    %v151 = vunpack.c.l.b16 %v116
    %v152 = vunpack.c.l.b16 %v117
    %v153 = vunpack.c.l.b16 %v118
    %v154 = vunpack.c.l.b16 %v119
    %v155 = vunpack.c.l.b16 %v120
    %v156 = vunpack.c.l.b16 %v121
    %v157 = vunpack.c.l.b16 %v122
    %v158 = vunpack.c.l.b16 %v123
    %v159 = vunpack.c.l.b16 %v124
    %v160 = vunpack.c.l.b16 %v125
    %v161 = vunpack.c.l.b16 %v126
    %v162 = vunpack.c.l.b16 %v127
    %v163 = vpack.c.b16 %v148, %v147
    %v164 = vpack.c.b16 %v150, %v149
    %v165 = vpack.c.b16 %v152, %v151
    %v166 = vpack.c.b16 %v154, %v153
    %v167 = vpack.c.b16 %v156, %v155
    %v168 = vpack.c.b16 %v158, %v157
    %v169 = vpack.c.b16 %v160, %v159
    %v170 = vpack.c.b16 %v162, %v161
    %179 = vmatpush.bf16.msra.mxu0 %v170
    %180 = vmatpush.bf16.msra.mxu0 %v169
    %181 = vmatpush.bf16.msra.mxu0 %v168
    %182 = vmatpush.bf16.msra.mxu0 %v167
    %183 = vmatpush.bf16.msra.mxu0 %v166
    %184 = vmatpush.bf16.msra.mxu0 %v165
    %185 = vmatpush.bf16.msra.mxu0 %v164
    %186 = vmatpush.bf16.msra.mxu0 %v163
    %187 = vmatmul.bf16.gmra.mxu0 %v128
    %v188 = vpop.f32.mrf.mxu0
    %v189 = vadd.f32 %v130, %v188
    %v190 = vpop.f32.mrf.mxu0
    %191 = vdwg.mxu0
    %v192 = vrot.slane %v189, 7
    %v193 = vlaneseq
    %v194 = vshrl.u32 %v193, 7
    %vm195 = vcmp.eq.s32.totalorder %v194, 0
    %v196 = vsel %vm195, 0.0, %v192
    %v197 = vld [vmem:[#allocation2] sm:$0xff]
    %v198 = vld [vmem:[#allocation2 + $0x8] sm:$0xf]
    %v199 = vld [vmem:[#allocation2 + $0x18] sm:$0xff]
    %v200 = vld [vmem:[#allocation2 + $0x20] sm:$0xf]
    %v201 = vld [vmem:[#allocation2 + $0x30] sm:$0xff]
    %v202 = vld [vmem:[#allocation2 + $0x38] sm:$0xf]
    %v203 = vld [vmem:[#allocation2 + $0x48] sm:$0xff]
    %v204 = vld [vmem:[#allocation2 + $0x50] sm:$0xf]
    %v205 = vld [vmem:[#allocation2 + $0x60] sm:$0xff]
    %v206 = vld [vmem:[#allocation2 + $0x68] sm:$0xf]
    %v207 = vld [vmem:[#allocation2 + $0x78] sm:$0xff]
    %v208 = vld [vmem:[#allocation2 + $0x80] sm:$0xf]
    %v209 = vld [vmem:[#allocation2 + $0x90] sm:$0xff]
    %v210 = vld [vmem:[#allocation2 + $0x98] sm:$0xf]
    %v211 = vld [vmem:[#allocation2 + $0xa8] sm:$0xff]
    %v212 = vld [vmem:[#allocation2 + $0xb0] sm:$0xf]
    %v213 = vld [vmem:[#allocation2 + $0xc0] sm:$0xff]
    %v214 = vld [vmem:[#allocation2 + $0xc8] sm:$0xf]
    %v215 = vld [vmem:[#allocation2 + $0xd8] sm:$0xff]
    %v216 = vld [vmem:[#allocation2 + $0xe0] sm:$0xf]
    %v217 = vld [vmem:[#allocation2 + $0xf0] sm:$0xff]
    %v218 = vld [vmem:[#allocation2 + $0xf8] sm:$0xf]
    %v219 = vld [vmem:[#allocation2 + $0x108] sm:$0xff]
    %v220 = vld [vmem:[#allocation2 + $0x110] sm:$0xf]
    %v221 = vld [vmem:[#allocation2 + $0x120] sm:$0xff]
    %v222 = vld [vmem:[#allocation2 + $0x128] sm:$0xf]
    %v223 = vld [vmem:[#allocation2 + $0x138] sm:$0xff]
    %v224 = vld [vmem:[#allocation2 + $0x140] sm:$0xf]
    %v225 = vld [vmem:[#allocation2 + $0x150] sm:$0xff]
    %v226 = vld [vmem:[#allocation2 + $0x158] sm:$0xf]
    %v227 = vld [vmem:[#allocation2 + $0x168] sm:$0xff]
    %v228 = vld [vmem:[#allocation2 + $0x170] sm:$0xf]
    %v229 = vpack.c.bf16 %v189, %v189
    %v262 = vunpack.c.l.b16 %v197
    %v263 = vunpack.c.h.b16 %v197
    %v264 = vunpack.c.l.b16 %v198
    %v265 = vunpack.c.l.b16 %v199
    %v266 = vunpack.c.h.b16 %v199
    %v267 = vunpack.c.l.b16 %v200
    %v268 = vunpack.c.l.b16 %v201
    %v269 = vunpack.c.h.b16 %v201
    %v270 = vunpack.c.l.b16 %v202
    %v271 = vunpack.c.l.b16 %v203
    %v272 = vunpack.c.h.b16 %v203
    %v273 = vunpack.c.l.b16 %v204
    %v274 = vunpack.c.l.b16 %v205
    %v275 = vunpack.c.h.b16 %v205
    %v276 = vunpack.c.l.b16 %v206
    %v277 = vunpack.c.l.b16 %v207
    %v278 = vunpack.c.h.b16 %v207
    %v279 = vunpack.c.l.b16 %v208
    %v280 = vunpack.c.l.b16 %v209
    %v281 = vunpack.c.h.b16 %v209
    %v282 = vunpack.c.l.b16 %v210
    %v283 = vunpack.c.l.b16 %v211
    %v284 = vunpack.c.h.b16 %v211
    %v285 = vunpack.c.l.b16 %v212
    %v286 = vunpack.c.l.b16 %v213
    %v287 = vunpack.c.h.b16 %v213
    %v288 = vunpack.c.l.b16 %v214
    %v289 = vunpack.c.l.b16 %v215
    %v290 = vunpack.c.h.b16 %v215
    %v291 = vunpack.c.l.b16 %v216
    %v292 = vunpack.c.l.b16 %v217
    %v293 = vunpack.c.h.b16 %v217
    %v294 = vunpack.c.l.b16 %v218
    %v295 = vunpack.c.l.b16 %v219
    %v296 = vunpack.c.h.b16 %v219
    %v297 = vunpack.c.l.b16 %v220
    %v298 = vunpack.c.l.b16 %v221
    %v299 = vunpack.c.h.b16 %v221
    %v300 = vunpack.c.l.b16 %v222
    %v301 = vunpack.c.l.b16 %v223
    %v302 = vunpack.c.h.b16 %v223
    %v303 = vunpack.c.l.b16 %v224
    %v304 = vunpack.c.l.b16 %v225
    %v305 = vunpack.c.h.b16 %v225
    %v306 = vunpack.c.l.b16 %v226
    %v307 = vunpack.c.l.b16 %v227
    %v308 = vunpack.c.h.b16 %v227
    %v309 = vunpack.c.l.b16 %v228
    %v310 = vpack.c.b16 %v265, %v262
    %v311 = vpack.c.b16 %v266, %v263
    %v312 = vpack.c.b16 %v267, %v264
    %v313 = vpack.c.b16 %v271, %v268
    %v314 = vpack.c.b16 %v272, %v269
    %v315 = vpack.c.b16 %v273, %v270
    %v316 = vpack.c.b16 %v277, %v274
    %v317 = vpack.c.b16 %v278, %v275
    %v318 = vpack.c.b16 %v279, %v276
    %v319 = vpack.c.b16 %v283, %v280
    %v320 = vpack.c.b16 %v284, %v281
    %v321 = vpack.c.b16 %v285, %v282
    %v322 = vpack.c.b16 %v289, %v286
    %v323 = vpack.c.b16 %v290, %v287
    %v324 = vpack.c.b16 %v291, %v288
    %v325 = vpack.c.b16 %v295, %v292
    %v326 = vpack.c.b16 %v296, %v293
    %v327 = vpack.c.b16 %v297, %v294
    %v328 = vpack.c.b16 %v301, %v298
    %v329 = vpack.c.b16 %v302, %v299
    %v330 = vpack.c.b16 %v303, %v300
    %v331 = vpack.c.b16 %v307, %v304
    %v332 = vpack.c.b16 %v308, %v305
    %v333 = vpack.c.b16 %v309, %v306
    %358 = vmatpush.bf16.msra.mxu0 %v331
    %359 = vmatpush.bf16.msra.mxu0 %v328
    %360 = vmatpush.bf16.msra.mxu0 %v325
    %361 = vmatpush.bf16.msra.mxu0 %v322
    %362 = vmatpush.bf16.msra.mxu0 %v319
    %363 = vmatpush.bf16.msra.mxu0 %v316
    %364 = vmatpush.bf16.msra.mxu0 %v313
    %365 = vmatpush.bf16.msra.mxu0 %v310
    %366 = vmatmul.bf16.gmra.mxu0 %v229
    %v367 = vpop.f32.mrf.mxu0
    %v368 = vadd.f32 0.0, %v367
    %v369 = vpop.f32.mrf.mxu0
    %370 = vdwg.mxu0
    %371 = vmatpush.bf16.msra.mxu0 %v332
    %372 = vmatpush.bf16.msra.mxu0 %v329
    %373 = vmatpush.bf16.msra.mxu0 %v326
    %374 = vmatpush.bf16.msra.mxu0 %v323
    %375 = vmatpush.bf16.msra.mxu0 %v320
    %376 = vmatpush.bf16.msra.mxu0 %v317
    %377 = vmatpush.bf16.msra.mxu0 %v314
    %378 = vmatpush.bf16.msra.mxu0 %v311
    %379 = vmatmul.bf16.gmra.mxu0 %v229
    %v380 = vpop.f32.mrf.mxu0
    %v381 = vadd.f32 0.0, %v380
    %v382 = vpop.f32.mrf.mxu0
    %383 = vdwg.mxu0
    %384 = vmatpush.bf16.msra.mxu0 %v333
    %385 = vmatpush.bf16.msra.mxu0 %v330
    %386 = vmatpush.bf16.msra.mxu0 %v327
    %387 = vmatpush.bf16.msra.mxu0 %v324
    %388 = vmatpush.bf16.msra.mxu0 %v321
    %389 = vmatpush.bf16.msra.mxu0 %v318
    %390 = vmatpush.bf16.msra.mxu0 %v315
    %391 = vmatpush.bf16.msra.mxu0 %v312
    %392 = vmatmul.bf16.gmra.mxu0 %v229
    %v393 = vpop.f32.mrf.mxu0
    %v394 = vadd.f32 0.0, %v393
    %v395 = vpop.f32.mrf.mxu0
    %396 = vdwg.mxu0
    %v397 = vld [vmem:[%s3] sm:$0x1]
    %v398 = vperm.slane %v397, 0
    %v399 = vadd.f32 %v368, %v398
    %v400 = vld [vmem:[%s3 + $0x1] sm:$0x1]
    %v401 = vperm.slane %v400, 0
    %v402 = vadd.f32 %v381, %v401
    %v403 = vld [vmem:[%s3 + $0x2] sm:$0x1]
    %v404 = vperm.slane %v403, 0
    %v405 = vadd.f32 %v394, %v404
    %v406 = vpack.c.bf16 %v399, %v399
    %v407 = vpack.c.bf16 %v402, %v402
    %408 = vmatpush.bf16.xpose.msra.mxu0 0
    %409 = vmatpush.bf16.xpose.msra.mxu0 0
    %410 = vmatpush.bf16.xpose.msra.mxu0 0
    %411 = vmatpush.bf16.xpose.msra.mxu0 0
    %412 = vmatpush.bf16.xpose.msra.mxu0 0
    %413 = vmatpush.bf16.xpose.msra.mxu0 0
    %414 = vmatpush.bf16.xpose.msra.mxu0 0
    %415 = vmatpush.bf16.xpose.msra.mxu0 %v407
    %416 = vmatmul.bf16.gmra.mxu0 %v406
    %v417 = vpop.f32.mrf.mxu0
    %v418 = vadd.f32 0.0, %v417
    %v419 = vpop.f32.mrf.mxu0
    %420 = vdwg.mxu0
    %v421 = vmul.f32 %v418, 0.088388346
    %vm422 = vcmask 64512
    %v423 = vsel %vm422, %v421, -inf
    %424 = vmax.xlane.f32.xlu0 %v423
    %v425 = vpop.xlane.xlu0 %424
    %v426 = vsub.f32 %v421, %v425
    %v427 = vmul.f32 %v426, 1.442695
    %v428 = vpow.pop %v427
    %v429 = vsel %vm422, %v428, 0.0
    %430 = vadd.xlane.f32.xlu0 %v429
    %v431 = vpop.xlane.xlu0 %430
    %v432 = vrcp.pop %v431
    %v433 = vmul.f32 %v428, %v432
    %v434 = vpack.c.bf16 %v433, %v433
    %v435 = vpack.c.bf16 %v405, %v405
    %v437 = vsel %vm422, %v434, 0
    %vm439 = vcmask 1043456
    %v441 = vsel %vm439, %v435, 0
    %443 = vmatpush.bf16.msra.mxu0 0
    %444 = vmatpush.bf16.msra.mxu0 0
    %445 = vmatpush.bf16.msra.mxu0 0
    %446 = vmatpush.bf16.msra.mxu0 0
    %447 = vmatpush.bf16.msra.mxu0 0
    %448 = vmatpush.bf16.msra.mxu0 0
    %449 = vmatpush.bf16.msra.mxu0 0
    %450 = vmatpush.bf16.msra.mxu0 %v441
    %451 = vmatmul.bf16.gmra.mxu0 %v437
    %v452 = vpop.f32.mrf.mxu0
    %v453 = vadd.f32 0.0, %v452
    %v454 = vpop.f32.mrf.mxu0
    %455 = vdwg.mxu0
    %v456 = vld [vmem:[#allocation2 + $0xc] sm:$0xf]
    %v457 = vld [vmem:[#allocation2 + $0x24] sm:$0xf]
    %v458 = vld [vmem:[#allocation2 + $0x3c] sm:$0xf]
    %v459 = vld [vmem:[#allocation2 + $0x54] sm:$0xf]
    %v460 = vld [vmem:[#allocation2 + $0x6c] sm:$0xf]
    %v461 = vld [vmem:[#allocation2 + $0x84] sm:$0xf]
    %v462 = vld [vmem:[#allocation2 + $0x9c] sm:$0xf]
    %v463 = vld [vmem:[#allocation2 + $0xb4] sm:$0xf]
    %v464 = vld [vmem:[#allocation2 + $0xcc] sm:$0xf]
    %v465 = vld [vmem:[#allocation2 + $0xe4] sm:$0xf]
    %v466 = vld [vmem:[#allocation2 + $0xfc] sm:$0xf]
    %v467 = vld [vmem:[#allocation2 + $0x114] sm:$0xf]
    %v468 = vld [vmem:[#allocation2 + $0x12c] sm:$0xf]
    %v469 = vld [vmem:[#allocation2 + $0x144] sm:$0xf]
    %v470 = vld [vmem:[#allocation2 + $0x15c] sm:$0xf]
    %v471 = vld [vmem:[#allocation2 + $0x174] sm:$0xf]
    %v472 = vpack.c.bf16 %v453, %v453
    %v473 = vld [vmem:[%s3 + $0x3] sm:$0x1]
    %v474 = vperm.slane %v473, 0
    %v491 = vunpack.c.l.b16 %v456
    %v492 = vunpack.c.l.b16 %v457
    %v493 = vunpack.c.l.b16 %v458
    %v494 = vunpack.c.l.b16 %v459
    %v495 = vunpack.c.l.b16 %v460
    %v496 = vunpack.c.l.b16 %v461
    %v497 = vunpack.c.l.b16 %v462
    %v498 = vunpack.c.l.b16 %v463
    %v499 = vunpack.c.l.b16 %v464
    %v500 = vunpack.c.l.b16 %v465
    %v501 = vunpack.c.l.b16 %v466
    %v502 = vunpack.c.l.b16 %v467
    %v503 = vunpack.c.l.b16 %v468
    %v504 = vunpack.c.l.b16 %v469
    %v505 = vunpack.c.l.b16 %v470
    %v506 = vunpack.c.l.b16 %v471
    %v507 = vpack.c.b16 %v492, %v491
    %v508 = vpack.c.b16 %v494, %v493
    %v509 = vpack.c.b16 %v496, %v495
    %v510 = vpack.c.b16 %v498, %v497
    %v511 = vpack.c.b16 %v500, %v499
    %v512 = vpack.c.b16 %v502, %v501
    %v513 = vpack.c.b16 %v504, %v503
    %v514 = vpack.c.b16 %v506, %v505
    %523 = vmatpush.bf16.msra.mxu0 %v514
    %524 = vmatpush.bf16.msra.mxu0 %v513
    %525 = vmatpush.bf16.msra.mxu0 %v512
    %526 = vmatpush.bf16.msra.mxu0 %v511
    %527 = vmatpush.bf16.msra.mxu0 %v510
    %528 = vmatpush.bf16.msra.mxu0 %v509
    %529 = vmatpush.bf16.msra.mxu0 %v508
    %530 = vmatpush.bf16.msra.mxu0 %v507
    %531 = vmatmul.bf16.gmra.mxu0 %v472
    %v532 = vpop.f32.mrf.mxu0
    %v533 = vadd.f32 %v474, %v532
    %v534 = vpop.f32.mrf.mxu0
    %535 = vdwg.mxu0
    %v536 = vadd.f32 %v189, %v533
    %v537 = vld [vmem:[%s3 + $0x4] sm:$0x1]
    %v538 = vld [vmem:[%s3 + $0x5] sm:$0x1]
    %539 = vadd.xlane.f32.xlu0 %v536
    %v540 = vpop.xlane.xlu0 %539
    %v541 = vrcp.pop 128.0
    %v542 = vmul.f32 128.0, %v541
    %v543 = vsub.f32 1.0, %v542
    %v544 = vmul.f32 %v541, %v543
    %v545 = vadd.f32 %v541, %v544
    %vm546 = vweird.f32 %v541
    %v547 = vsel %vm546, %v541, %v545
    %v548 = vmul.f32 %v540, %v547
    %v549 = vsub.f32 %v536, %v548
    %v550 = vmul.f32 %v549, %v549
    %551 = vadd.xlane.f32.xlu0 %v550
    %v552 = vpop.xlane.xlu0 %551
    %v553 = vmul.f32 %v552, %v547
    %v554 = vadd.f32 %v553, 1e-05
    %v555 = vrsqrt.pop %v554
    %v556 = vmul.f32 %v555, %v554
    %v557 = vmul.f32 %v556, %v555
    %v558 = vmul.f32 0.5, %v557
    %v559 = vsub.f32 1.5, %v558
    %v560 = vmul.f32 %v555, %v559
    %vm561 = vweird.f32 %v554
    %vm562 = vweird.f32 %v555
    %vm563 = vmor %vm561, %vm562
    %v564 = vsel %vm563, %v555, %v560
    %v565 = vmul.f32 %v549, %v564
    %v566 = vperm.slane %v537, 0
    %v567 = vmul.f32 %v565, %v566
    %v568 = vperm.slane %v538, 0
    %v569 = vadd.f32 %v567, %v568
    %v570 = vld [vmem:[#allocation2 + $0x10] sm:$0xf]
    %v571 = vld [vmem:[#allocation2 + $0x28] sm:$0xf]
    %v572 = vld [vmem:[#allocation2 + $0x40] sm:$0xf]
    %v573 = vld [vmem:[#allocation2 + $0x58] sm:$0xf]
    %v574 = vld [vmem:[#allocation2 + $0x70] sm:$0xf]
    %v575 = vld [vmem:[#allocation2 + $0x88] sm:$0xf]
    %v576 = vld [vmem:[#allocation2 + $0xa0] sm:$0xf]
    %v577 = vld [vmem:[#allocation2 + $0xb8] sm:$0xf]
    %v578 = vld [vmem:[#allocation2 + $0xd0] sm:$0xf]
    %v579 = vld [vmem:[#allocation2 + $0xe8] sm:$0xf]
    %v580 = vld [vmem:[#allocation2 + $0x100] sm:$0xf]
    %v581 = vld [vmem:[#allocation2 + $0x118] sm:$0xf]
    %v582 = vld [vmem:[#allocation2 + $0x130] sm:$0xf]
    %v583 = vld [vmem:[#allocation2 + $0x148] sm:$0xf]
    %v584 = vld [vmem:[#allocation2 + $0x160] sm:$0xf]
    %v585 = vld [vmem:[#allocation2 + $0x178] sm:$0xf]
    %v586 = vpack.c.bf16 %v569, %v569
    %v587 = vld [vmem:[%s3 + $0x6] sm:$0x1]
    %v588 = vperm.slane %v587, 0
    %v605 = vunpack.c.l.b16 %v570
    %v606 = vunpack.c.l.b16 %v571
    %v607 = vunpack.c.l.b16 %v572
    %v608 = vunpack.c.l.b16 %v573
    %v609 = vunpack.c.l.b16 %v574
    %v610 = vunpack.c.l.b16 %v575
    %v611 = vunpack.c.l.b16 %v576
    %v612 = vunpack.c.l.b16 %v577
    %v613 = vunpack.c.l.b16 %v578
    %v614 = vunpack.c.l.b16 %v579
    %v615 = vunpack.c.l.b16 %v580
    %v616 = vunpack.c.l.b16 %v581
    %v617 = vunpack.c.l.b16 %v582
    %v618 = vunpack.c.l.b16 %v583
    %v619 = vunpack.c.l.b16 %v584
    %v620 = vunpack.c.l.b16 %v585
    %v621 = vpack.c.b16 %v606, %v605
    %v622 = vpack.c.b16 %v608, %v607
    %v623 = vpack.c.b16 %v610, %v609
    %v624 = vpack.c.b16 %v612, %v611
    %v625 = vpack.c.b16 %v614, %v613
    %v626 = vpack.c.b16 %v616, %v615
    %v627 = vpack.c.b16 %v618, %v617
    %v628 = vpack.c.b16 %v620, %v619
    %637 = vmatpush.bf16.msra.mxu0 %v628
    %638 = vmatpush.bf16.msra.mxu0 %v627
    %639 = vmatpush.bf16.msra.mxu0 %v626
    %640 = vmatpush.bf16.msra.mxu0 %v625
    %641 = vmatpush.bf16.msra.mxu0 %v624
    %642 = vmatpush.bf16.msra.mxu0 %v623
    %643 = vmatpush.bf16.msra.mxu0 %v622
    %644 = vmatpush.bf16.msra.mxu0 %v621
    %645 = vmatmul.bf16.gmra.mxu0 %v586
    %v646 = vpop.f32.mrf.mxu0
    %v647 = vadd.f32 %v588, %v646
    %v648 = vpop.f32.mrf.mxu0
    %649 = vdwg.mxu0
    %v650 = vmax.f32 %v647, 0.0
    %v651 = vld [vmem:[#allocation2 + $0x14] sm:$0xf]
    %v652 = vld [vmem:[#allocation2 + $0x2c] sm:$0xf]
    %v653 = vld [vmem:[#allocation2 + $0x44] sm:$0xf]
    %v654 = vld [vmem:[#allocation2 + $0x5c] sm:$0xf]
    %v655 = vld [vmem:[#allocation2 + $0x74] sm:$0xf]
    %v656 = vld [vmem:[#allocation2 + $0x8c] sm:$0xf]
    %v657 = vld [vmem:[#allocation2 + $0xa4] sm:$0xf]
    %v658 = vld [vmem:[#allocation2 + $0xbc] sm:$0xf]
    %v659 = vld [vmem:[#allocation2 + $0xd4] sm:$0xf]
    %v660 = vld [vmem:[#allocation2 + $0xec] sm:$0xf]
    %v661 = vld [vmem:[#allocation2 + $0x104] sm:$0xf]
    %v662 = vld [vmem:[#allocation2 + $0x11c] sm:$0xf]
    %v663 = vld [vmem:[#allocation2 + $0x134] sm:$0xf]
    %v664 = vld [vmem:[#allocation2 + $0x14c] sm:$0xf]
    %v665 = vld [vmem:[#allocation2 + $0x164] sm:$0xf]
    %v666 = vld [vmem:[#allocation2 + $0x17c] sm:$0xf]
    %v667 = vpack.c.bf16 %v650, %v650
    %v668 = vld [vmem:[%s3 + $0x7] sm:$0x1]
    %v669 = vperm.slane %v668, 0
    %v686 = vunpack.c.l.b16 %v651
    %v687 = vunpack.c.l.b16 %v652
    %v688 = vunpack.c.l.b16 %v653
    %v689 = vunpack.c.l.b16 %v654
    %v690 = vunpack.c.l.b16 %v655
    %v691 = vunpack.c.l.b16 %v656
    %v692 = vunpack.c.l.b16 %v657
    %v693 = vunpack.c.l.b16 %v658
    %v694 = vunpack.c.l.b16 %v659
    %v695 = vunpack.c.l.b16 %v660
    %v696 = vunpack.c.l.b16 %v661
    %v697 = vunpack.c.l.b16 %v662
    %v698 = vunpack.c.l.b16 %v663
    %v699 = vunpack.c.l.b16 %v664
    %v700 = vunpack.c.l.b16 %v665
    %v701 = vunpack.c.l.b16 %v666
    %v702 = vpack.c.b16 %v687, %v686
    %v703 = vpack.c.b16 %v689, %v688
    %v704 = vpack.c.b16 %v691, %v690
    %v705 = vpack.c.b16 %v693, %v692
    %v706 = vpack.c.b16 %v695, %v694
    %v707 = vpack.c.b16 %v697, %v696
    %v708 = vpack.c.b16 %v699, %v698
    %v709 = vpack.c.b16 %v701, %v700
    %718 = vmatpush.bf16.msra.mxu0 %v709
    %719 = vmatpush.bf16.msra.mxu0 %v708
    %720 = vmatpush.bf16.msra.mxu0 %v707
    %721 = vmatpush.bf16.msra.mxu0 %v706
    %722 = vmatpush.bf16.msra.mxu0 %v705
    %723 = vmatpush.bf16.msra.mxu0 %v704
    %724 = vmatpush.bf16.msra.mxu0 %v703
    %725 = vmatpush.bf16.msra.mxu0 %v702
    %726 = vmatmul.bf16.gmra.mxu0 %v667
    %v727 = vpop.f32.mrf.mxu0
    %v728 = vadd.f32 %v669, %v727
    %v729 = vpop.f32.mrf.mxu0
    %730 = vdwg.mxu0
    %v731 = vadd.f32 %v569, %v728
    %v732 = vld [vmem:[%s3 + $0x8] sm:$0x1]
    %v733 = vld [vmem:[%s3 + $0x9] sm:$0x1]
    %734 = vadd.xlane.f32.xlu0 %v731
    %v735 = vpop.xlane.xlu0 %734
    %v736 = vmul.f32 %v735, %v547
    %v737 = vsub.f32 %v731, %v736
    %v738 = vmul.f32 %v737, %v737
    %739 = vadd.xlane.f32.xlu0 %v738
    %v740 = vpop.xlane.xlu0 %739
    %v741 = vmul.f32 %v740, %v547
    %v742 = vadd.f32 %v741, 1e-05
    %v743 = vrsqrt.pop %v742
    %v744 = vmul.f32 %v743, %v742
    %v745 = vmul.f32 %v744, %v743
    %v746 = vmul.f32 0.5, %v745
    %v747 = vsub.f32 1.5, %v746
    %v748 = vmul.f32 %v743, %v747
    %vm749 = vweird.f32 %v742
    %vm750 = vweird.f32 %v743
    %vm751 = vmor %vm749, %vm750
    %v752 = vsel %vm751, %v743, %v748
    %v753 = vmul.f32 %v737, %v752
    %v754 = vperm.slane %v732, 0
    %v755 = vmul.f32 %v753, %v754
    %v756 = vperm.slane %v733, 0
    %v757 = vadd.f32 %v755, %v756
    %s758 = scalar_lea.vmem [#allocation2], 384
    %v759 = vld [vmem:[%s758] sm:$0xff]
    %v760 = vld [vmem:[%s758 + $0x8] sm:$0xf]
    %v761 = vld [vmem:[%s758 + $0x18] sm:$0xff]
    %v762 = vld [vmem:[%s758 + $0x20] sm:$0xf]
    %v763 = vld [vmem:[%s758 + $0x30] sm:$0xff]
    %v764 = vld [vmem:[%s758 + $0x38] sm:$0xf]
    %v765 = vld [vmem:[%s758 + $0x48] sm:$0xff]
    %v766 = vld [vmem:[%s758 + $0x50] sm:$0xf]
    %v767 = vld [vmem:[%s758 + $0x60] sm:$0xff]
    %v768 = vld [vmem:[%s758 + $0x68] sm:$0xf]
    %v769 = vld [vmem:[%s758 + $0x78] sm:$0xff]
    %v770 = vld [vmem:[%s758 + $0x80] sm:$0xf]
    %v771 = vld [vmem:[%s758 + $0x90] sm:$0xff]
    %v772 = vld [vmem:[%s758 + $0x98] sm:$0xf]
    %v773 = vld [vmem:[%s758 + $0xa8] sm:$0xff]
    %v774 = vld [vmem:[%s758 + $0xb0] sm:$0xf]
    %v775 = vld [vmem:[%s758 + $0xc0] sm:$0xff]
    %v776 = vld [vmem:[%s758 + $0xc8] sm:$0xf]
    %v777 = vld [vmem:[%s758 + $0xd8] sm:$0xff]
    %v778 = vld [vmem:[%s758 + $0xe0] sm:$0xf]
    %v779 = vld [vmem:[%s758 + $0xf0] sm:$0xff]
    %v780 = vld [vmem:[%s758 + $0xf8] sm:$0xf]
    %v781 = vld [vmem:[%s758 + $0x108] sm:$0xff]
    %v782 = vld [vmem:[%s758 + $0x110] sm:$0xf]
    %v783 = vld [vmem:[%s758 + $0x120] sm:$0xff]
    %v784 = vld [vmem:[%s758 + $0x128] sm:$0xf]
    %v785 = vld [vmem:[%s758 + $0x138] sm:$0xff]
    %v786 = vld [vmem:[%s758 + $0x140] sm:$0xf]
    %v787 = vld [vmem:[%s758 + $0x150] sm:$0xff]
    %v788 = vld [vmem:[%s758 + $0x158] sm:$0xf]
    %v789 = vld [vmem:[%s758 + $0x168] sm:$0xff]
    %v790 = vld [vmem:[%s758 + $0x170] sm:$0xf]
    %v791 = vpack.c.bf16 %v757, %v757
    %v824 = vunpack.c.l.b16 %v759
    %v825 = vunpack.c.h.b16 %v759
    %v826 = vunpack.c.l.b16 %v760
    %v827 = vunpack.c.l.b16 %v761
    %v828 = vunpack.c.h.b16 %v761
    %v829 = vunpack.c.l.b16 %v762
    %v830 = vunpack.c.l.b16 %v763
    %v831 = vunpack.c.h.b16 %v763
    %v832 = vunpack.c.l.b16 %v764
    %v833 = vunpack.c.l.b16 %v765
    %v834 = vunpack.c.h.b16 %v765
    %v835 = vunpack.c.l.b16 %v766
    %v836 = vunpack.c.l.b16 %v767
    %v837 = vunpack.c.h.b16 %v767
    %v838 = vunpack.c.l.b16 %v768
    %v839 = vunpack.c.l.b16 %v769
    %v840 = vunpack.c.h.b16 %v769
    %v841 = vunpack.c.l.b16 %v770
    %v842 = vunpack.c.l.b16 %v771
    %v843 = vunpack.c.h.b16 %v771
    %v844 = vunpack.c.l.b16 %v772
    %v845 = vunpack.c.l.b16 %v773
    %v846 = vunpack.c.h.b16 %v773
    %v847 = vunpack.c.l.b16 %v774
    %v848 = vunpack.c.l.b16 %v775
    %v849 = vunpack.c.h.b16 %v775
    %v850 = vunpack.c.l.b16 %v776
    %v851 = vunpack.c.l.b16 %v777
    %v852 = vunpack.c.h.b16 %v777
    %v853 = vunpack.c.l.b16 %v778
    %v854 = vunpack.c.l.b16 %v779
    %v855 = vunpack.c.h.b16 %v779
    %v856 = vunpack.c.l.b16 %v780
    %v857 = vunpack.c.l.b16 %v781
    %v858 = vunpack.c.h.b16 %v781
    %v859 = vunpack.c.l.b16 %v782
    %v860 = vunpack.c.l.b16 %v783
    %v861 = vunpack.c.h.b16 %v783
    %v862 = vunpack.c.l.b16 %v784
    %v863 = vunpack.c.l.b16 %v785
    %v864 = vunpack.c.h.b16 %v785
    %v865 = vunpack.c.l.b16 %v786
    %v866 = vunpack.c.l.b16 %v787
    %v867 = vunpack.c.h.b16 %v787
    %v868 = vunpack.c.l.b16 %v788
    %v869 = vunpack.c.l.b16 %v789
    %v870 = vunpack.c.h.b16 %v789
    %v871 = vunpack.c.l.b16 %v790
    %v872 = vpack.c.b16 %v827, %v824
    %v873 = vpack.c.b16 %v828, %v825
    %v874 = vpack.c.b16 %v829, %v826
    %v875 = vpack.c.b16 %v833, %v830
    %v876 = vpack.c.b16 %v834, %v831
    %v877 = vpack.c.b16 %v835, %v832
    %v878 = vpack.c.b16 %v839, %v836
    %v879 = vpack.c.b16 %v840, %v837
    %v880 = vpack.c.b16 %v841, %v838
    %v881 = vpack.c.b16 %v845, %v842
    %v882 = vpack.c.b16 %v846, %v843
    %v883 = vpack.c.b16 %v847, %v844
    %v884 = vpack.c.b16 %v851, %v848
    %v885 = vpack.c.b16 %v852, %v849
    %v886 = vpack.c.b16 %v853, %v850
    %v887 = vpack.c.b16 %v857, %v854
    %v888 = vpack.c.b16 %v858, %v855
    %v889 = vpack.c.b16 %v859, %v856
    %v890 = vpack.c.b16 %v863, %v860
    %v891 = vpack.c.b16 %v864, %v861
    %v892 = vpack.c.b16 %v865, %v862
    %v893 = vpack.c.b16 %v869, %v866
    %v894 = vpack.c.b16 %v870, %v867
    %v895 = vpack.c.b16 %v871, %v868
    %920 = vmatpush.bf16.msra.mxu0 %v893
    %921 = vmatpush.bf16.msra.mxu0 %v890
    %922 = vmatpush.bf16.msra.mxu0 %v887
    %923 = vmatpush.bf16.msra.mxu0 %v884
    %924 = vmatpush.bf16.msra.mxu0 %v881
    %925 = vmatpush.bf16.msra.mxu0 %v878
    %926 = vmatpush.bf16.msra.mxu0 %v875
    %927 = vmatpush.bf16.msra.mxu0 %v872
    %928 = vmatmul.bf16.gmra.mxu0 %v791
    %v929 = vpop.f32.mrf.mxu0
    %v930 = vadd.f32 0.0, %v929
    %v931 = vpop.f32.mrf.mxu0
    %932 = vdwg.mxu0
    %933 = vmatpush.bf16.msra.mxu0 %v894
    %934 = vmatpush.bf16.msra.mxu0 %v891
    %935 = vmatpush.bf16.msra.mxu0 %v888
    %936 = vmatpush.bf16.msra.mxu0 %v885
    %937 = vmatpush.bf16.msra.mxu0 %v882
    %938 = vmatpush.bf16.msra.mxu0 %v879
    %939 = vmatpush.bf16.msra.mxu0 %v876
    %940 = vmatpush.bf16.msra.mxu0 %v873
    %941 = vmatmul.bf16.gmra.mxu0 %v791
    %v942 = vpop.f32.mrf.mxu0
    %v943 = vadd.f32 0.0, %v942
    %v944 = vpop.f32.mrf.mxu0
    %945 = vdwg.mxu0
    %946 = vmatpush.bf16.msra.mxu0 %v895
    %947 = vmatpush.bf16.msra.mxu0 %v892
    %948 = vmatpush.bf16.msra.mxu0 %v889
    %949 = vmatpush.bf16.msra.mxu0 %v886
    %950 = vmatpush.bf16.msra.mxu0 %v883
    %951 = vmatpush.bf16.msra.mxu0 %v880
    %952 = vmatpush.bf16.msra.mxu0 %v877
    %953 = vmatpush.bf16.msra.mxu0 %v874
    %954 = vmatmul.bf16.gmra.mxu0 %v791
    %v955 = vpop.f32.mrf.mxu0
    %v956 = vadd.f32 0.0, %v955
    %v957 = vpop.f32.mrf.mxu0
    %958 = vdwg.mxu0
    %s959 = scalar_lea.vmem %s3, 16
    %v960 = vld [vmem:[%s959] sm:$0x1]
    %v961 = vperm.slane %v960, 0
    %v962 = vadd.f32 %v930, %v961
    %v963 = vld [vmem:[%s959 + $0x1] sm:$0x1]
    %v964 = vperm.slane %v963, 0
    %v965 = vadd.f32 %v943, %v964
    %v966 = vld [vmem:[%s959 + $0x2] sm:$0x1]
    %v967 = vperm.slane %v966, 0
    %v968 = vadd.f32 %v956, %v967
    %v969 = vpack.c.bf16 %v962, %v962
    %v970 = vpack.c.bf16 %v965, %v965
    %971 = vmatpush.bf16.xpose.msra.mxu0 0
    %972 = vmatpush.bf16.xpose.msra.mxu0 0
    %973 = vmatpush.bf16.xpose.msra.mxu0 0
    %974 = vmatpush.bf16.xpose.msra.mxu0 0
    %975 = vmatpush.bf16.xpose.msra.mxu0 0
    %976 = vmatpush.bf16.xpose.msra.mxu0 0
    %977 = vmatpush.bf16.xpose.msra.mxu0 0
    %978 = vmatpush.bf16.xpose.msra.mxu0 %v970
    %979 = vmatmul.bf16.gmra.mxu0 %v969
    %v980 = vpop.f32.mrf.mxu0
    %v981 = vadd.f32 0.0, %v980
    %v982 = vpop.f32.mrf.mxu0
    %983 = vdwg.mxu0
    %v984 = vmul.f32 %v981, 0.088388346
    %v985 = vsel %vm422, %v984, -inf
    %986 = vmax.xlane.f32.xlu0 %v985
    %v987 = vpop.xlane.xlu0 %986
    %v988 = vsub.f32 %v984, %v987
    %v989 = vmul.f32 %v988, 1.442695
    %v990 = vpow.pop %v989
    %v991 = vsel %vm422, %v990, 0.0
    %992 = vadd.xlane.f32.xlu0 %v991
    %v993 = vpop.xlane.xlu0 %992
    %v994 = vrcp.pop %v993
    %v995 = vmul.f32 %v990, %v994
    %v996 = vpack.c.bf16 %v995, %v995
    %v997 = vpack.c.bf16 %v968, %v968
    %v999 = vsel %vm422, %v996, 0
    %v1002 = vsel %vm439, %v997, 0
    %1004 = vmatpush.bf16.msra.mxu0 0
    %1005 = vmatpush.bf16.msra.mxu0 0
    %1006 = vmatpush.bf16.msra.mxu0 0
    %1007 = vmatpush.bf16.msra.mxu0 0
    %1008 = vmatpush.bf16.msra.mxu0 0
    %1009 = vmatpush.bf16.msra.mxu0 0
    %1010 = vmatpush.bf16.msra.mxu0 0
    %1011 = vmatpush.bf16.msra.mxu0 %v1002
    %1012 = vmatmul.bf16.gmra.mxu0 %v999
    %v1013 = vpop.f32.mrf.mxu0
    %v1014 = vadd.f32 0.0, %v1013
    %v1015 = vpop.f32.mrf.mxu0
    %1016 = vdwg.mxu0
    %v1017 = vld [vmem:[%s758 + $0xc] sm:$0xf]
    %v1018 = vld [vmem:[%s758 + $0x24] sm:$0xf]
    %v1019 = vld [vmem:[%s758 + $0x3c] sm:$0xf]
    %v1020 = vld [vmem:[%s758 + $0x54] sm:$0xf]
    %v1021 = vld [vmem:[%s758 + $0x6c] sm:$0xf]
    %v1022 = vld [vmem:[%s758 + $0x84] sm:$0xf]
    %v1023 = vld [vmem:[%s758 + $0x9c] sm:$0xf]
    %v1024 = vld [vmem:[%s758 + $0xb4] sm:$0xf]
    %v1025 = vld [vmem:[%s758 + $0xcc] sm:$0xf]
    %v1026 = vld [vmem:[%s758 + $0xe4] sm:$0xf]
    %v1027 = vld [vmem:[%s758 + $0xfc] sm:$0xf]
    %v1028 = vld [vmem:[%s758 + $0x114] sm:$0xf]
    %v1029 = vld [vmem:[%s758 + $0x12c] sm:$0xf]
    %v1030 = vld [vmem:[%s758 + $0x144] sm:$0xf]
    %v1031 = vld [vmem:[%s758 + $0x15c] sm:$0xf]
    %v1032 = vld [vmem:[%s758 + $0x174] sm:$0xf]
    %v1033 = vpack.c.bf16 %v1014, %v1014
    %v1034 = vld [vmem:[%s959 + $0x3] sm:$0x1]
    %v1035 = vperm.slane %v1034, 0
    %v1052 = vunpack.c.l.b16 %v1017
    %v1053 = vunpack.c.l.b16 %v1018
    %v1054 = vunpack.c.l.b16 %v1019
    %v1055 = vunpack.c.l.b16 %v1020
    %v1056 = vunpack.c.l.b16 %v1021
    %v1057 = vunpack.c.l.b16 %v1022
    %v1058 = vunpack.c.l.b16 %v1023
    %v1059 = vunpack.c.l.b16 %v1024
    %v1060 = vunpack.c.l.b16 %v1025
    %v1061 = vunpack.c.l.b16 %v1026
    %v1062 = vunpack.c.l.b16 %v1027
    %v1063 = vunpack.c.l.b16 %v1028
    %v1064 = vunpack.c.l.b16 %v1029
    %v1065 = vunpack.c.l.b16 %v1030
    %v1066 = vunpack.c.l.b16 %v1031
    %v1067 = vunpack.c.l.b16 %v1032
    %v1068 = vpack.c.b16 %v1053, %v1052
    %v1069 = vpack.c.b16 %v1055, %v1054
    %v1070 = vpack.c.b16 %v1057, %v1056
    %v1071 = vpack.c.b16 %v1059, %v1058
    %v1072 = vpack.c.b16 %v1061, %v1060
    %v1073 = vpack.c.b16 %v1063, %v1062
    %v1074 = vpack.c.b16 %v1065, %v1064
    %v1075 = vpack.c.b16 %v1067, %v1066
    %1084 = vmatpush.bf16.msra.mxu0 %v1075
    %1085 = vmatpush.bf16.msra.mxu0 %v1074
    %1086 = vmatpush.bf16.msra.mxu0 %v1073
    %1087 = vmatpush.bf16.msra.mxu0 %v1072
    %1088 = vmatpush.bf16.msra.mxu0 %v1071
    %1089 = vmatpush.bf16.msra.mxu0 %v1070
    %1090 = vmatpush.bf16.msra.mxu0 %v1069
    %1091 = vmatpush.bf16.msra.mxu0 %v1068
    %1092 = vmatmul.bf16.gmra.mxu0 %v1033
    %v1093 = vpop.f32.mrf.mxu0
    %v1094 = vadd.f32 %v1035, %v1093
    %v1095 = vpop.f32.mrf.mxu0
    %1096 = vdwg.mxu0
    %v1097 = vadd.f32 %v757, %v1094
    %v1098 = vld [vmem:[%s959 + $0x4] sm:$0x1]
    %v1099 = vld [vmem:[%s959 + $0x5] sm:$0x1]
    %1100 = vadd.xlane.f32.xlu0 %v1097
    %v1101 = vpop.xlane.xlu0 %1100
    %v1102 = vmul.f32 %v1101, %v547
    %v1103 = vsub.f32 %v1097, %v1102
    %v1104 = vmul.f32 %v1103, %v1103
    %1105 = vadd.xlane.f32.xlu0 %v1104
    %v1106 = vpop.xlane.xlu0 %1105
    %v1107 = vmul.f32 %v1106, %v547
    %v1108 = vadd.f32 %v1107, 1e-05
    %v1109 = vrsqrt.pop %v1108
    %v1110 = vmul.f32 %v1109, %v1108
    %v1111 = vmul.f32 %v1110, %v1109
    %v1112 = vmul.f32 0.5, %v1111
    %v1113 = vsub.f32 1.5, %v1112
    %v1114 = vmul.f32 %v1109, %v1113
    %vm1115 = vweird.f32 %v1108
    %vm1116 = vweird.f32 %v1109
    %vm1117 = vmor %vm1115, %vm1116
    %v1118 = vsel %vm1117, %v1109, %v1114
    %v1119 = vmul.f32 %v1103, %v1118
    %v1120 = vperm.slane %v1098, 0
    %v1121 = vmul.f32 %v1119, %v1120
    %v1122 = vperm.slane %v1099, 0
    %v1123 = vadd.f32 %v1121, %v1122
    %v1124 = vld [vmem:[%s758 + $0x10] sm:$0xf]
    %v1125 = vld [vmem:[%s758 + $0x28] sm:$0xf]
    %v1126 = vld [vmem:[%s758 + $0x40] sm:$0xf]
    %v1127 = vld [vmem:[%s758 + $0x58] sm:$0xf]
    %v1128 = vld [vmem:[%s758 + $0x70] sm:$0xf]
    %v1129 = vld [vmem:[%s758 + $0x88] sm:$0xf]
    %v1130 = vld [vmem:[%s758 + $0xa0] sm:$0xf]
    %v1131 = vld [vmem:[%s758 + $0xb8] sm:$0xf]
    %v1132 = vld [vmem:[%s758 + $0xd0] sm:$0xf]
    %v1133 = vld [vmem:[%s758 + $0xe8] sm:$0xf]
    %v1134 = vld [vmem:[%s758 + $0x100] sm:$0xf]
    %v1135 = vld [vmem:[%s758 + $0x118] sm:$0xf]
    %v1136 = vld [vmem:[%s758 + $0x130] sm:$0xf]
    %v1137 = vld [vmem:[%s758 + $0x148] sm:$0xf]
    %v1138 = vld [vmem:[%s758 + $0x160] sm:$0xf]
    %v1139 = vld [vmem:[%s758 + $0x178] sm:$0xf]
    %v1140 = vpack.c.bf16 %v1123, %v1123
    %v1141 = vld [vmem:[%s959 + $0x6] sm:$0x1]
    %v1142 = vperm.slane %v1141, 0
    %v1159 = vunpack.c.l.b16 %v1124
    %v1160 = vunpack.c.l.b16 %v1125
    %v1161 = vunpack.c.l.b16 %v1126
    %v1162 = vunpack.c.l.b16 %v1127
    %v1163 = vunpack.c.l.b16 %v1128
    %v1164 = vunpack.c.l.b16 %v1129
    %v1165 = vunpack.c.l.b16 %v1130
    %v1166 = vunpack.c.l.b16 %v1131
    %v1167 = vunpack.c.l.b16 %v1132
    %v1168 = vunpack.c.l.b16 %v1133
    %v1169 = vunpack.c.l.b16 %v1134
    %v1170 = vunpack.c.l.b16 %v1135
    %v1171 = vunpack.c.l.b16 %v1136
    %v1172 = vunpack.c.l.b16 %v1137
    %v1173 = vunpack.c.l.b16 %v1138
    %v1174 = vunpack.c.l.b16 %v1139
    %v1175 = vpack.c.b16 %v1160, %v1159
    %v1176 = vpack.c.b16 %v1162, %v1161
    %v1177 = vpack.c.b16 %v1164, %v1163
    %v1178 = vpack.c.b16 %v1166, %v1165
    %v1179 = vpack.c.b16 %v1168, %v1167
    %v1180 = vpack.c.b16 %v1170, %v1169
    %v1181 = vpack.c.b16 %v1172, %v1171
    %v1182 = vpack.c.b16 %v1174, %v1173
    %1191 = vmatpush.bf16.msra.mxu0 %v1182
    %1192 = vmatpush.bf16.msra.mxu0 %v1181
    %1193 = vmatpush.bf16.msra.mxu0 %v1180
    %1194 = vmatpush.bf16.msra.mxu0 %v1179
    %1195 = vmatpush.bf16.msra.mxu0 %v1178
    %1196 = vmatpush.bf16.msra.mxu0 %v1177
    %1197 = vmatpush.bf16.msra.mxu0 %v1176
    %1198 = vmatpush.bf16.msra.mxu0 %v1175
    %1199 = vmatmul.bf16.gmra.mxu0 %v1140
    %v1200 = vpop.f32.mrf.mxu0
    %v1201 = vadd.f32 %v1142, %v1200
    %v1202 = vpop.f32.mrf.mxu0
    %1203 = vdwg.mxu0
    %v1204 = vmax.f32 %v1201, 0.0
    %v1205 = vld [vmem:[%s758 + $0x14] sm:$0xf]
    %v1206 = vld [vmem:[%s758 + $0x2c] sm:$0xf]
    %v1207 = vld [vmem:[%s758 + $0x44] sm:$0xf]
    %v1208 = vld [vmem:[%s758 + $0x5c] sm:$0xf]
    %v1209 = vld [vmem:[%s758 + $0x74] sm:$0xf]
    %v1210 = vld [vmem:[%s758 + $0x8c] sm:$0xf]
    %v1211 = vld [vmem:[%s758 + $0xa4] sm:$0xf]
    %v1212 = vld [vmem:[%s758 + $0xbc] sm:$0xf]
    %v1213 = vld [vmem:[%s758 + $0xd4] sm:$0xf]
    %v1214 = vld [vmem:[%s758 + $0xec] sm:$0xf]
    %v1215 = vld [vmem:[%s758 + $0x104] sm:$0xf]
    %v1216 = vld [vmem:[%s758 + $0x11c] sm:$0xf]
    %v1217 = vld [vmem:[%s758 + $0x134] sm:$0xf]
    %v1218 = vld [vmem:[%s758 + $0x14c] sm:$0xf]
    %v1219 = vld [vmem:[%s758 + $0x164] sm:$0xf]
    %v1220 = vld [vmem:[%s758 + $0x17c] sm:$0xf]
    %v1221 = vpack.c.bf16 %v1204, %v1204
    %v1222 = vld [vmem:[%s959 + $0x7] sm:$0x1]
    %v1223 = vperm.slane %v1222, 0
    %v1240 = vunpack.c.l.b16 %v1205
    %v1241 = vunpack.c.l.b16 %v1206
    %v1242 = vunpack.c.l.b16 %v1207
    %v1243 = vunpack.c.l.b16 %v1208
    %v1244 = vunpack.c.l.b16 %v1209
    %v1245 = vunpack.c.l.b16 %v1210
    %v1246 = vunpack.c.l.b16 %v1211
    %v1247 = vunpack.c.l.b16 %v1212
    %v1248 = vunpack.c.l.b16 %v1213
    %v1249 = vunpack.c.l.b16 %v1214
    %v1250 = vunpack.c.l.b16 %v1215
    %v1251 = vunpack.c.l.b16 %v1216
    %v1252 = vunpack.c.l.b16 %v1217
    %v1253 = vunpack.c.l.b16 %v1218
    %v1254 = vunpack.c.l.b16 %v1219
    %v1255 = vunpack.c.l.b16 %v1220
    %v1256 = vpack.c.b16 %v1241, %v1240
    %v1257 = vpack.c.b16 %v1243, %v1242
    %v1258 = vpack.c.b16 %v1245, %v1244
    %v1259 = vpack.c.b16 %v1247, %v1246
    %v1260 = vpack.c.b16 %v1249, %v1248
    %v1261 = vpack.c.b16 %v1251, %v1250
    %v1262 = vpack.c.b16 %v1253, %v1252
    %v1263 = vpack.c.b16 %v1255, %v1254
    %1272 = vmatpush.bf16.msra.mxu0 %v1263
    %1273 = vmatpush.bf16.msra.mxu0 %v1262
    %1274 = vmatpush.bf16.msra.mxu0 %v1261
    %1275 = vmatpush.bf16.msra.mxu0 %v1260
    %1276 = vmatpush.bf16.msra.mxu0 %v1259
    %1277 = vmatpush.bf16.msra.mxu0 %v1258
    %1278 = vmatpush.bf16.msra.mxu0 %v1257
    %1279 = vmatpush.bf16.msra.mxu0 %v1256
    %1280 = vmatmul.bf16.gmra.mxu0 %v1221
    %v1281 = vpop.f32.mrf.mxu0
    %v1282 = vadd.f32 %v1223, %v1281
    %v1283 = vpop.f32.mrf.mxu0
    %1284 = vdwg.mxu0
    %v1285 = vadd.f32 %v1123, %v1282
    %v1286 = vld [vmem:[%s959 + $0x8] sm:$0x1]
    %v1287 = vld [vmem:[%s959 + $0x9] sm:$0x1]
    %1288 = vadd.xlane.f32.xlu0 %v1285
    %v1289 = vpop.xlane.xlu0 %1288
    %v1290 = vmul.f32 %v1289, %v547
    %v1291 = vsub.f32 %v1285, %v1290
    %v1292 = vmul.f32 %v1291, %v1291
    %1293 = vadd.xlane.f32.xlu0 %v1292
    %v1294 = vpop.xlane.xlu0 %1293
    %v1295 = vmul.f32 %v1294, %v547
    %v1296 = vadd.f32 %v1295, 1e-05
    %v1297 = vrsqrt.pop %v1296
    %v1298 = vmul.f32 %v1297, %v1296
    %v1299 = vmul.f32 %v1298, %v1297
    %v1300 = vmul.f32 0.5, %v1299
    %v1301 = vsub.f32 1.5, %v1300
    %v1302 = vmul.f32 %v1297, %v1301
    %vm1303 = vweird.f32 %v1296
    %vm1304 = vweird.f32 %v1297
    %vm1305 = vmor %vm1303, %vm1304
    %v1306 = vsel %vm1305, %v1297, %v1302
    %v1307 = vmul.f32 %v1291, %v1306
    %v1308 = vperm.slane %v1286, 0
    %v1309 = vmul.f32 %v1307, %v1308
    %v1310 = vperm.slane %v1287, 0
    %v1311 = vadd.f32 %v1309, %v1310
    %v1312 = vld [vmem:[%s8 + $0x1] sm:$0x1]
    %v1313 = vld [vmem:[%s8 + $0x2] sm:$0x1]
    %1314 = vadd.xlane.f32.xlu0 %v1311
    %v1315 = vpop.xlane.xlu0 %1314
    %v1316 = vmul.f32 %v1315, %v547
    %v1317 = vsub.f32 %v1311, %v1316
    %v1318 = vmul.f32 %v1317, %v1317
    %1319 = vadd.xlane.f32.xlu0 %v1318
    %v1320 = vpop.xlane.xlu0 %1319
    %v1321 = vmul.f32 %v1320, %v547
    %v1322 = vadd.f32 %v1321, 1e-05
    %v1323 = vrsqrt.pop %v1322
    %v1324 = vmul.f32 %v1323, %v1322
    %v1325 = vmul.f32 %v1324, %v1323
    %v1326 = vmul.f32 0.5, %v1325
    %v1327 = vsub.f32 1.5, %v1326
    %v1328 = vmul.f32 %v1323, %v1327
    %vm1329 = vweird.f32 %v1322
    %vm1330 = vweird.f32 %v1323
    %vm1331 = vmor %vm1329, %vm1330
    %v1332 = vsel %vm1331, %v1323, %v1328
    %v1333 = vmul.f32 %v1317, %v1332
    %v1334 = vperm.slane %v1312, 0
    %v1335 = vmul.f32 %v1333, %v1334
    %v1336 = vperm.slane %v1313, 0
    %v1337 = vadd.f32 %v1335, %v1336
    %v1338 = vld [vmem:[#allocation6] sm:$0xff]
    %v1339 = vld [vmem:[#allocation6 + $0x8] sm:$0xff]
    %v1340 = vld [vmem:[#allocation6 + $0x10] sm:$0xff]
    %v1341 = vld [vmem:[#allocation6 + $0x18] sm:$0xff]
    %v1342 = vld [vmem:[#allocation6 + $0x20] sm:$0xff]
    %v1343 = vld [vmem:[#allocation6 + $0x28] sm:$0xff]
    %v1344 = vld [vmem:[#allocation6 + $0x30] sm:$0xff]
    %v1345 = vld [vmem:[#allocation6 + $0x38] sm:$0xff]
    %v1346 = vld [vmem:[#allocation6 + $0x40] sm:$0xff]
    %v1347 = vld [vmem:[#allocation6 + $0x48] sm:$0xff]
    %v1348 = vld [vmem:[#allocation6 + $0x50] sm:$0xff]
    %v1349 = vld [vmem:[#allocation6 + $0x58] sm:$0xff]
    %v1350 = vld [vmem:[#allocation6 + $0x60] sm:$0xff]
    %v1351 = vld [vmem:[#allocation6 + $0x68] sm:$0xff]
    %v1352 = vld [vmem:[#allocation6 + $0x70] sm:$0xff]
    %v1353 = vld [vmem:[#allocation6 + $0x78] sm:$0xff]
    %v1354 = vld [vmem:[#allocation6 + $0x80] sm:$0xff]
    %v1355 = vld [vmem:[#allocation6 + $0x88] sm:$0xff]
    %v1356 = vld [vmem:[#allocation6 + $0x90] sm:$0xff]
    %v1357 = vld [vmem:[#allocation6 + $0x98] sm:$0xff]
    %v1358 = vld [vmem:[#allocation6 + $0xa0] sm:$0xff]
    %v1359 = vld [vmem:[#allocation6 + $0xa8] sm:$0xff]
    %v1360 = vld [vmem:[#allocation6 + $0xb0] sm:$0xff]
    %v1361 = vld [vmem:[#allocation6 + $0xb8] sm:$0xff]
    %v1362 = vld [vmem:[#allocation6 + $0xc0] sm:$0xff]
    %v1363 = vld [vmem:[#allocation6 + $0xc8] sm:$0xff]
    %v1364 = vld [vmem:[#allocation6 + $0xd0] sm:$0xff]
    %v1365 = vld [vmem:[#allocation6 + $0xd8] sm:$0xff]
    %v1366 = vld [vmem:[#allocation6 + $0xe0] sm:$0xff]
    %v1367 = vld [vmem:[#allocation6 + $0xe8] sm:$0xff]
    %v1368 = vld [vmem:[#allocation6 + $0xf0] sm:$0xff]
    %v1369 = vld [vmem:[#allocation6 + $0xf8] sm:$0xff]
    %v1370 = vpack.c.bf16 %v1337, %v1337
    %v1403 = vunpack.c.l.b16 %v1338
    %v1404 = vunpack.c.h.b16 %v1338
    %v1405 = vunpack.c.l.b16 %v1339
    %v1406 = vunpack.c.h.b16 %v1339
    %v1407 = vunpack.c.l.b16 %v1340
    %v1408 = vunpack.c.h.b16 %v1340
    %v1409 = vunpack.c.l.b16 %v1341
    %v1410 = vunpack.c.h.b16 %v1341
    %v1411 = vunpack.c.l.b16 %v1342
    %v1412 = vunpack.c.h.b16 %v1342
    %v1413 = vunpack.c.l.b16 %v1343
    %v1414 = vunpack.c.h.b16 %v1343
    %v1415 = vunpack.c.l.b16 %v1344
    %v1416 = vunpack.c.h.b16 %v1344
    %v1417 = vunpack.c.l.b16 %v1345
    %v1418 = vunpack.c.h.b16 %v1345
    %v1419 = vunpack.c.l.b16 %v1346
    %v1420 = vunpack.c.h.b16 %v1346
    %v1421 = vunpack.c.l.b16 %v1347
    %v1422 = vunpack.c.h.b16 %v1347
    %v1423 = vunpack.c.l.b16 %v1348
    %v1424 = vunpack.c.h.b16 %v1348
    %v1425 = vunpack.c.l.b16 %v1349
    %v1426 = vunpack.c.h.b16 %v1349
    %v1427 = vunpack.c.l.b16 %v1350
    %v1428 = vunpack.c.h.b16 %v1350
    %v1429 = vunpack.c.l.b16 %v1351
    %v1430 = vunpack.c.h.b16 %v1351
    %v1431 = vunpack.c.l.b16 %v1352
    %v1432 = vunpack.c.h.b16 %v1352
    %v1433 = vunpack.c.l.b16 %v1353
    %v1434 = vunpack.c.h.b16 %v1353
    %v1435 = vunpack.c.l.b16 %v1354
    %v1436 = vunpack.c.h.b16 %v1354
    %v1437 = vunpack.c.l.b16 %v1355
    %v1438 = vunpack.c.h.b16 %v1355
    %v1439 = vunpack.c.l.b16 %v1356
    %v1440 = vunpack.c.h.b16 %v1356
    %v1441 = vunpack.c.l.b16 %v1357
    %v1442 = vunpack.c.h.b16 %v1357
    %v1443 = vunpack.c.l.b16 %v1358
    %v1444 = vunpack.c.h.b16 %v1358
    %v1445 = vunpack.c.l.b16 %v1359
    %v1446 = vunpack.c.h.b16 %v1359
    %v1447 = vunpack.c.l.b16 %v1360
    %v1448 = vunpack.c.h.b16 %v1360
    %v1449 = vunpack.c.l.b16 %v1361
    %v1450 = vunpack.c.h.b16 %v1361
    %v1451 = vunpack.c.l.b16 %v1362
    %v1452 = vunpack.c.h.b16 %v1362
    %v1453 = vunpack.c.l.b16 %v1363
    %v1454 = vunpack.c.h.b16 %v1363
    %v1455 = vunpack.c.l.b16 %v1364
    %v1456 = vunpack.c.h.b16 %v1364
    %v1457 = vunpack.c.l.b16 %v1365
    %v1458 = vunpack.c.h.b16 %v1365
    %v1459 = vunpack.c.l.b16 %v1366
    %v1460 = vunpack.c.h.b16 %v1366
    %v1461 = vunpack.c.l.b16 %v1367
    %v1462 = vunpack.c.h.b16 %v1367
    %v1463 = vunpack.c.l.b16 %v1368
    %v1464 = vunpack.c.h.b16 %v1368
    %v1465 = vunpack.c.l.b16 %v1369
    %v1466 = vunpack.c.h.b16 %v1369
    %v1467 = vpack.c.b16 %v1407, %v1403
    %v1468 = vpack.c.b16 %v1408, %v1404
    %v1469 = vpack.c.b16 %v1409, %v1405
    %v1470 = vpack.c.b16 %v1410, %v1406
    %v1471 = vpack.c.b16 %v1415, %v1411
    %v1472 = vpack.c.b16 %v1416, %v1412
    %v1473 = vpack.c.b16 %v1417, %v1413
    %v1474 = vpack.c.b16 %v1418, %v1414
    %v1475 = vpack.c.b16 %v1423, %v1419
    %v1476 = vpack.c.b16 %v1424, %v1420
    %v1477 = vpack.c.b16 %v1425, %v1421
    %v1478 = vpack.c.b16 %v1426, %v1422
    %v1479 = vpack.c.b16 %v1431, %v1427
    %v1480 = vpack.c.b16 %v1432, %v1428
    %v1481 = vpack.c.b16 %v1433, %v1429
    %v1482 = vpack.c.b16 %v1434, %v1430
    %v1483 = vpack.c.b16 %v1439, %v1435
    %v1484 = vpack.c.b16 %v1440, %v1436
    %v1485 = vpack.c.b16 %v1441, %v1437
    %v1486 = vpack.c.b16 %v1442, %v1438
    %v1487 = vpack.c.b16 %v1447, %v1443
    %v1488 = vpack.c.b16 %v1448, %v1444
    %v1489 = vpack.c.b16 %v1449, %v1445
    %v1490 = vpack.c.b16 %v1450, %v1446
    %v1491 = vpack.c.b16 %v1455, %v1451
    %v1492 = vpack.c.b16 %v1456, %v1452
    %v1493 = vpack.c.b16 %v1457, %v1453
    %v1494 = vpack.c.b16 %v1458, %v1454
    %v1495 = vpack.c.b16 %v1463, %v1459
    %v1496 = vpack.c.b16 %v1464, %v1460
    %v1497 = vpack.c.b16 %v1465, %v1461
    %v1498 = vpack.c.b16 %v1466, %v1462
    %1531 = vmatpush.bf16.msra.mxu0 %v1495
    %1532 = vmatpush.bf16.msra.mxu0 %v1491
    %1533 = vmatpush.bf16.msra.mxu0 %v1487
    %1534 = vmatpush.bf16.msra.mxu0 %v1483
    %1535 = vmatpush.bf16.msra.mxu0 %v1479
    %1536 = vmatpush.bf16.msra.mxu0 %v1475
    %1537 = vmatpush.bf16.msra.mxu0 %v1471
    %1538 = vmatpush.bf16.msra.mxu0 %v1467
    %1539 = vmatmul.bf16.gmra.mxu0 %v1370
    %v1540 = vpop.f32.mrf.mxu0
    %v1541 = vadd.f32 0.0, %v1540
    %v1542 = vpop.f32.mrf.mxu0
    %1543 = vdwg.mxu0
    %1544 = vmatpush.bf16.msra.mxu0 %v1496
    %1545 = vmatpush.bf16.msra.mxu0 %v1492
    %1546 = vmatpush.bf16.msra.mxu0 %v1488
    %1547 = vmatpush.bf16.msra.mxu0 %v1484
    %1548 = vmatpush.bf16.msra.mxu0 %v1480
    %1549 = vmatpush.bf16.msra.mxu0 %v1476
    %1550 = vmatpush.bf16.msra.mxu0 %v1472
    %1551 = vmatpush.bf16.msra.mxu0 %v1468
    %1552 = vmatmul.bf16.gmra.mxu0 %v1370
    %v1553 = vpop.f32.mrf.mxu0
    %v1554 = vadd.f32 0.0, %v1553
    %v1555 = vpop.f32.mrf.mxu0
    %1556 = vdwg.mxu0
    %1557 = vmatpush.bf16.msra.mxu0 %v1497
    %1558 = vmatpush.bf16.msra.mxu0 %v1493
    %1559 = vmatpush.bf16.msra.mxu0 %v1489
    %1560 = vmatpush.bf16.msra.mxu0 %v1485
    %1561 = vmatpush.bf16.msra.mxu0 %v1481
    %1562 = vmatpush.bf16.msra.mxu0 %v1477
    %1563 = vmatpush.bf16.msra.mxu0 %v1473
    %1564 = vmatpush.bf16.msra.mxu0 %v1469
    %1565 = vmatmul.bf16.gmra.mxu0 %v1370
    %v1566 = vpop.f32.mrf.mxu0
    %v1567 = vadd.f32 0.0, %v1566
    %v1568 = vpop.f32.mrf.mxu0
    %1569 = vdwg.mxu0
    %1570 = vmatpush.bf16.msra.mxu0 %v1498
    %1571 = vmatpush.bf16.msra.mxu0 %v1494
    %1572 = vmatpush.bf16.msra.mxu0 %v1490
    %1573 = vmatpush.bf16.msra.mxu0 %v1486
    %1574 = vmatpush.bf16.msra.mxu0 %v1482
    %1575 = vmatpush.bf16.msra.mxu0 %v1478
    %1576 = vmatpush.bf16.msra.mxu0 %v1474
    %1577 = vmatpush.bf16.msra.mxu0 %v1470
    %1578 = vmatmul.bf16.gmra.mxu0 %v1370
    %v1579 = vpop.f32.mrf.mxu0
    %v1580 = vadd.f32 0.0, %v1579
    %v1581 = vpop.f32.mrf.mxu0
    %1582 = vdwg.mxu0
    %v1583 = vld [vmem:[#allocation4] sm:$0xff]
    %v1584 = vld [vmem:[#allocation4 + $0x8] sm:$0xf]
    %v1585 = vld [vmem:[#allocation4 + $0x20] sm:$0xff]
    %v1586 = vld [vmem:[#allocation4 + $0x28] sm:$0xf]
    %v1587 = vld [vmem:[#allocation4 + $0x40] sm:$0xff]
    %v1588 = vld [vmem:[#allocation4 + $0x48] sm:$0xf]
    %v1589 = vld [vmem:[#allocation4 + $0x60] sm:$0xff]
    %v1590 = vld [vmem:[#allocation4 + $0x68] sm:$0xf]
    %v1591 = vld [vmem:[#allocation4 + $0x80] sm:$0xff]
    %v1592 = vld [vmem:[#allocation4 + $0x88] sm:$0xf]
    %v1593 = vld [vmem:[#allocation4 + $0xa0] sm:$0xff]
    %v1594 = vld [vmem:[#allocation4 + $0xa8] sm:$0xf]
    %v1595 = vld [vmem:[#allocation4 + $0xc0] sm:$0xff]
    %v1596 = vld [vmem:[#allocation4 + $0xc8] sm:$0xf]
    %v1597 = vld [vmem:[#allocation4 + $0xe0] sm:$0xff]
    %v1598 = vld [vmem:[#allocation4 + $0xe8] sm:$0xf]
    %v1599 = vld [vmem:[#allocation4 + $0x100] sm:$0xff]
    %v1600 = vld [vmem:[#allocation4 + $0x108] sm:$0xf]
    %v1601 = vld [vmem:[#allocation4 + $0x120] sm:$0xff]
    %v1602 = vld [vmem:[#allocation4 + $0x128] sm:$0xf]
    %v1603 = vld [vmem:[#allocation4 + $0x140] sm:$0xff]
    %v1604 = vld [vmem:[#allocation4 + $0x148] sm:$0xf]
    %v1605 = vld [vmem:[#allocation4 + $0x160] sm:$0xff]
    %v1606 = vld [vmem:[#allocation4 + $0x168] sm:$0xf]
    %v1607 = vld [vmem:[#allocation4 + $0x180] sm:$0xff]
    %v1608 = vld [vmem:[#allocation4 + $0x188] sm:$0xf]
    %v1609 = vld [vmem:[#allocation4 + $0x1a0] sm:$0xff]
    %v1610 = vld [vmem:[#allocation4 + $0x1a8] sm:$0xf]
    %v1611 = vld [vmem:[#allocation4 + $0x1c0] sm:$0xff]
    %v1612 = vld [vmem:[#allocation4 + $0x1c8] sm:$0xf]
    %v1613 = vld [vmem:[#allocation4 + $0x1e0] sm:$0xff]
    %v1614 = vld [vmem:[#allocation4 + $0x1e8] sm:$0xf]
    %v1615 = vpack.c.bf16 %v196, %v196
    %v1648 = vunpack.c.l.b16 %v1583
    %v1649 = vunpack.c.h.b16 %v1583
    %v1650 = vunpack.c.l.b16 %v1584
    %v1651 = vunpack.c.l.b16 %v1585
    %v1652 = vunpack.c.h.b16 %v1585
    %v1653 = vunpack.c.l.b16 %v1586
    %v1654 = vunpack.c.l.b16 %v1587
    %v1655 = vunpack.c.h.b16 %v1587
    %v1656 = vunpack.c.l.b16 %v1588
    %v1657 = vunpack.c.l.b16 %v1589
    %v1658 = vunpack.c.h.b16 %v1589
    %v1659 = vunpack.c.l.b16 %v1590
    %v1660 = vunpack.c.l.b16 %v1591
    %v1661 = vunpack.c.h.b16 %v1591
    %v1662 = vunpack.c.l.b16 %v1592
    %v1663 = vunpack.c.l.b16 %v1593
    %v1664 = vunpack.c.h.b16 %v1593
    %v1665 = vunpack.c.l.b16 %v1594
    %v1666 = vunpack.c.l.b16 %v1595
    %v1667 = vunpack.c.h.b16 %v1595
    %v1668 = vunpack.c.l.b16 %v1596
    %v1669 = vunpack.c.l.b16 %v1597
    %v1670 = vunpack.c.h.b16 %v1597
    %v1671 = vunpack.c.l.b16 %v1598
    %v1672 = vunpack.c.l.b16 %v1599
    %v1673 = vunpack.c.h.b16 %v1599
    %v1674 = vunpack.c.l.b16 %v1600
    %v1675 = vunpack.c.l.b16 %v1601
    %v1676 = vunpack.c.h.b16 %v1601
    %v1677 = vunpack.c.l.b16 %v1602
    %v1678 = vunpack.c.l.b16 %v1603
    %v1679 = vunpack.c.h.b16 %v1603
    %v1680 = vunpack.c.l.b16 %v1604
    %v1681 = vunpack.c.l.b16 %v1605
    %v1682 = vunpack.c.h.b16 %v1605
    %v1683 = vunpack.c.l.b16 %v1606
    %v1684 = vunpack.c.l.b16 %v1607
    %v1685 = vunpack.c.h.b16 %v1607
    %v1686 = vunpack.c.l.b16 %v1608
    %v1687 = vunpack.c.l.b16 %v1609
    %v1688 = vunpack.c.h.b16 %v1609
    %v1689 = vunpack.c.l.b16 %v1610
    %v1690 = vunpack.c.l.b16 %v1611
    %v1691 = vunpack.c.h.b16 %v1611
    %v1692 = vunpack.c.l.b16 %v1612
    %v1693 = vunpack.c.l.b16 %v1613
    %v1694 = vunpack.c.h.b16 %v1613
    %v1695 = vunpack.c.l.b16 %v1614
    %v1696 = vpack.c.b16 %v1651, %v1648
    %v1697 = vpack.c.b16 %v1652, %v1649
    %v1698 = vpack.c.b16 %v1653, %v1650
    %v1699 = vpack.c.b16 %v1657, %v1654
    %v1700 = vpack.c.b16 %v1658, %v1655
    %v1701 = vpack.c.b16 %v1659, %v1656
    %v1702 = vpack.c.b16 %v1663, %v1660
    %v1703 = vpack.c.b16 %v1664, %v1661
    %v1704 = vpack.c.b16 %v1665, %v1662
    %v1705 = vpack.c.b16 %v1669, %v1666
    %v1706 = vpack.c.b16 %v1670, %v1667
    %v1707 = vpack.c.b16 %v1671, %v1668
    %v1708 = vpack.c.b16 %v1675, %v1672
    %v1709 = vpack.c.b16 %v1676, %v1673
    %v1710 = vpack.c.b16 %v1677, %v1674
    %v1711 = vpack.c.b16 %v1681, %v1678
    %v1712 = vpack.c.b16 %v1682, %v1679
    %v1713 = vpack.c.b16 %v1683, %v1680
    %v1714 = vpack.c.b16 %v1687, %v1684
    %v1715 = vpack.c.b16 %v1688, %v1685
    %v1716 = vpack.c.b16 %v1689, %v1686
    %v1717 = vpack.c.b16 %v1693, %v1690
    %v1718 = vpack.c.b16 %v1694, %v1691
    %v1719 = vpack.c.b16 %v1695, %v1692
    %1744 = vmatpush.bf16.msra.mxu0 %v1717
    %1745 = vmatpush.bf16.msra.mxu0 %v1714
    %1746 = vmatpush.bf16.msra.mxu0 %v1711
    %1747 = vmatpush.bf16.msra.mxu0 %v1708
    %1748 = vmatpush.bf16.msra.mxu0 %v1705
    %1749 = vmatpush.bf16.msra.mxu0 %v1702
    %1750 = vmatpush.bf16.msra.mxu0 %v1699
    %1751 = vmatpush.bf16.msra.mxu0 %v1696
    %1752 = vmatmul.bf16.gmra.mxu0 %v1615
    %v1753 = vpop.f32.mrf.mxu0
    %v1754 = vadd.f32 0.0, %v1753
    %v1755 = vpop.f32.mrf.mxu0
    %1756 = vdwg.mxu0
    %1757 = vmatpush.bf16.msra.mxu0 %v1718
    %1758 = vmatpush.bf16.msra.mxu0 %v1715
    %1759 = vmatpush.bf16.msra.mxu0 %v1712
    %1760 = vmatpush.bf16.msra.mxu0 %v1709
    %1761 = vmatpush.bf16.msra.mxu0 %v1706
    %1762 = vmatpush.bf16.msra.mxu0 %v1703
    %1763 = vmatpush.bf16.msra.mxu0 %v1700
    %1764 = vmatpush.bf16.msra.mxu0 %v1697
    %1765 = vmatmul.bf16.gmra.mxu0 %v1615
    %v1766 = vpop.f32.mrf.mxu0
    %v1767 = vadd.f32 0.0, %v1766
    %v1768 = vpop.f32.mrf.mxu0
    %1769 = vdwg.mxu0
    %1770 = vmatpush.bf16.msra.mxu0 %v1719
    %1771 = vmatpush.bf16.msra.mxu0 %v1716
    %1772 = vmatpush.bf16.msra.mxu0 %v1713
    %1773 = vmatpush.bf16.msra.mxu0 %v1710
    %1774 = vmatpush.bf16.msra.mxu0 %v1707
    %1775 = vmatpush.bf16.msra.mxu0 %v1704
    %1776 = vmatpush.bf16.msra.mxu0 %v1701
    %1777 = vmatpush.bf16.msra.mxu0 %v1698
    %1778 = vmatmul.bf16.gmra.mxu0 %v1615
    %v1779 = vpop.f32.mrf.mxu0
    %v1780 = vadd.f32 0.0, %v1779
    %v1781 = vpop.f32.mrf.mxu0
    %1782 = vdwg.mxu0
    %v1783 = vld [vmem:[#allocation7] sm:$0x1]
    %v1784 = vperm.slane %v1783, 0
    %v1785 = vadd.f32 %v1754, %v1784
    %v1786 = vld [vmem:[#allocation7 + $0x1] sm:$0x1]
    %v1787 = vperm.slane %v1786, 0
    %v1788 = vadd.f32 %v1767, %v1787
    %v1789 = vld [vmem:[#allocation7 + $0x2] sm:$0x1]
    %v1790 = vperm.slane %v1789, 0
    %v1791 = vadd.f32 %v1780, %v1790
    %v1792 = vpack.c.bf16 %v1785, %v1785
    %v1793 = vpack.c.bf16 %v1788, %v1788
    %1794 = vmatpush.bf16.xpose.msra.mxu0 0
    %1795 = vmatpush.bf16.xpose.msra.mxu0 0
    %1796 = vmatpush.bf16.xpose.msra.mxu0 0
    %1797 = vmatpush.bf16.xpose.msra.mxu0 0
    %1798 = vmatpush.bf16.xpose.msra.mxu0 0
    %1799 = vmatpush.bf16.xpose.msra.mxu0 0
    %1800 = vmatpush.bf16.xpose.msra.mxu0 0
    %1801 = vmatpush.bf16.xpose.msra.mxu0 %v1793
    %1802 = vmatmul.bf16.gmra.mxu0 %v1792
    %v1803 = vpop.f32.mrf.mxu0
    %v1804 = vadd.f32 0.0, %v1803
    %v1805 = vpop.f32.mrf.mxu0
    %1806 = vdwg.mxu0
    %v1807 = vmul.f32 %v1804, 0.088388346
    %v1808 = vsel %vm422, %v1807, -inf
    %1809 = vmax.xlane.f32.xlu0 %v1808
    %v1810 = vpop.xlane.xlu0 %1809
    %v1811 = vsub.f32 %v1807, %v1810
    %v1812 = vmul.f32 %v1811, 1.442695
    %v1813 = vpow.pop %v1812
    %v1814 = vsel %vm422, %v1813, 0.0
    %1815 = vadd.xlane.f32.xlu0 %v1814
    %v1816 = vpop.xlane.xlu0 %1815
    %v1817 = vrcp.pop %v1816
    %v1818 = vmul.f32 %v1813, %v1817
    %v1819 = vpack.c.bf16 %v1818, %v1818
    %v1820 = vpack.c.bf16 %v1791, %v1791
    %v1822 = vsel %vm422, %v1819, 0
    %v1825 = vsel %vm439, %v1820, 0
    %1827 = vmatpush.bf16.msra.mxu0 0
    %1828 = vmatpush.bf16.msra.mxu0 0
    %1829 = vmatpush.bf16.msra.mxu0 0
    %1830 = vmatpush.bf16.msra.mxu0 0
    %1831 = vmatpush.bf16.msra.mxu0 0
    %1832 = vmatpush.bf16.msra.mxu0 0
    %1833 = vmatpush.bf16.msra.mxu0 0
    %1834 = vmatpush.bf16.msra.mxu0 %v1825
    %1835 = vmatmul.bf16.gmra.mxu0 %v1822
    %v1836 = vpop.f32.mrf.mxu0
    %v1837 = vadd.f32 0.0, %v1836
    %v1838 = vpop.f32.mrf.mxu0
    %1839 = vdwg.mxu0
    %v1840 = vld [vmem:[#allocation4 + $0xc] sm:$0xf]
    %v1841 = vld [vmem:[#allocation4 + $0x2c] sm:$0xf]
    %v1842 = vld [vmem:[#allocation4 + $0x4c] sm:$0xf]
    %v1843 = vld [vmem:[#allocation4 + $0x6c] sm:$0xf]
    %v1844 = vld [vmem:[#allocation4 + $0x8c] sm:$0xf]
    %v1845 = vld [vmem:[#allocation4 + $0xac] sm:$0xf]
    %v1846 = vld [vmem:[#allocation4 + $0xcc] sm:$0xf]
    %v1847 = vld [vmem:[#allocation4 + $0xec] sm:$0xf]
    %v1848 = vld [vmem:[#allocation4 + $0x10c] sm:$0xf]
    %v1849 = vld [vmem:[#allocation4 + $0x12c] sm:$0xf]
    %v1850 = vld [vmem:[#allocation4 + $0x14c] sm:$0xf]
    %v1851 = vld [vmem:[#allocation4 + $0x16c] sm:$0xf]
    %v1852 = vld [vmem:[#allocation4 + $0x18c] sm:$0xf]
    %v1853 = vld [vmem:[#allocation4 + $0x1ac] sm:$0xf]
    %v1854 = vld [vmem:[#allocation4 + $0x1cc] sm:$0xf]
    %v1855 = vld [vmem:[#allocation4 + $0x1ec] sm:$0xf]
    %v1856 = vpack.c.bf16 %v1837, %v1837
    %v1857 = vld [vmem:[#allocation7 + $0x3] sm:$0x1]
    %v1858 = vperm.slane %v1857, 0
    %v1875 = vunpack.c.l.b16 %v1840
    %v1876 = vunpack.c.l.b16 %v1841
    %v1877 = vunpack.c.l.b16 %v1842
    %v1878 = vunpack.c.l.b16 %v1843
    %v1879 = vunpack.c.l.b16 %v1844
    %v1880 = vunpack.c.l.b16 %v1845
    %v1881 = vunpack.c.l.b16 %v1846
    %v1882 = vunpack.c.l.b16 %v1847
    %v1883 = vunpack.c.l.b16 %v1848
    %v1884 = vunpack.c.l.b16 %v1849
    %v1885 = vunpack.c.l.b16 %v1850
    %v1886 = vunpack.c.l.b16 %v1851
    %v1887 = vunpack.c.l.b16 %v1852
    %v1888 = vunpack.c.l.b16 %v1853
    %v1889 = vunpack.c.l.b16 %v1854
    %v1890 = vunpack.c.l.b16 %v1855
    %v1891 = vpack.c.b16 %v1876, %v1875
    %v1892 = vpack.c.b16 %v1878, %v1877
    %v1893 = vpack.c.b16 %v1880, %v1879
    %v1894 = vpack.c.b16 %v1882, %v1881
    %v1895 = vpack.c.b16 %v1884, %v1883
    %v1896 = vpack.c.b16 %v1886, %v1885
    %v1897 = vpack.c.b16 %v1888, %v1887
    %v1898 = vpack.c.b16 %v1890, %v1889
    %1907 = vmatpush.bf16.msra.mxu0 %v1898
    %1908 = vmatpush.bf16.msra.mxu0 %v1897
    %1909 = vmatpush.bf16.msra.mxu0 %v1896
    %1910 = vmatpush.bf16.msra.mxu0 %v1895
    %1911 = vmatpush.bf16.msra.mxu0 %v1894
    %1912 = vmatpush.bf16.msra.mxu0 %v1893
    %1913 = vmatpush.bf16.msra.mxu0 %v1892
    %1914 = vmatpush.bf16.msra.mxu0 %v1891
    %1915 = vmatmul.bf16.gmra.mxu0 %v1856
    %v1916 = vpop.f32.mrf.mxu0
    %v1917 = vadd.f32 %v1858, %v1916
    %v1918 = vpop.f32.mrf.mxu0
    %1919 = vdwg.mxu0
    %v1920 = vadd.f32 %v196, %v1917
    %v1921 = vld [vmem:[#allocation7 + $0x4] sm:$0x1]
    %v1922 = vld [vmem:[#allocation7 + $0x5] sm:$0x1]
    %1923 = vadd.xlane.f32.xlu0 %v1920
    %v1924 = vpop.xlane.xlu0 %1923
    %v1925 = vmul.f32 %v1924, %v547
    %v1926 = vsub.f32 %v1920, %v1925
    %v1927 = vmul.f32 %v1926, %v1926
    %1928 = vadd.xlane.f32.xlu0 %v1927
    %v1929 = vpop.xlane.xlu0 %1928
    %v1930 = vmul.f32 %v1929, %v547
    %v1931 = vadd.f32 %v1930, 1e-05
    %v1932 = vrsqrt.pop %v1931
    %v1933 = vmul.f32 %v1932, %v1931
    %v1934 = vmul.f32 %v1933, %v1932
    %v1935 = vmul.f32 0.5, %v1934
    %v1936 = vsub.f32 1.5, %v1935
    %v1937 = vmul.f32 %v1932, %v1936
    %vm1938 = vweird.f32 %v1931
    %vm1939 = vweird.f32 %v1932
    %vm1940 = vmor %vm1938, %vm1939
    %v1941 = vsel %vm1940, %v1932, %v1937
    %v1942 = vmul.f32 %v1926, %v1941
    %v1943 = vperm.slane %v1921, 0
    %v1944 = vmul.f32 %v1942, %v1943
    %v1945 = vperm.slane %v1922, 0
    %v1946 = vadd.f32 %v1944, %v1945
    %v1947 = vld [vmem:[#allocation4 + $0x10] sm:$0xf]
    %v1948 = vld [vmem:[#allocation4 + $0x30] sm:$0xf]
    %v1949 = vld [vmem:[#allocation4 + $0x50] sm:$0xf]
    %v1950 = vld [vmem:[#allocation4 + $0x70] sm:$0xf]
    %v1951 = vld [vmem:[#allocation4 + $0x90] sm:$0xf]
    %v1952 = vld [vmem:[#allocation4 + $0xb0] sm:$0xf]
    %v1953 = vld [vmem:[#allocation4 + $0xd0] sm:$0xf]
    %v1954 = vld [vmem:[#allocation4 + $0xf0] sm:$0xf]
    %v1955 = vld [vmem:[#allocation4 + $0x110] sm:$0xf]
    %v1956 = vld [vmem:[#allocation4 + $0x130] sm:$0xf]
    %v1957 = vld [vmem:[#allocation4 + $0x150] sm:$0xf]
    %v1958 = vld [vmem:[#allocation4 + $0x170] sm:$0xf]
    %v1959 = vld [vmem:[#allocation4 + $0x190] sm:$0xf]
    %v1960 = vld [vmem:[#allocation4 + $0x1b0] sm:$0xf]
    %v1961 = vld [vmem:[#allocation4 + $0x1d0] sm:$0xf]
    %v1962 = vld [vmem:[#allocation4 + $0x1f0] sm:$0xf]
    %v1963 = vpack.c.bf16 %v1946, %v1946
    %v1964 = vld [vmem:[#allocation7 + $0x6] sm:$0x1]
    %v1965 = vperm.slane %v1964, 0
    %v1982 = vunpack.c.l.b16 %v1947
    %v1983 = vunpack.c.l.b16 %v1948
    %v1984 = vunpack.c.l.b16 %v1949
    %v1985 = vunpack.c.l.b16 %v1950
    %v1986 = vunpack.c.l.b16 %v1951
    %v1987 = vunpack.c.l.b16 %v1952
    %v1988 = vunpack.c.l.b16 %v1953
    %v1989 = vunpack.c.l.b16 %v1954
    %v1990 = vunpack.c.l.b16 %v1955
    %v1991 = vunpack.c.l.b16 %v1956
    %v1992 = vunpack.c.l.b16 %v1957
    %v1993 = vunpack.c.l.b16 %v1958
    %v1994 = vunpack.c.l.b16 %v1959
    %v1995 = vunpack.c.l.b16 %v1960
    %v1996 = vunpack.c.l.b16 %v1961
    %v1997 = vunpack.c.l.b16 %v1962
    %v1998 = vpack.c.b16 %v1983, %v1982
    %v1999 = vpack.c.b16 %v1985, %v1984
    %v2000 = vpack.c.b16 %v1987, %v1986
    %v2001 = vpack.c.b16 %v1989, %v1988
    %v2002 = vpack.c.b16 %v1991, %v1990
    %v2003 = vpack.c.b16 %v1993, %v1992
    %v2004 = vpack.c.b16 %v1995, %v1994
    %v2005 = vpack.c.b16 %v1997, %v1996
    %2014 = vmatpush.bf16.msra.mxu0 %v2005
    %2015 = vmatpush.bf16.msra.mxu0 %v2004
    %2016 = vmatpush.bf16.msra.mxu0 %v2003
    %2017 = vmatpush.bf16.msra.mxu0 %v2002
    %2018 = vmatpush.bf16.msra.mxu0 %v2001
    %2019 = vmatpush.bf16.msra.mxu0 %v2000
    %2020 = vmatpush.bf16.msra.mxu0 %v1999
    %2021 = vmatpush.bf16.msra.mxu0 %v1998
    %2022 = vmatmul.bf16.gmra.mxu0 %v1963
    %v2023 = vpop.f32.mrf.mxu0
    %v2024 = vadd.f32 %v1965, %v2023
    %v2025 = vpop.f32.mrf.mxu0
    %2026 = vdwg.mxu0
    %v2027 = vld [vmem:[#allocation7 + $0xe] sm:$0x1]
    %v2028 = vperm.slane %v2027, 0
    %v2029 = vadd.f32 %v1541, %v2028
    %v2030 = vld [vmem:[#allocation7 + $0xf] sm:$0x1]
    %v2031 = vperm.slane %v2030, 0
    %v2032 = vadd.f32 %v1554, %v2031
    %v2033 = vpack.c.bf16 %v2024, %v2024
    %v2034 = vpack.c.bf16 %v2029, %v2029
    %2035 = vmatpush.bf16.xpose.msra.mxu0 0
    %2036 = vmatpush.bf16.xpose.msra.mxu0 0
    %2037 = vmatpush.bf16.xpose.msra.mxu0 0
    %2038 = vmatpush.bf16.xpose.msra.mxu0 0
    %2039 = vmatpush.bf16.xpose.msra.mxu0 0
    %2040 = vmatpush.bf16.xpose.msra.mxu0 0
    %2041 = vmatpush.bf16.xpose.msra.mxu0 0
    %2042 = vmatpush.bf16.xpose.msra.mxu0 %v2034
    %2043 = vmatmul.bf16.gmra.mxu0 %v2033
    %v2044 = vpop.f32.mrf.mxu0
    %v2045 = vadd.f32 0.0, %v2044
    %v2046 = vpop.f32.mrf.mxu0
    %2047 = vdwg.mxu0
    %v2048 = vmul.f32 %v2045, 0.088388346
    %v2049 = vsel %vm422, %v2048, -inf
    %2050 = vmax.xlane.f32.xlu0 %v2049
    %v2051 = vpop.xlane.xlu0 %2050
    %v2052 = vsub.f32 %v2048, %v2051
    %v2053 = vmul.f32 %v2052, 1.442695
    %v2054 = vpow.pop %v2053
    %v2055 = vsel %vm422, %v2054, 0.0
    %2056 = vadd.xlane.f32.xlu0 %v2055
    %v2057 = vpop.xlane.xlu0 %2056
    %v2058 = vrcp.pop %v2057
    %v2059 = vmul.f32 %v2054, %v2058
    %v2060 = vpack.c.bf16 %v2059, %v2059
    %v2061 = vpack.c.bf16 %v2032, %v2032
    %v2063 = vsel %vm422, %v2060, 0
    %v2066 = vsel %vm439, %v2061, 0
    %2068 = vmatpush.bf16.msra.mxu0 0
    %2069 = vmatpush.bf16.msra.mxu0 0
    %2070 = vmatpush.bf16.msra.mxu0 0
    %2071 = vmatpush.bf16.msra.mxu0 0
    %2072 = vmatpush.bf16.msra.mxu0 0
    %2073 = vmatpush.bf16.msra.mxu0 0
    %2074 = vmatpush.bf16.msra.mxu0 0
    %2075 = vmatpush.bf16.msra.mxu0 %v2066
    %2076 = vmatmul.bf16.gmra.mxu0 %v2063
    %v2077 = vpop.f32.mrf.mxu0
    %v2078 = vadd.f32 0.0, %v2077
    %v2079 = vpop.f32.mrf.mxu0
    %2080 = vdwg.mxu0
    %v2081 = vld [vmem:[#allocation4 + $0x14] sm:$0xf]
    %v2082 = vld [vmem:[#allocation4 + $0x34] sm:$0xf]
    %v2083 = vld [vmem:[#allocation4 + $0x54] sm:$0xf]
    %v2084 = vld [vmem:[#allocation4 + $0x74] sm:$0xf]
    %v2085 = vld [vmem:[#allocation4 + $0x94] sm:$0xf]
    %v2086 = vld [vmem:[#allocation4 + $0xb4] sm:$0xf]
    %v2087 = vld [vmem:[#allocation4 + $0xd4] sm:$0xf]
    %v2088 = vld [vmem:[#allocation4 + $0xf4] sm:$0xf]
    %v2089 = vld [vmem:[#allocation4 + $0x114] sm:$0xf]
    %v2090 = vld [vmem:[#allocation4 + $0x134] sm:$0xf]
    %v2091 = vld [vmem:[#allocation4 + $0x154] sm:$0xf]
    %v2092 = vld [vmem:[#allocation4 + $0x174] sm:$0xf]
    %v2093 = vld [vmem:[#allocation4 + $0x194] sm:$0xf]
    %v2094 = vld [vmem:[#allocation4 + $0x1b4] sm:$0xf]
    %v2095 = vld [vmem:[#allocation4 + $0x1d4] sm:$0xf]
    %v2096 = vld [vmem:[#allocation4 + $0x1f4] sm:$0xf]
    %v2097 = vpack.c.bf16 %v2078, %v2078
    %v2098 = vld [vmem:[#allocation7 + $0x7] sm:$0x1]
    %v2099 = vperm.slane %v2098, 0
    %v2116 = vunpack.c.l.b16 %v2081
    %v2117 = vunpack.c.l.b16 %v2082
    %v2118 = vunpack.c.l.b16 %v2083
    %v2119 = vunpack.c.l.b16 %v2084
    %v2120 = vunpack.c.l.b16 %v2085
    %v2121 = vunpack.c.l.b16 %v2086
    %v2122 = vunpack.c.l.b16 %v2087
    %v2123 = vunpack.c.l.b16 %v2088
    %v2124 = vunpack.c.l.b16 %v2089
    %v2125 = vunpack.c.l.b16 %v2090
    %v2126 = vunpack.c.l.b16 %v2091
    %v2127 = vunpack.c.l.b16 %v2092
    %v2128 = vunpack.c.l.b16 %v2093
    %v2129 = vunpack.c.l.b16 %v2094
    %v2130 = vunpack.c.l.b16 %v2095
    %v2131 = vunpack.c.l.b16 %v2096
    %v2132 = vpack.c.b16 %v2117, %v2116
    %v2133 = vpack.c.b16 %v2119, %v2118
    %v2134 = vpack.c.b16 %v2121, %v2120
    %v2135 = vpack.c.b16 %v2123, %v2122
    %v2136 = vpack.c.b16 %v2125, %v2124
    %v2137 = vpack.c.b16 %v2127, %v2126
    %v2138 = vpack.c.b16 %v2129, %v2128
    %v2139 = vpack.c.b16 %v2131, %v2130
    %2148 = vmatpush.bf16.msra.mxu0 %v2139
    %2149 = vmatpush.bf16.msra.mxu0 %v2138
    %2150 = vmatpush.bf16.msra.mxu0 %v2137
    %2151 = vmatpush.bf16.msra.mxu0 %v2136
    %2152 = vmatpush.bf16.msra.mxu0 %v2135
    %2153 = vmatpush.bf16.msra.mxu0 %v2134
    %2154 = vmatpush.bf16.msra.mxu0 %v2133
    %2155 = vmatpush.bf16.msra.mxu0 %v2132
    %2156 = vmatmul.bf16.gmra.mxu0 %v2097
    %v2157 = vpop.f32.mrf.mxu0
    %v2158 = vadd.f32 %v2099, %v2157
    %v2159 = vpop.f32.mrf.mxu0
    %2160 = vdwg.mxu0
    %v2161 = vadd.f32 %v1946, %v2158
    %v2162 = vld [vmem:[#allocation7 + $0x8] sm:$0x1]
    %v2163 = vld [vmem:[#allocation7 + $0x9] sm:$0x1]
    %2164 = vadd.xlane.f32.xlu0 %v2161
    %v2165 = vpop.xlane.xlu0 %2164
    %v2166 = vmul.f32 %v2165, %v547
    %v2167 = vsub.f32 %v2161, %v2166
    %v2168 = vmul.f32 %v2167, %v2167
    %2169 = vadd.xlane.f32.xlu0 %v2168
    %v2170 = vpop.xlane.xlu0 %2169
    %v2171 = vmul.f32 %v2170, %v547
    %v2172 = vadd.f32 %v2171, 1e-05
    %v2173 = vrsqrt.pop %v2172
    %v2174 = vmul.f32 %v2173, %v2172
    %v2175 = vmul.f32 %v2174, %v2173
    %v2176 = vmul.f32 0.5, %v2175
    %v2177 = vsub.f32 1.5, %v2176
    %v2178 = vmul.f32 %v2173, %v2177
    %vm2179 = vweird.f32 %v2172
    %vm2180 = vweird.f32 %v2173
    %vm2181 = vmor %vm2179, %vm2180
    %v2182 = vsel %vm2181, %v2173, %v2178
    %v2183 = vmul.f32 %v2167, %v2182
    %v2184 = vperm.slane %v2162, 0
    %v2185 = vmul.f32 %v2183, %v2184
    %v2186 = vperm.slane %v2163, 0
    %v2187 = vadd.f32 %v2185, %v2186
    %v2188 = vld [vmem:[#allocation4 + $0x18] sm:$0xf]
    %v2189 = vld [vmem:[#allocation4 + $0x38] sm:$0xf]
    %v2190 = vld [vmem:[#allocation4 + $0x58] sm:$0xf]
    %v2191 = vld [vmem:[#allocation4 + $0x78] sm:$0xf]
    %v2192 = vld [vmem:[#allocation4 + $0x98] sm:$0xf]
    %v2193 = vld [vmem:[#allocation4 + $0xb8] sm:$0xf]
    %v2194 = vld [vmem:[#allocation4 + $0xd8] sm:$0xf]
    %v2195 = vld [vmem:[#allocation4 + $0xf8] sm:$0xf]
    %v2196 = vld [vmem:[#allocation4 + $0x118] sm:$0xf]
    %v2197 = vld [vmem:[#allocation4 + $0x138] sm:$0xf]
    %v2198 = vld [vmem:[#allocation4 + $0x158] sm:$0xf]
    %v2199 = vld [vmem:[#allocation4 + $0x178] sm:$0xf]
    %v2200 = vld [vmem:[#allocation4 + $0x198] sm:$0xf]
    %v2201 = vld [vmem:[#allocation4 + $0x1b8] sm:$0xf]
    %v2202 = vld [vmem:[#allocation4 + $0x1d8] sm:$0xf]
    %v2203 = vld [vmem:[#allocation4 + $0x1f8] sm:$0xf]
    %v2204 = vpack.c.bf16 %v2187, %v2187
    %v2205 = vld [vmem:[#allocation7 + $0xa] sm:$0x1]
    %v2206 = vperm.slane %v2205, 0
    %v2223 = vunpack.c.l.b16 %v2188
    %v2224 = vunpack.c.l.b16 %v2189
    %v2225 = vunpack.c.l.b16 %v2190
    %v2226 = vunpack.c.l.b16 %v2191
    %v2227 = vunpack.c.l.b16 %v2192
    %v2228 = vunpack.c.l.b16 %v2193
    %v2229 = vunpack.c.l.b16 %v2194
    %v2230 = vunpack.c.l.b16 %v2195
    %v2231 = vunpack.c.l.b16 %v2196
    %v2232 = vunpack.c.l.b16 %v2197
    %v2233 = vunpack.c.l.b16 %v2198
    %v2234 = vunpack.c.l.b16 %v2199
    %v2235 = vunpack.c.l.b16 %v2200
    %v2236 = vunpack.c.l.b16 %v2201
    %v2237 = vunpack.c.l.b16 %v2202
    %v2238 = vunpack.c.l.b16 %v2203
    %v2239 = vpack.c.b16 %v2224, %v2223
    %v2240 = vpack.c.b16 %v2226, %v2225
    %v2241 = vpack.c.b16 %v2228, %v2227
    %v2242 = vpack.c.b16 %v2230, %v2229
    %v2243 = vpack.c.b16 %v2232, %v2231
    %v2244 = vpack.c.b16 %v2234, %v2233
    %v2245 = vpack.c.b16 %v2236, %v2235
    %v2246 = vpack.c.b16 %v2238, %v2237
    %2255 = vmatpush.bf16.msra.mxu0 %v2246
    %2256 = vmatpush.bf16.msra.mxu0 %v2245
    %2257 = vmatpush.bf16.msra.mxu0 %v2244
    %2258 = vmatpush.bf16.msra.mxu0 %v2243
    %2259 = vmatpush.bf16.msra.mxu0 %v2242
    %2260 = vmatpush.bf16.msra.mxu0 %v2241
    %2261 = vmatpush.bf16.msra.mxu0 %v2240
    %2262 = vmatpush.bf16.msra.mxu0 %v2239
    %2263 = vmatmul.bf16.gmra.mxu0 %v2204
    %v2264 = vpop.f32.mrf.mxu0
    %v2265 = vadd.f32 %v2206, %v2264
    %v2266 = vpop.f32.mrf.mxu0
    %2267 = vdwg.mxu0
    %v2268 = vmax.f32 %v2265, 0.0
    %v2269 = vld [vmem:[#allocation4 + $0x1c] sm:$0xf]
    %v2270 = vld [vmem:[#allocation4 + $0x3c] sm:$0xf]
    %v2271 = vld [vmem:[#allocation4 + $0x5c] sm:$0xf]
    %v2272 = vld [vmem:[#allocation4 + $0x7c] sm:$0xf]
    %v2273 = vld [vmem:[#allocation4 + $0x9c] sm:$0xf]
    %v2274 = vld [vmem:[#allocation4 + $0xbc] sm:$0xf]
    %v2275 = vld [vmem:[#allocation4 + $0xdc] sm:$0xf]
    %v2276 = vld [vmem:[#allocation4 + $0xfc] sm:$0xf]
    %v2277 = vld [vmem:[#allocation4 + $0x11c] sm:$0xf]
    %v2278 = vld [vmem:[#allocation4 + $0x13c] sm:$0xf]
    %v2279 = vld [vmem:[#allocation4 + $0x15c] sm:$0xf]
    %v2280 = vld [vmem:[#allocation4 + $0x17c] sm:$0xf]
    %v2281 = vld [vmem:[#allocation4 + $0x19c] sm:$0xf]
    %v2282 = vld [vmem:[#allocation4 + $0x1bc] sm:$0xf]
    %v2283 = vld [vmem:[#allocation4 + $0x1dc] sm:$0xf]
    %v2284 = vld [vmem:[#allocation4 + $0x1fc] sm:$0xf]
    %v2285 = vpack.c.bf16 %v2268, %v2268
    %v2286 = vld [vmem:[#allocation7 + $0xb] sm:$0x1]
    %v2287 = vperm.slane %v2286, 0
    %v2304 = vunpack.c.l.b16 %v2269
    %v2305 = vunpack.c.l.b16 %v2270
    %v2306 = vunpack.c.l.b16 %v2271
    %v2307 = vunpack.c.l.b16 %v2272
    %v2308 = vunpack.c.l.b16 %v2273
    %v2309 = vunpack.c.l.b16 %v2274
    %v2310 = vunpack.c.l.b16 %v2275
    %v2311 = vunpack.c.l.b16 %v2276
    %v2312 = vunpack.c.l.b16 %v2277
    %v2313 = vunpack.c.l.b16 %v2278
    %v2314 = vunpack.c.l.b16 %v2279
    %v2315 = vunpack.c.l.b16 %v2280
    %v2316 = vunpack.c.l.b16 %v2281
    %v2317 = vunpack.c.l.b16 %v2282
    %v2318 = vunpack.c.l.b16 %v2283
    %v2319 = vunpack.c.l.b16 %v2284
    %v2320 = vpack.c.b16 %v2305, %v2304
    %v2321 = vpack.c.b16 %v2307, %v2306
    %v2322 = vpack.c.b16 %v2309, %v2308
    %v2323 = vpack.c.b16 %v2311, %v2310
    %v2324 = vpack.c.b16 %v2313, %v2312
    %v2325 = vpack.c.b16 %v2315, %v2314
    %v2326 = vpack.c.b16 %v2317, %v2316
    %v2327 = vpack.c.b16 %v2319, %v2318
    %2336 = vmatpush.bf16.msra.mxu0 %v2327
    %2337 = vmatpush.bf16.msra.mxu0 %v2326
    %2338 = vmatpush.bf16.msra.mxu0 %v2325
    %2339 = vmatpush.bf16.msra.mxu0 %v2324
    %2340 = vmatpush.bf16.msra.mxu0 %v2323
    %2341 = vmatpush.bf16.msra.mxu0 %v2322
    %2342 = vmatpush.bf16.msra.mxu0 %v2321
    %2343 = vmatpush.bf16.msra.mxu0 %v2320
    %2344 = vmatmul.bf16.gmra.mxu0 %v2285
    %v2345 = vpop.f32.mrf.mxu0
    %v2346 = vadd.f32 %v2287, %v2345
    %v2347 = vpop.f32.mrf.mxu0
    %2348 = vdwg.mxu0
    %v2349 = vadd.f32 %v2187, %v2346
    %v2350 = vld [vmem:[#allocation7 + $0xc] sm:$0x1]
    %v2351 = vld [vmem:[#allocation7 + $0xd] sm:$0x1]
    %2352 = vadd.xlane.f32.xlu0 %v2349
    %v2353 = vpop.xlane.xlu0 %2352
    %v2354 = vmul.f32 %v2353, %v547
    %v2355 = vsub.f32 %v2349, %v2354
    %v2356 = vmul.f32 %v2355, %v2355
    %2357 = vadd.xlane.f32.xlu0 %v2356
    %v2358 = vpop.xlane.xlu0 %2357
    %v2359 = vmul.f32 %v2358, %v547
    %v2360 = vadd.f32 %v2359, 1e-05
    %v2361 = vrsqrt.pop %v2360
    %v2362 = vmul.f32 %v2361, %v2360
    %v2363 = vmul.f32 %v2362, %v2361
    %v2364 = vmul.f32 0.5, %v2363
    %v2365 = vsub.f32 1.5, %v2364
    %v2366 = vmul.f32 %v2361, %v2365
    %vm2367 = vweird.f32 %v2360
    %vm2368 = vweird.f32 %v2361
    %vm2369 = vmor %vm2367, %vm2368
    %v2370 = vsel %vm2369, %v2361, %v2366
    %v2371 = vmul.f32 %v2355, %v2370
    %v2372 = vperm.slane %v2350, 0
    %v2373 = vmul.f32 %v2371, %v2372
    %v2374 = vperm.slane %v2351, 0
    %v2375 = vadd.f32 %v2373, %v2374
    %s2376 = scalar_lea.vmem [#allocation4], 512
    %v2377 = vld [vmem:[%s2376] sm:$0xff]
    %v2378 = vld [vmem:[%s2376 + $0x8] sm:$0xf]
    %v2379 = vld [vmem:[%s2376 + $0x20] sm:$0xff]
    %v2380 = vld [vmem:[%s2376 + $0x28] sm:$0xf]
    %v2381 = vld [vmem:[%s2376 + $0x40] sm:$0xff]
    %v2382 = vld [vmem:[%s2376 + $0x48] sm:$0xf]
    %v2383 = vld [vmem:[%s2376 + $0x60] sm:$0xff]
    %v2384 = vld [vmem:[%s2376 + $0x68] sm:$0xf]
    %v2385 = vld [vmem:[%s2376 + $0x80] sm:$0xff]
    %v2386 = vld [vmem:[%s2376 + $0x88] sm:$0xf]
    %v2387 = vld [vmem:[%s2376 + $0xa0] sm:$0xff]
    %v2388 = vld [vmem:[%s2376 + $0xa8] sm:$0xf]
    %v2389 = vld [vmem:[%s2376 + $0xc0] sm:$0xff]
    %v2390 = vld [vmem:[%s2376 + $0xc8] sm:$0xf]
    %v2391 = vld [vmem:[%s2376 + $0xe0] sm:$0xff]
    %v2392 = vld [vmem:[%s2376 + $0xe8] sm:$0xf]
    %v2393 = vld [vmem:[%s2376 + $0x100] sm:$0xff]
    %v2394 = vld [vmem:[%s2376 + $0x108] sm:$0xf]
    %v2395 = vld [vmem:[%s2376 + $0x120] sm:$0xff]
    %v2396 = vld [vmem:[%s2376 + $0x128] sm:$0xf]
    %v2397 = vld [vmem:[%s2376 + $0x140] sm:$0xff]
    %v2398 = vld [vmem:[%s2376 + $0x148] sm:$0xf]
    %v2399 = vld [vmem:[%s2376 + $0x160] sm:$0xff]
    %v2400 = vld [vmem:[%s2376 + $0x168] sm:$0xf]
    %v2401 = vld [vmem:[%s2376 + $0x180] sm:$0xff]
    %v2402 = vld [vmem:[%s2376 + $0x188] sm:$0xf]
    %v2403 = vld [vmem:[%s2376 + $0x1a0] sm:$0xff]
    %v2404 = vld [vmem:[%s2376 + $0x1a8] sm:$0xf]
    %v2405 = vld [vmem:[%s2376 + $0x1c0] sm:$0xff]
    %v2406 = vld [vmem:[%s2376 + $0x1c8] sm:$0xf]
    %v2407 = vld [vmem:[%s2376 + $0x1e0] sm:$0xff]
    %v2408 = vld [vmem:[%s2376 + $0x1e8] sm:$0xf]
    %v2409 = vpack.c.bf16 %v2375, %v2375
    %v2442 = vunpack.c.l.b16 %v2377
    %v2443 = vunpack.c.h.b16 %v2377
    %v2444 = vunpack.c.l.b16 %v2378
    %v2445 = vunpack.c.l.b16 %v2379
    %v2446 = vunpack.c.h.b16 %v2379
    %v2447 = vunpack.c.l.b16 %v2380
    %v2448 = vunpack.c.l.b16 %v2381
    %v2449 = vunpack.c.h.b16 %v2381
    %v2450 = vunpack.c.l.b16 %v2382
    %v2451 = vunpack.c.l.b16 %v2383
    %v2452 = vunpack.c.h.b16 %v2383
    %v2453 = vunpack.c.l.b16 %v2384
    %v2454 = vunpack.c.l.b16 %v2385
    %v2455 = vunpack.c.h.b16 %v2385
    %v2456 = vunpack.c.l.b16 %v2386
    %v2457 = vunpack.c.l.b16 %v2387
    %v2458 = vunpack.c.h.b16 %v2387
    %v2459 = vunpack.c.l.b16 %v2388
    %v2460 = vunpack.c.l.b16 %v2389
    %v2461 = vunpack.c.h.b16 %v2389
    %v2462 = vunpack.c.l.b16 %v2390
    %v2463 = vunpack.c.l.b16 %v2391
    %v2464 = vunpack.c.h.b16 %v2391
    %v2465 = vunpack.c.l.b16 %v2392
    %v2466 = vunpack.c.l.b16 %v2393
    %v2467 = vunpack.c.h.b16 %v2393
    %v2468 = vunpack.c.l.b16 %v2394
    %v2469 = vunpack.c.l.b16 %v2395
    %v2470 = vunpack.c.h.b16 %v2395
    %v2471 = vunpack.c.l.b16 %v2396
    %v2472 = vunpack.c.l.b16 %v2397
    %v2473 = vunpack.c.h.b16 %v2397
    %v2474 = vunpack.c.l.b16 %v2398
    %v2475 = vunpack.c.l.b16 %v2399
    %v2476 = vunpack.c.h.b16 %v2399
    %v2477 = vunpack.c.l.b16 %v2400
    %v2478 = vunpack.c.l.b16 %v2401
    %v2479 = vunpack.c.h.b16 %v2401
    %v2480 = vunpack.c.l.b16 %v2402
    %v2481 = vunpack.c.l.b16 %v2403
    %v2482 = vunpack.c.h.b16 %v2403
    %v2483 = vunpack.c.l.b16 %v2404
    %v2484 = vunpack.c.l.b16 %v2405
    %v2485 = vunpack.c.h.b16 %v2405
    %v2486 = vunpack.c.l.b16 %v2406
    %v2487 = vunpack.c.l.b16 %v2407
    %v2488 = vunpack.c.h.b16 %v2407
    %v2489 = vunpack.c.l.b16 %v2408
    %v2490 = vpack.c.b16 %v2445, %v2442
    %v2491 = vpack.c.b16 %v2446, %v2443
    %v2492 = vpack.c.b16 %v2447, %v2444
    %v2493 = vpack.c.b16 %v2451, %v2448
    %v2494 = vpack.c.b16 %v2452, %v2449
    %v2495 = vpack.c.b16 %v2453, %v2450
    %v2496 = vpack.c.b16 %v2457, %v2454
    %v2497 = vpack.c.b16 %v2458, %v2455
    %v2498 = vpack.c.b16 %v2459, %v2456
    %v2499 = vpack.c.b16 %v2463, %v2460
    %v2500 = vpack.c.b16 %v2464, %v2461
    %v2501 = vpack.c.b16 %v2465, %v2462
    %v2502 = vpack.c.b16 %v2469, %v2466
    %v2503 = vpack.c.b16 %v2470, %v2467
    %v2504 = vpack.c.b16 %v2471, %v2468
    %v2505 = vpack.c.b16 %v2475, %v2472
    %v2506 = vpack.c.b16 %v2476, %v2473
    %v2507 = vpack.c.b16 %v2477, %v2474
    %v2508 = vpack.c.b16 %v2481, %v2478
    %v2509 = vpack.c.b16 %v2482, %v2479
    %v2510 = vpack.c.b16 %v2483, %v2480
    %v2511 = vpack.c.b16 %v2487, %v2484
    %v2512 = vpack.c.b16 %v2488, %v2485
    %v2513 = vpack.c.b16 %v2489, %v2486
    %2538 = vmatpush.bf16.msra.mxu0 %v2511
    %2539 = vmatpush.bf16.msra.mxu0 %v2508
    %2540 = vmatpush.bf16.msra.mxu0 %v2505
    %2541 = vmatpush.bf16.msra.mxu0 %v2502
    %2542 = vmatpush.bf16.msra.mxu0 %v2499
    %2543 = vmatpush.bf16.msra.mxu0 %v2496
    %2544 = vmatpush.bf16.msra.mxu0 %v2493
    %2545 = vmatpush.bf16.msra.mxu0 %v2490
    %2546 = vmatmul.bf16.gmra.mxu0 %v2409
    %v2547 = vpop.f32.mrf.mxu0
    %v2548 = vadd.f32 0.0, %v2547
    %v2549 = vpop.f32.mrf.mxu0
    %2550 = vdwg.mxu0
    %2551 = vmatpush.bf16.msra.mxu0 %v2512
    %2552 = vmatpush.bf16.msra.mxu0 %v2509
    %2553 = vmatpush.bf16.msra.mxu0 %v2506
    %2554 = vmatpush.bf16.msra.mxu0 %v2503
    %2555 = vmatpush.bf16.msra.mxu0 %v2500
    %2556 = vmatpush.bf16.msra.mxu0 %v2497
    %2557 = vmatpush.bf16.msra.mxu0 %v2494
    %2558 = vmatpush.bf16.msra.mxu0 %v2491
    %2559 = vmatmul.bf16.gmra.mxu0 %v2409
    %v2560 = vpop.f32.mrf.mxu0
    %v2561 = vadd.f32 0.0, %v2560
    %v2562 = vpop.f32.mrf.mxu0
    %2563 = vdwg.mxu0
    %2564 = vmatpush.bf16.msra.mxu0 %v2513
    %2565 = vmatpush.bf16.msra.mxu0 %v2510
    %2566 = vmatpush.bf16.msra.mxu0 %v2507
    %2567 = vmatpush.bf16.msra.mxu0 %v2504
    %2568 = vmatpush.bf16.msra.mxu0 %v2501
    %2569 = vmatpush.bf16.msra.mxu0 %v2498
    %2570 = vmatpush.bf16.msra.mxu0 %v2495
    %2571 = vmatpush.bf16.msra.mxu0 %v2492
    %2572 = vmatmul.bf16.gmra.mxu0 %v2409
    %v2573 = vpop.f32.mrf.mxu0
    %v2574 = vadd.f32 0.0, %v2573
    %v2575 = vpop.f32.mrf.mxu0
    %2576 = vdwg.mxu0
    %s2577 = scalar_lea.vmem [#allocation7], 16
    %v2578 = vld [vmem:[%s2577] sm:$0x1]
    %v2579 = vperm.slane %v2578, 0
    %v2580 = vadd.f32 %v2548, %v2579
    %v2581 = vld [vmem:[%s2577 + $0x1] sm:$0x1]
    %v2582 = vperm.slane %v2581, 0
    %v2583 = vadd.f32 %v2561, %v2582
    %v2584 = vld [vmem:[%s2577 + $0x2] sm:$0x1]
    %v2585 = vperm.slane %v2584, 0
    %v2586 = vadd.f32 %v2574, %v2585
    %v2587 = vpack.c.bf16 %v2580, %v2580
    %v2588 = vpack.c.bf16 %v2583, %v2583
    %2589 = vmatpush.bf16.xpose.msra.mxu0 0
    %2590 = vmatpush.bf16.xpose.msra.mxu0 0
    %2591 = vmatpush.bf16.xpose.msra.mxu0 0
    %2592 = vmatpush.bf16.xpose.msra.mxu0 0
    %2593 = vmatpush.bf16.xpose.msra.mxu0 0
    %2594 = vmatpush.bf16.xpose.msra.mxu0 0
    %2595 = vmatpush.bf16.xpose.msra.mxu0 0
    %2596 = vmatpush.bf16.xpose.msra.mxu0 %v2588
    %2597 = vmatmul.bf16.gmra.mxu0 %v2587
    %v2598 = vpop.f32.mrf.mxu0
    %v2599 = vadd.f32 0.0, %v2598
    %v2600 = vpop.f32.mrf.mxu0
    %2601 = vdwg.mxu0
    %v2602 = vmul.f32 %v2599, 0.088388346
    %v2603 = vsel %vm422, %v2602, -inf
    %2604 = vmax.xlane.f32.xlu0 %v2603
    %v2605 = vpop.xlane.xlu0 %2604
    %v2606 = vsub.f32 %v2602, %v2605
    %v2607 = vmul.f32 %v2606, 1.442695
    %v2608 = vpow.pop %v2607
    %v2609 = vsel %vm422, %v2608, 0.0
    %2610 = vadd.xlane.f32.xlu0 %v2609
    %v2611 = vpop.xlane.xlu0 %2610
    %v2612 = vrcp.pop %v2611
    %v2613 = vmul.f32 %v2608, %v2612
    %v2614 = vpack.c.bf16 %v2613, %v2613
    %v2615 = vpack.c.bf16 %v2586, %v2586
    %v2617 = vsel %vm422, %v2614, 0
    %v2620 = vsel %vm439, %v2615, 0
    %2622 = vmatpush.bf16.msra.mxu0 0
    %2623 = vmatpush.bf16.msra.mxu0 0
    %2624 = vmatpush.bf16.msra.mxu0 0
    %2625 = vmatpush.bf16.msra.mxu0 0
    %2626 = vmatpush.bf16.msra.mxu0 0
    %2627 = vmatpush.bf16.msra.mxu0 0
    %2628 = vmatpush.bf16.msra.mxu0 0
    %2629 = vmatpush.bf16.msra.mxu0 %v2620
    %2630 = vmatmul.bf16.gmra.mxu0 %v2617
    %v2631 = vpop.f32.mrf.mxu0
    %v2632 = vadd.f32 0.0, %v2631
    %v2633 = vpop.f32.mrf.mxu0
    %2634 = vdwg.mxu0
    %v2635 = vld [vmem:[%s2376 + $0xc] sm:$0xf]
    %v2636 = vld [vmem:[%s2376 + $0x2c] sm:$0xf]
    %v2637 = vld [vmem:[%s2376 + $0x4c] sm:$0xf]
    %v2638 = vld [vmem:[%s2376 + $0x6c] sm:$0xf]
    %v2639 = vld [vmem:[%s2376 + $0x8c] sm:$0xf]
    %v2640 = vld [vmem:[%s2376 + $0xac] sm:$0xf]
    %v2641 = vld [vmem:[%s2376 + $0xcc] sm:$0xf]
    %v2642 = vld [vmem:[%s2376 + $0xec] sm:$0xf]
    %v2643 = vld [vmem:[%s2376 + $0x10c] sm:$0xf]
    %v2644 = vld [vmem:[%s2376 + $0x12c] sm:$0xf]
    %v2645 = vld [vmem:[%s2376 + $0x14c] sm:$0xf]
    %v2646 = vld [vmem:[%s2376 + $0x16c] sm:$0xf]
    %v2647 = vld [vmem:[%s2376 + $0x18c] sm:$0xf]
    %v2648 = vld [vmem:[%s2376 + $0x1ac] sm:$0xf]
    %v2649 = vld [vmem:[%s2376 + $0x1cc] sm:$0xf]
    %v2650 = vld [vmem:[%s2376 + $0x1ec] sm:$0xf]
    %v2651 = vpack.c.bf16 %v2632, %v2632
    %v2652 = vld [vmem:[%s2577 + $0x3] sm:$0x1]
    %v2653 = vperm.slane %v2652, 0
    %v2670 = vunpack.c.l.b16 %v2635
    %v2671 = vunpack.c.l.b16 %v2636
    %v2672 = vunpack.c.l.b16 %v2637
    %v2673 = vunpack.c.l.b16 %v2638
    %v2674 = vunpack.c.l.b16 %v2639
    %v2675 = vunpack.c.l.b16 %v2640
    %v2676 = vunpack.c.l.b16 %v2641
    %v2677 = vunpack.c.l.b16 %v2642
    %v2678 = vunpack.c.l.b16 %v2643
    %v2679 = vunpack.c.l.b16 %v2644
    %v2680 = vunpack.c.l.b16 %v2645
    %v2681 = vunpack.c.l.b16 %v2646
    %v2682 = vunpack.c.l.b16 %v2647
    %v2683 = vunpack.c.l.b16 %v2648
    %v2684 = vunpack.c.l.b16 %v2649
    %v2685 = vunpack.c.l.b16 %v2650
    %v2686 = vpack.c.b16 %v2671, %v2670
    %v2687 = vpack.c.b16 %v2673, %v2672
    %v2688 = vpack.c.b16 %v2675, %v2674
    %v2689 = vpack.c.b16 %v2677, %v2676
    %v2690 = vpack.c.b16 %v2679, %v2678
    %v2691 = vpack.c.b16 %v2681, %v2680
    %v2692 = vpack.c.b16 %v2683, %v2682
    %v2693 = vpack.c.b16 %v2685, %v2684
    %2702 = vmatpush.bf16.msra.mxu0 %v2693
    %2703 = vmatpush.bf16.msra.mxu0 %v2692
    %2704 = vmatpush.bf16.msra.mxu0 %v2691
    %2705 = vmatpush.bf16.msra.mxu0 %v2690
    %2706 = vmatpush.bf16.msra.mxu0 %v2689
    %2707 = vmatpush.bf16.msra.mxu0 %v2688
    %2708 = vmatpush.bf16.msra.mxu0 %v2687
    %2709 = vmatpush.bf16.msra.mxu0 %v2686
    %2710 = vmatmul.bf16.gmra.mxu0 %v2651
    %v2711 = vpop.f32.mrf.mxu0
    %v2712 = vadd.f32 %v2653, %v2711
    %v2713 = vpop.f32.mrf.mxu0
    %2714 = vdwg.mxu0
    %v2715 = vadd.f32 %v2375, %v2712
    %v2716 = vld [vmem:[%s2577 + $0x4] sm:$0x1]
    %v2717 = vld [vmem:[%s2577 + $0x5] sm:$0x1]
    %2718 = vadd.xlane.f32.xlu0 %v2715
    %v2719 = vpop.xlane.xlu0 %2718
    %v2720 = vmul.f32 %v2719, %v547
    %v2721 = vsub.f32 %v2715, %v2720
    %v2722 = vmul.f32 %v2721, %v2721
    %2723 = vadd.xlane.f32.xlu0 %v2722
    %v2724 = vpop.xlane.xlu0 %2723
    %v2725 = vmul.f32 %v2724, %v547
    %v2726 = vadd.f32 %v2725, 1e-05
    %v2727 = vrsqrt.pop %v2726
    %v2728 = vmul.f32 %v2727, %v2726
    %v2729 = vmul.f32 %v2728, %v2727
    %v2730 = vmul.f32 0.5, %v2729
    %v2731 = vsub.f32 1.5, %v2730
    %v2732 = vmul.f32 %v2727, %v2731
    %vm2733 = vweird.f32 %v2726
    %vm2734 = vweird.f32 %v2727
    %vm2735 = vmor %vm2733, %vm2734
    %v2736 = vsel %vm2735, %v2727, %v2732
    %v2737 = vmul.f32 %v2721, %v2736
    %v2738 = vperm.slane %v2716, 0
    %v2739 = vmul.f32 %v2737, %v2738
    %v2740 = vperm.slane %v2717, 0
    %v2741 = vadd.f32 %v2739, %v2740
    %v2742 = vld [vmem:[%s2376 + $0x10] sm:$0xf]
    %v2743 = vld [vmem:[%s2376 + $0x30] sm:$0xf]
    %v2744 = vld [vmem:[%s2376 + $0x50] sm:$0xf]
    %v2745 = vld [vmem:[%s2376 + $0x70] sm:$0xf]
    %v2746 = vld [vmem:[%s2376 + $0x90] sm:$0xf]
    %v2747 = vld [vmem:[%s2376 + $0xb0] sm:$0xf]
    %v2748 = vld [vmem:[%s2376 + $0xd0] sm:$0xf]
    %v2749 = vld [vmem:[%s2376 + $0xf0] sm:$0xf]
    %v2750 = vld [vmem:[%s2376 + $0x110] sm:$0xf]
    %v2751 = vld [vmem:[%s2376 + $0x130] sm:$0xf]
    %v2752 = vld [vmem:[%s2376 + $0x150] sm:$0xf]
    %v2753 = vld [vmem:[%s2376 + $0x170] sm:$0xf]
    %v2754 = vld [vmem:[%s2376 + $0x190] sm:$0xf]
    %v2755 = vld [vmem:[%s2376 + $0x1b0] sm:$0xf]
    %v2756 = vld [vmem:[%s2376 + $0x1d0] sm:$0xf]
    %v2757 = vld [vmem:[%s2376 + $0x1f0] sm:$0xf]
    %v2758 = vpack.c.bf16 %v2741, %v2741
    %v2759 = vld [vmem:[%s2577 + $0x6] sm:$0x1]
    %v2760 = vperm.slane %v2759, 0
    %v2777 = vunpack.c.l.b16 %v2742
    %v2778 = vunpack.c.l.b16 %v2743
    %v2779 = vunpack.c.l.b16 %v2744
    %v2780 = vunpack.c.l.b16 %v2745
    %v2781 = vunpack.c.l.b16 %v2746
    %v2782 = vunpack.c.l.b16 %v2747
    %v2783 = vunpack.c.l.b16 %v2748
    %v2784 = vunpack.c.l.b16 %v2749
    %v2785 = vunpack.c.l.b16 %v2750
    %v2786 = vunpack.c.l.b16 %v2751
    %v2787 = vunpack.c.l.b16 %v2752
    %v2788 = vunpack.c.l.b16 %v2753
    %v2789 = vunpack.c.l.b16 %v2754
    %v2790 = vunpack.c.l.b16 %v2755
    %v2791 = vunpack.c.l.b16 %v2756
    %v2792 = vunpack.c.l.b16 %v2757
    %v2793 = vpack.c.b16 %v2778, %v2777
    %v2794 = vpack.c.b16 %v2780, %v2779
    %v2795 = vpack.c.b16 %v2782, %v2781
    %v2796 = vpack.c.b16 %v2784, %v2783
    %v2797 = vpack.c.b16 %v2786, %v2785
    %v2798 = vpack.c.b16 %v2788, %v2787
    %v2799 = vpack.c.b16 %v2790, %v2789
    %v2800 = vpack.c.b16 %v2792, %v2791
    %2809 = vmatpush.bf16.msra.mxu0 %v2800
    %2810 = vmatpush.bf16.msra.mxu0 %v2799
    %2811 = vmatpush.bf16.msra.mxu0 %v2798
    %2812 = vmatpush.bf16.msra.mxu0 %v2797
    %2813 = vmatpush.bf16.msra.mxu0 %v2796
    %2814 = vmatpush.bf16.msra.mxu0 %v2795
    %2815 = vmatpush.bf16.msra.mxu0 %v2794
    %2816 = vmatpush.bf16.msra.mxu0 %v2793
    %2817 = vmatmul.bf16.gmra.mxu0 %v2758
    %v2818 = vpop.f32.mrf.mxu0
    %v2819 = vadd.f32 %v2760, %v2818
    %v2820 = vpop.f32.mrf.mxu0
    %2821 = vdwg.mxu0
    %v2822 = vld [vmem:[%s2577 + $0xe] sm:$0x1]
    %v2823 = vperm.slane %v2822, 0
    %v2824 = vadd.f32 %v1567, %v2823
    %v2825 = vld [vmem:[%s2577 + $0xf] sm:$0x1]
    %v2826 = vperm.slane %v2825, 0
    %v2827 = vadd.f32 %v1580, %v2826
    %v2828 = vpack.c.bf16 %v2819, %v2819
    %v2829 = vpack.c.bf16 %v2824, %v2824
    %2830 = vmatpush.bf16.xpose.msra.mxu0 0
    %2831 = vmatpush.bf16.xpose.msra.mxu0 0
    %2832 = vmatpush.bf16.xpose.msra.mxu0 0
    %2833 = vmatpush.bf16.xpose.msra.mxu0 0
    %2834 = vmatpush.bf16.xpose.msra.mxu0 0
    %2835 = vmatpush.bf16.xpose.msra.mxu0 0
    %2836 = vmatpush.bf16.xpose.msra.mxu0 0
    %2837 = vmatpush.bf16.xpose.msra.mxu0 %v2829
    %2838 = vmatmul.bf16.gmra.mxu0 %v2828
    %v2839 = vpop.f32.mrf.mxu0
    %v2840 = vadd.f32 0.0, %v2839
    %v2841 = vpop.f32.mrf.mxu0
    %2842 = vdwg.mxu0
    %v2843 = vmul.f32 %v2840, 0.088388346
    %v2844 = vsel %vm422, %v2843, -inf
    %2845 = vmax.xlane.f32.xlu0 %v2844
    %v2846 = vpop.xlane.xlu0 %2845
    %v2847 = vsub.f32 %v2843, %v2846
    %v2848 = vmul.f32 %v2847, 1.442695
    %v2849 = vpow.pop %v2848
    %v2850 = vsel %vm422, %v2849, 0.0
    %2851 = vadd.xlane.f32.xlu0 %v2850
    %v2852 = vpop.xlane.xlu0 %2851
    %v2853 = vrcp.pop %v2852
    %v2854 = vmul.f32 %v2849, %v2853
    %v2855 = vpack.c.bf16 %v2854, %v2854
    %v2856 = vpack.c.bf16 %v2827, %v2827
    %v2858 = vsel %vm422, %v2855, 0
    %v2861 = vsel %vm439, %v2856, 0
    %2863 = vmatpush.bf16.msra.mxu0 0
    %2864 = vmatpush.bf16.msra.mxu0 0
    %2865 = vmatpush.bf16.msra.mxu0 0
    %2866 = vmatpush.bf16.msra.mxu0 0
    %2867 = vmatpush.bf16.msra.mxu0 0
    %2868 = vmatpush.bf16.msra.mxu0 0
    %2869 = vmatpush.bf16.msra.mxu0 0
    %2870 = vmatpush.bf16.msra.mxu0 %v2861
    %2871 = vmatmul.bf16.gmra.mxu0 %v2858
    %v2872 = vpop.f32.mrf.mxu0
    %v2873 = vadd.f32 0.0, %v2872
    %v2874 = vpop.f32.mrf.mxu0
    %2875 = vdwg.mxu0
    %v2876 = vld [vmem:[%s2376 + $0x14] sm:$0xf]
    %v2877 = vld [vmem:[%s2376 + $0x34] sm:$0xf]
    %v2878 = vld [vmem:[%s2376 + $0x54] sm:$0xf]
    %v2879 = vld [vmem:[%s2376 + $0x74] sm:$0xf]
    %v2880 = vld [vmem:[%s2376 + $0x94] sm:$0xf]
    %v2881 = vld [vmem:[%s2376 + $0xb4] sm:$0xf]
    %v2882 = vld [vmem:[%s2376 + $0xd4] sm:$0xf]
    %v2883 = vld [vmem:[%s2376 + $0xf4] sm:$0xf]
    %v2884 = vld [vmem:[%s2376 + $0x114] sm:$0xf]
    %v2885 = vld [vmem:[%s2376 + $0x134] sm:$0xf]
    %v2886 = vld [vmem:[%s2376 + $0x154] sm:$0xf]
    %v2887 = vld [vmem:[%s2376 + $0x174] sm:$0xf]
    %v2888 = vld [vmem:[%s2376 + $0x194] sm:$0xf]
    %v2889 = vld [vmem:[%s2376 + $0x1b4] sm:$0xf]
    %v2890 = vld [vmem:[%s2376 + $0x1d4] sm:$0xf]
    %v2891 = vld [vmem:[%s2376 + $0x1f4] sm:$0xf]
    %v2892 = vpack.c.bf16 %v2873, %v2873
    %v2893 = vld [vmem:[%s2577 + $0x7] sm:$0x1]
    %v2894 = vperm.slane %v2893, 0
    %v2911 = vunpack.c.l.b16 %v2876
    %v2912 = vunpack.c.l.b16 %v2877
    %v2913 = vunpack.c.l.b16 %v2878
    %v2914 = vunpack.c.l.b16 %v2879
    %v2915 = vunpack.c.l.b16 %v2880
    %v2916 = vunpack.c.l.b16 %v2881
    %v2917 = vunpack.c.l.b16 %v2882
    %v2918 = vunpack.c.l.b16 %v2883
    %v2919 = vunpack.c.l.b16 %v2884
    %v2920 = vunpack.c.l.b16 %v2885
    %v2921 = vunpack.c.l.b16 %v2886
    %v2922 = vunpack.c.l.b16 %v2887
    %v2923 = vunpack.c.l.b16 %v2888
    %v2924 = vunpack.c.l.b16 %v2889
    %v2925 = vunpack.c.l.b16 %v2890
    %v2926 = vunpack.c.l.b16 %v2891
    %v2927 = vpack.c.b16 %v2912, %v2911
    %v2928 = vpack.c.b16 %v2914, %v2913
    %v2929 = vpack.c.b16 %v2916, %v2915
    %v2930 = vpack.c.b16 %v2918, %v2917
    %v2931 = vpack.c.b16 %v2920, %v2919
    %v2932 = vpack.c.b16 %v2922, %v2921
    %v2933 = vpack.c.b16 %v2924, %v2923
    %v2934 = vpack.c.b16 %v2926, %v2925
    %2943 = vmatpush.bf16.msra.mxu0 %v2934
    %2944 = vmatpush.bf16.msra.mxu0 %v2933
    %2945 = vmatpush.bf16.msra.mxu0 %v2932
    %2946 = vmatpush.bf16.msra.mxu0 %v2931
    %2947 = vmatpush.bf16.msra.mxu0 %v2930
    %2948 = vmatpush.bf16.msra.mxu0 %v2929
    %2949 = vmatpush.bf16.msra.mxu0 %v2928
    %2950 = vmatpush.bf16.msra.mxu0 %v2927
    %2951 = vmatmul.bf16.gmra.mxu0 %v2892
    %v2952 = vpop.f32.mrf.mxu0
    %v2953 = vadd.f32 %v2894, %v2952
    %v2954 = vpop.f32.mrf.mxu0
    %2955 = vdwg.mxu0
    %v2956 = vadd.f32 %v2741, %v2953
    %v2957 = vld [vmem:[%s2577 + $0x8] sm:$0x1]
    %v2958 = vld [vmem:[%s2577 + $0x9] sm:$0x1]
    %2959 = vadd.xlane.f32.xlu0 %v2956
    %v2960 = vpop.xlane.xlu0 %2959
    %v2961 = vmul.f32 %v2960, %v547
    %v2962 = vsub.f32 %v2956, %v2961
    %v2963 = vmul.f32 %v2962, %v2962
    %2964 = vadd.xlane.f32.xlu0 %v2963
    %v2965 = vpop.xlane.xlu0 %2964
    %v2966 = vmul.f32 %v2965, %v547
    %v2967 = vadd.f32 %v2966, 1e-05
    %v2968 = vrsqrt.pop %v2967
    %v2969 = vmul.f32 %v2968, %v2967
    %v2970 = vmul.f32 %v2969, %v2968
    %v2971 = vmul.f32 0.5, %v2970
    %v2972 = vsub.f32 1.5, %v2971
    %v2973 = vmul.f32 %v2968, %v2972
    %vm2974 = vweird.f32 %v2967
    %vm2975 = vweird.f32 %v2968
    %vm2976 = vmor %vm2974, %vm2975
    %v2977 = vsel %vm2976, %v2968, %v2973
    %v2978 = vmul.f32 %v2962, %v2977
    %v2979 = vperm.slane %v2957, 0
    %v2980 = vmul.f32 %v2978, %v2979
    %v2981 = vperm.slane %v2958, 0
    %v2982 = vadd.f32 %v2980, %v2981
    %v2983 = vld [vmem:[%s2376 + $0x18] sm:$0xf]
    %v2984 = vld [vmem:[%s2376 + $0x38] sm:$0xf]
    %v2985 = vld [vmem:[%s2376 + $0x58] sm:$0xf]
    %v2986 = vld [vmem:[%s2376 + $0x78] sm:$0xf]
    %v2987 = vld [vmem:[%s2376 + $0x98] sm:$0xf]
    %v2988 = vld [vmem:[%s2376 + $0xb8] sm:$0xf]
    %v2989 = vld [vmem:[%s2376 + $0xd8] sm:$0xf]
    %v2990 = vld [vmem:[%s2376 + $0xf8] sm:$0xf]
    %v2991 = vld [vmem:[%s2376 + $0x118] sm:$0xf]
    %v2992 = vld [vmem:[%s2376 + $0x138] sm:$0xf]
    %v2993 = vld [vmem:[%s2376 + $0x158] sm:$0xf]
    %v2994 = vld [vmem:[%s2376 + $0x178] sm:$0xf]
    %v2995 = vld [vmem:[%s2376 + $0x198] sm:$0xf]
    %v2996 = vld [vmem:[%s2376 + $0x1b8] sm:$0xf]
    %v2997 = vld [vmem:[%s2376 + $0x1d8] sm:$0xf]
    %v2998 = vld [vmem:[%s2376 + $0x1f8] sm:$0xf]
    %v2999 = vpack.c.bf16 %v2982, %v2982
    %v3000 = vld [vmem:[%s2577 + $0xa] sm:$0x1]
    %v3001 = vperm.slane %v3000, 0
    %v3018 = vunpack.c.l.b16 %v2983
    %v3019 = vunpack.c.l.b16 %v2984
    %v3020 = vunpack.c.l.b16 %v2985
    %v3021 = vunpack.c.l.b16 %v2986
    %v3022 = vunpack.c.l.b16 %v2987
    %v3023 = vunpack.c.l.b16 %v2988
    %v3024 = vunpack.c.l.b16 %v2989
    %v3025 = vunpack.c.l.b16 %v2990
    %v3026 = vunpack.c.l.b16 %v2991
    %v3027 = vunpack.c.l.b16 %v2992
    %v3028 = vunpack.c.l.b16 %v2993
    %v3029 = vunpack.c.l.b16 %v2994
    %v3030 = vunpack.c.l.b16 %v2995
    %v3031 = vunpack.c.l.b16 %v2996
    %v3032 = vunpack.c.l.b16 %v2997
    %v3033 = vunpack.c.l.b16 %v2998
    %v3034 = vpack.c.b16 %v3019, %v3018
    %v3035 = vpack.c.b16 %v3021, %v3020
    %v3036 = vpack.c.b16 %v3023, %v3022
    %v3037 = vpack.c.b16 %v3025, %v3024
    %v3038 = vpack.c.b16 %v3027, %v3026
    %v3039 = vpack.c.b16 %v3029, %v3028
    %v3040 = vpack.c.b16 %v3031, %v3030
    %v3041 = vpack.c.b16 %v3033, %v3032
    %3050 = vmatpush.bf16.msra.mxu0 %v3041
    %3051 = vmatpush.bf16.msra.mxu0 %v3040
    %3052 = vmatpush.bf16.msra.mxu0 %v3039
    %3053 = vmatpush.bf16.msra.mxu0 %v3038
    %3054 = vmatpush.bf16.msra.mxu0 %v3037
    %3055 = vmatpush.bf16.msra.mxu0 %v3036
    %3056 = vmatpush.bf16.msra.mxu0 %v3035
    %3057 = vmatpush.bf16.msra.mxu0 %v3034
    %3058 = vmatmul.bf16.gmra.mxu0 %v2999
    %v3059 = vpop.f32.mrf.mxu0
    %v3060 = vadd.f32 %v3001, %v3059
    %v3061 = vpop.f32.mrf.mxu0
    %3062 = vdwg.mxu0
    %v3063 = vmax.f32 %v3060, 0.0
    %v3064 = vld [vmem:[%s2376 + $0x1c] sm:$0xf]
    %v3065 = vld [vmem:[%s2376 + $0x3c] sm:$0xf]
    %v3066 = vld [vmem:[%s2376 + $0x5c] sm:$0xf]
    %v3067 = vld [vmem:[%s2376 + $0x7c] sm:$0xf]
    %v3068 = vld [vmem:[%s2376 + $0x9c] sm:$0xf]
    %v3069 = vld [vmem:[%s2376 + $0xbc] sm:$0xf]
    %v3070 = vld [vmem:[%s2376 + $0xdc] sm:$0xf]
    %v3071 = vld [vmem:[%s2376 + $0xfc] sm:$0xf]
    %v3072 = vld [vmem:[%s2376 + $0x11c] sm:$0xf]
    %v3073 = vld [vmem:[%s2376 + $0x13c] sm:$0xf]
    %v3074 = vld [vmem:[%s2376 + $0x15c] sm:$0xf]
    %v3075 = vld [vmem:[%s2376 + $0x17c] sm:$0xf]
    %v3076 = vld [vmem:[%s2376 + $0x19c] sm:$0xf]
    %v3077 = vld [vmem:[%s2376 + $0x1bc] sm:$0xf]
    %v3078 = vld [vmem:[%s2376 + $0x1dc] sm:$0xf]
    %v3079 = vld [vmem:[%s2376 + $0x1fc] sm:$0xf]
    %v3080 = vpack.c.bf16 %v3063, %v3063
    %v3081 = vld [vmem:[%s2577 + $0xb] sm:$0x1]
    %v3082 = vperm.slane %v3081, 0
    %v3099 = vunpack.c.l.b16 %v3064
    %v3100 = vunpack.c.l.b16 %v3065
    %v3101 = vunpack.c.l.b16 %v3066
    %v3102 = vunpack.c.l.b16 %v3067
    %v3103 = vunpack.c.l.b16 %v3068
    %v3104 = vunpack.c.l.b16 %v3069
    %v3105 = vunpack.c.l.b16 %v3070
    %v3106 = vunpack.c.l.b16 %v3071
    %v3107 = vunpack.c.l.b16 %v3072
    %v3108 = vunpack.c.l.b16 %v3073
    %v3109 = vunpack.c.l.b16 %v3074
    %v3110 = vunpack.c.l.b16 %v3075
    %v3111 = vunpack.c.l.b16 %v3076
    %v3112 = vunpack.c.l.b16 %v3077
    %v3113 = vunpack.c.l.b16 %v3078
    %v3114 = vunpack.c.l.b16 %v3079
    %v3115 = vpack.c.b16 %v3100, %v3099
    %v3116 = vpack.c.b16 %v3102, %v3101
    %v3117 = vpack.c.b16 %v3104, %v3103
    %v3118 = vpack.c.b16 %v3106, %v3105
    %v3119 = vpack.c.b16 %v3108, %v3107
    %v3120 = vpack.c.b16 %v3110, %v3109
    %v3121 = vpack.c.b16 %v3112, %v3111
    %v3122 = vpack.c.b16 %v3114, %v3113
    %3131 = vmatpush.bf16.msra.mxu0 %v3122
    %3132 = vmatpush.bf16.msra.mxu0 %v3121
    %3133 = vmatpush.bf16.msra.mxu0 %v3120
    %3134 = vmatpush.bf16.msra.mxu0 %v3119
    %3135 = vmatpush.bf16.msra.mxu0 %v3118
    %3136 = vmatpush.bf16.msra.mxu0 %v3117
    %3137 = vmatpush.bf16.msra.mxu0 %v3116
    %3138 = vmatpush.bf16.msra.mxu0 %v3115
    %3139 = vmatmul.bf16.gmra.mxu0 %v3080
    %v3140 = vpop.f32.mrf.mxu0
    %v3141 = vadd.f32 %v3082, %v3140
    %v3142 = vpop.f32.mrf.mxu0
    %3143 = vdwg.mxu0
    %v3144 = vadd.f32 %v2982, %v3141
    %v3145 = vld [vmem:[%s2577 + $0xc] sm:$0x1]
    %v3146 = vld [vmem:[%s2577 + $0xd] sm:$0x1]
    %3147 = vadd.xlane.f32.xlu0 %v3144
    %v3148 = vpop.xlane.xlu0 %3147
    %v3149 = vmul.f32 %v3148, %v547
    %v3150 = vsub.f32 %v3144, %v3149
    %v3151 = vmul.f32 %v3150, %v3150
    %3152 = vadd.xlane.f32.xlu0 %v3151
    %v3153 = vpop.xlane.xlu0 %3152
    %v3154 = vmul.f32 %v3153, %v547
    %v3155 = vadd.f32 %v3154, 1e-05
    %v3156 = vrsqrt.pop %v3155
    %v3157 = vmul.f32 %v3156, %v3155
    %v3158 = vmul.f32 %v3157, %v3156
    %v3159 = vmul.f32 0.5, %v3158
    %v3160 = vsub.f32 1.5, %v3159
    %v3161 = vmul.f32 %v3156, %v3160
    %vm3162 = vweird.f32 %v3155
    %vm3163 = vweird.f32 %v3156
    %vm3164 = vmor %vm3162, %vm3163
    %v3165 = vsel %vm3164, %v3156, %v3161
    %v3166 = vmul.f32 %v3150, %v3165
    %v3167 = vperm.slane %v3145, 0
    %v3168 = vmul.f32 %v3166, %v3167
    %v3169 = vperm.slane %v3146, 0
    %v3170 = vadd.f32 %v3168, %v3169
    %v3171 = vld [vmem:[%s8 + $0x3] sm:$0x1]
    %v3172 = vld [vmem:[%s8 + $0x4] sm:$0x1]
    %3173 = vadd.xlane.f32.xlu0 %v3170
    %v3174 = vpop.xlane.xlu0 %3173
    %v3175 = vmul.f32 %v3174, %v547
    %v3176 = vsub.f32 %v3170, %v3175
    %v3177 = vmul.f32 %v3176, %v3176
    %3178 = vadd.xlane.f32.xlu0 %v3177
    %v3179 = vpop.xlane.xlu0 %3178
    %v3180 = vmul.f32 %v3179, %v547
    %v3181 = vadd.f32 %v3180, 1e-05
    %v3182 = vrsqrt.pop %v3181
    %v3183 = vmul.f32 %v3182, %v3181
    %v3184 = vmul.f32 %v3183, %v3182
    %v3185 = vmul.f32 0.5, %v3184
    %v3186 = vsub.f32 1.5, %v3185
    %v3187 = vmul.f32 %v3182, %v3186
    %vm3188 = vweird.f32 %v3181
    %vm3189 = vweird.f32 %v3182
    %vm3190 = vmor %vm3188, %vm3189
    %v3191 = vsel %vm3190, %v3182, %v3187
    %v3192 = vmul.f32 %v3176, %v3191
    %v3193 = vperm.slane %v3171, 0
    %v3194 = vmul.f32 %v3192, %v3193
    %v3195 = vperm.slane %v3172, 0
    %v3196 = vadd.f32 %v3194, %v3195
    %v3197 = vld [vmem:[#allocation9] sm:$0xf]
    %v3198 = vld [vmem:[#allocation9 + $0x4] sm:$0xf]
    %v3199 = vld [vmem:[#allocation9 + $0x8] sm:$0xf]
    %v3200 = vld [vmem:[#allocation9 + $0xc] sm:$0xf]
    %v3201 = vld [vmem:[#allocation9 + $0x10] sm:$0xf]
    %v3202 = vld [vmem:[#allocation9 + $0x14] sm:$0xf]
    %v3203 = vld [vmem:[#allocation9 + $0x18] sm:$0xf]
    %v3204 = vld [vmem:[#allocation9 + $0x1c] sm:$0xf]
    %v3205 = vld [vmem:[#allocation9 + $0x20] sm:$0xf]
    %v3206 = vld [vmem:[#allocation9 + $0x24] sm:$0xf]
    %v3207 = vld [vmem:[#allocation9 + $0x28] sm:$0xf]
    %v3208 = vld [vmem:[#allocation9 + $0x2c] sm:$0xf]
    %v3209 = vld [vmem:[#allocation9 + $0x30] sm:$0xf]
    %v3210 = vld [vmem:[#allocation9 + $0x34] sm:$0xf]
    %v3211 = vld [vmem:[#allocation9 + $0x38] sm:$0xf]
    %v3212 = vld [vmem:[#allocation9 + $0x3c] sm:$0xf]
    %v3213 = vpack.c.bf16 %v3196, %v3196
    %v3214 = vld [vmem:[%s8 + $0x5] sm:$0x1]
    %v3215 = vperm.slane %v3214, 0
    %v3232 = vunpack.c.l.b16 %v3197
    %v3233 = vunpack.c.l.b16 %v3198
    %v3234 = vunpack.c.l.b16 %v3199
    %v3235 = vunpack.c.l.b16 %v3200
    %v3236 = vunpack.c.l.b16 %v3201
    %v3237 = vunpack.c.l.b16 %v3202
    %v3238 = vunpack.c.l.b16 %v3203
    %v3239 = vunpack.c.l.b16 %v3204
    %v3240 = vunpack.c.l.b16 %v3205
    %v3241 = vunpack.c.l.b16 %v3206
    %v3242 = vunpack.c.l.b16 %v3207
    %v3243 = vunpack.c.l.b16 %v3208
    %v3244 = vunpack.c.l.b16 %v3209
    %v3245 = vunpack.c.l.b16 %v3210
    %v3246 = vunpack.c.l.b16 %v3211
    %v3247 = vunpack.c.l.b16 %v3212
    %v3248 = vpack.c.b16 %v3233, %v3232
    %v3249 = vpack.c.b16 %v3235, %v3234
    %v3250 = vpack.c.b16 %v3237, %v3236
    %v3251 = vpack.c.b16 %v3239, %v3238
    %v3252 = vpack.c.b16 %v3241, %v3240
    %v3253 = vpack.c.b16 %v3243, %v3242
    %v3254 = vpack.c.b16 %v3245, %v3244
    %v3255 = vpack.c.b16 %v3247, %v3246
    %3264 = vmatpush.bf16.msra.mxu0 %v3255
    %3265 = vmatpush.bf16.msra.mxu0 %v3254
    %3266 = vmatpush.bf16.msra.mxu0 %v3253
    %3267 = vmatpush.bf16.msra.mxu0 %v3252
    %3268 = vmatpush.bf16.msra.mxu0 %v3251
    %3269 = vmatpush.bf16.msra.mxu0 %v3250
    %3270 = vmatpush.bf16.msra.mxu0 %v3249
    %3271 = vmatpush.bf16.msra.mxu0 %v3248
    %3272 = vmatmul.bf16.gmra.mxu0 %v3213
    %v3273 = vpop.f32.mrf.mxu0
    %v3274 = vadd.f32 %v3215, %v3273
    %v3275 = vpop.f32.mrf.mxu0
    %3276 = vdwg.mxu0
    %3277 = vst [vmem:[%s9] sm:$0xff] %v3274
    // Predicated region
    $region58: #{transformer_forward.1} parent=1 // pred_check
      _
    $region59: #{transformer_forward.1} parent=1 // pred_check_branch
      %3279 = sbr.rel (0) target = $region61
    $region60: #{transformer_forward.1} parent=1 // pred_region
      _
    $region61: #{transformer_forward.1} parent=1 // pred_fallthru
      _
    // Predicated region
    $region62: #{transformer_forward.1} parent=1 // pred_check
      _
    $region63: #{transformer_forward.1} parent=1 // pred_check_branch
      %3281 = sbr.rel (0) target = $region65
    $region64: #{transformer_forward.1} parent=1 // pred_region
      _
    $region65: #{transformer_forward.1} parent=1 // pred_fallthru
      _
    %3282 = vsyncpa [#allocation3], 1
    %3283 = vsyncpa [#allocation5], 1
    %3284 = vsyncpa [#allocation8], 1

</llo_original>
